<compile_context>
chip_gen: v7x
topology: tpu7x:2x2x1
jax: 0.10.0
libtpu: 0.0.40
codegen_flags: <defaults>
</compile_context>

<pallas_src>
import functools
import math

import jax
import jax.numpy as jnp
from jax.experimental import pallas as pl
from jax.experimental.pallas import tpu as pltpu

D_PE = 64     # PositionalEncoding d_model
D_IO = 256    # in_out embedding dim
LN_EPS = 1e-5


def _layer_norm(x, w, b, eps=LN_EPS):
    mu = jnp.mean(x, axis=-1, keepdims=True)
    var = jnp.mean((x - mu) ** 2, axis=-1, keepdims=True)
    return (x - mu) * jax.lax.rsqrt(var + eps) * w + b


# ---------------------------------------------------------------------------
# Pallas kernel: one grid step == one (batch block, TransformerEncoderLayer)
# ---------------------------------------------------------------------------
def encoder_layer_kernel(x0_ref, mask_ref,
                         inw_ref, inb_ref, ow_ref, ob_ref,
                         ln1w_ref, ln1b_ref, ln2w_ref, ln2b_ref,
                         l1w_ref, l1b_ref, l2w_ref, l2b_ref,
                         out_ref, *, n_head):
    layer = pl.program_id(1)

    # First layer of this batch block: seed the resident accumulator with the
    # pos-encoded input (output blocks are not loaded from HBM by Pallas).
    @pl.when(layer == 0)
    def _():
        out_ref[...] = x0_ref[...]

    _, S, D = out_ref.shape
    H = n_head
    hd = D // H

    x = out_ref[0]                 # (S, D) f32 current activations
    resid_outer = x                # the module's extra "output += residual"
    mask = mask_ref[...]           # (S, S) additive attention mask

    # ----- fused QKV projection (bf16 MXU, f32 accumulation) ---------------
    x_bf = x.astype(jnp.bfloat16)
    qkv = jnp.dot(x_bf, inw_ref[0],
                  preferred_element_type=jnp.float32) + inb_ref[0]   # (S, 3D)
    qkv_bf = qkv.astype(jnp.bfloat16)

    # ----- multi-head self-attention ---------------------------------------
    # Static unroll over heads; every slice is a lane-aligned (S, 128) tile,
    # so there are no reshapes / misaligned copies. 1/sqrt(hd) is already
    # folded into the Q weights on the host.
    ctx_heads = []
    for h in range(H):
        q_h = qkv_bf[:, h * hd:(h + 1) * hd]
        k_h = qkv_bf[:, D + h * hd:D + (h + 1) * hd]
        v_h = qkv_bf[:, 2 * D + h * hd:2 * D + (h + 1) * hd]
        s = jnp.einsum('qd,kd->qk', q_h, k_h,
                       preferred_element_type=jnp.float32)           # (S, S)
        s = s + mask
        s = s - jnp.max(s, axis=-1, keepdims=True)
        p = jnp.exp(s)
        p = p * pl.reciprocal(jnp.sum(p, axis=-1, keepdims=True), approx=True)
        ctx_heads.append(jnp.dot(p.astype(jnp.bfloat16), v_h,
                                 preferred_element_type=jnp.float32))
    ctx = jnp.concatenate(ctx_heads, axis=-1)                         # (S, D)

    attn = jnp.dot(ctx.astype(jnp.bfloat16), ow_ref[0],
                   preferred_element_type=jnp.float32) + ob_ref[0]

    # ----- post-norm 1 ------------------------------------------------------
    y = _layer_norm(x + attn, ln1w_ref[0], ln1b_ref[0])

    # ----- feed-forward (linear -> relu -> linear), DFF padded to 128 -------
    h1 = jnp.dot(y.astype(jnp.bfloat16), l1w_ref[0],
                 preferred_element_type=jnp.float32) + l1b_ref[0]
    h1 = jnp.maximum(h1, 0.0)
    ff = jnp.dot(h1.astype(jnp.bfloat16), l2w_ref[0],
                 preferred_element_type=jnp.float32) + l2b_ref[0]

    # ----- post-norm 2 + outer residual --------------------------------------
    z = _layer_norm(y + ff, ln2w_ref[0], ln2b_ref[0])
    out_ref[0] = z + resid_outer


def encoder_stack_pallas(x0, mask, kparams, *, n_head):
    B, S, D = x0.shape
    L = kparams['in_w'].shape[0]
    DFFp = kparams['l1_w'].shape[2]

    kernel = functools.partial(encoder_layer_kernel, n_head=n_head)

    def per_layer(shape):
        nd = len(shape)
        return pl.BlockSpec((1,) + shape,
                            lambda b, l, _nd=nd: (l,) + (0,) * _nd)

    in_specs = [
        pl.BlockSpec((1, S, D), lambda b, l: (b, 0, 0)),   # x0 (per batch)
        pl.BlockSpec((S, S), lambda b, l: (0, 0)),         # mask (shared)
        per_layer((D, 3 * D)),     # in_proj_w   (pre-transposed, bf16, Q pre-scaled)
        per_layer((1, 3 * D)),     # in_proj_b   (f32, Q pre-scaled)
        per_layer((D, D)),         # out_proj_w  (pre-transposed, bf16)
        per_layer((1, D)),         # out_proj_b
        per_layer((1, D)),         # ln1_w
        per_layer((1, D)),         # ln1_b
        per_layer((1, D)),         # ln2_w
        per_layer((1, D)),         # ln2_b
        per_layer((D, DFFp)),      # linear1_w   (pre-transposed, padded, bf16)
        per_layer((1, DFFp)),      # linear1_b   (padded)
        per_layer((DFFp, D)),      # linear2_w   (pre-transposed, padded, bf16)
        per_layer((1, D)),         # linear2_b
    ]
    out_spec = pl.BlockSpec((1, S, D), lambda b, l: (b, 0, 0))

    return pl.pallas_call(
        kernel,
        out_shape=jax.ShapeDtypeStruct((B, S, D), jnp.float32),
        grid_spec=pltpu.PrefetchScalarGridSpec(
            num_scalar_prefetch=0,
            grid=(B, L),                 # layer axis innermost (accumulator)
            in_specs=in_specs,
            out_specs=out_spec,
        ),
        input_output_aliases={0: 0},     # reuse x0's HBM buffer for the output
        compiler_params=pltpu.CompilerParams(
            dimension_semantics=("parallel", "arbitrary"),
            vmem_limit_bytes=32 * 1024 * 1024,
        ),
    )(x0, mask,
      kparams['in_w'], kparams['in_b'], kparams['out_w'], kparams['out_b'],
      kparams['ln1_w'], kparams['ln1b'] if 'ln1b' in kparams else kparams['ln1_b'],
      kparams['ln2_w'], kparams['ln2_b'],
      kparams['l1_w'], kparams['l1_b'], kparams['l2_w'], kparams['l2_b'])


# ---------------------------------------------------------------------------
# Host-side parameter re-layout for the kernel
# ---------------------------------------------------------------------------
def prepare_kernel_params(params, *, n_head):
    """(L, out, in) f32 PyTorch layout -> (L, in, out) bf16, scale-folded, padded."""
    in_w = params['in_w']                       # (L, 3D, D)
    L, threeD, D = in_w.shape
    assert D % n_head == 0, "d_model must be divisible by n_head"
    hd = D // n_head
    scale = 1.0 / math.sqrt(hd)

    # Fold the attention 1/sqrt(hd) scale into the Q rows/entries of in_proj.
    qscale = jnp.concatenate([jnp.full((D,), scale, jnp.float32),
                              jnp.ones((2 * D,), jnp.float32)])
    in_w_s = in_w * qscale[None, :, None]
    in_b_s = params['in_b'] * qscale[None, None, :]

    def t(w):                                    # (L, out, in) -> (L, in, out)
        return jnp.swapaxes(w, 1, 2)

    DFF = params['l1_w'].shape[1]
    DFFp = max(128, ((DFF + 127) // 128) * 128)  # lane-dense FF width
    pad = DFFp - DFF
    l1_w = jnp.pad(params['l1_w'], ((0, 0), (0, pad), (0, 0)))   # (L, DFFp, D)
    l1_b = jnp.pad(params['l1_b'], ((0, 0), (0, 0), (0, pad)))   # (L, 1, DFFp)
    l2_w = jnp.pad(params['l2_w'], ((0, 0), (0, 0), (0, pad)))   # (L, D, DFFp)

    return {
        'in_w':  t(in_w_s).astype(jnp.bfloat16),          # (L, D, 3D)
        'in_b':  in_b_s,                                   # (L, 1, 3D) f32
        'out_w': t(params['out_w']).astype(jnp.bfloat16),  # (L, D, D)
        'out_b': params['out_b'],
        'ln1_w': params['ln1_w'], 'ln1_b': params['ln1_b'],
        'ln2_w': params['ln2_w'], 'ln2_b': params['ln2_b'],
        'l1_w':  t(l1_w).astype(jnp.bfloat16),             # (L, D, DFFp)
        'l1_b':  l1_b,                                      # (L, 1, DFFp)
        'l2_w':  t(l2_w).astype(jnp.bfloat16),             # (L, DFFp, D)
        'l2_b':  params['l2_b'],
    }


# ---------------------------------------------------------------------------
# Pure-JAX reference (f32, PyTorch-layout params) for a correctness check
# ---------------------------------------------------------------------------
def encoder_stack_ref(x0, mask, params, *, n_head):
    B, S, D = x0.shape
    L = params['in_w'].shape[0]
    hd = D // n_head
    x = x0
    for l in range(L):
        resid = x
        x2 = x.reshape(B * S, D)
        qkv = x2 @ params['in_w'][l].T + params['in_b'][l, 0]
        q, k, v = qkv[:, :D], qkv[:, D:2 * D], qkv[:, 2 * D:]
        ctxs = []
        for h in range(n_head):
            sl = slice(h * hd, (h + 1) * hd)
            qh = q[:, sl].reshape(B, S, hd)
            kh = k[:, sl].reshape(B, S, hd)
            vh = v[:, sl].reshape(B, S, hd)
            s = jnp.einsum('bqd,bkd->bqk', qh, kh) / math.sqrt(hd) + mask[None]
            p = jax.nn.softmax(s, axis=-1)
            ctxs.append(jnp.einsum('bqk,bkd->bqd', p, vh))
        ctx = jnp.concatenate(ctxs, -1).reshape(B * S, D)
        attn = (ctx @ params['out_w'][l].T + params['out_b'][l, 0]).reshape(B, S, D)
        y = _layer_norm(x + attn, params['ln1_w'][l, 0], params['ln1_b'][l, 0])
        hmid = jnp.maximum(y.reshape(B * S, D) @ params['l1_w'][l].T
                           + params['l1_b'][l, 0], 0.0)
        ff = (hmid @ params['l2_w'][l].T + params['l2_b'][l, 0]).reshape(B, S, D)
        z = _layer_norm(y + ff, params['ln2_w'][l, 0], params['ln2_b'][l, 0])
        x = z + resid
    return x


# ---------------------------------------------------------------------------
# Positional-encoding glue + full model forward
# ---------------------------------------------------------------------------
def sinusoidal_pe(seq_len, d_pe=D_PE):
    pos = jnp.arange(seq_len, dtype=jnp.float32)[:, None]
    div = jnp.exp(jnp.arange(0, d_pe, 2, dtype=jnp.float32)
                  * (-math.log(10000.0) / d_pe))
    pe = jnp.zeros((seq_len, d_pe), jnp.float32)
    pe = pe.at[:, 0::2].set(jnp.sin(pos * div))
    pe = pe.at[:, 1::2].set(jnp.cos(pos * div))
    return pe


def transformer_model_forward(src, src_mask, params, *, n_head, n_embd,
                              use_pallas=True):
    # TODO(synk): only the default pe_type='sin', position_ids=None branch of
    # PositionalEncoding.forward is implemented (learned-wpe branch is dead
    # under the module defaults); dropout p=0 -> identity.
    B, S, _ = src.shape
    pe = sinusoidal_pe(S)                                    # (S, 64)
    # [0,1,0,1,...]; arange%2 also covers odd S (PyTorch would fail there).
    idx = (jnp.arange(S) % 2).astype(jnp.int32)
    io = params['in_out'][idx]                               # (S, 256)
    x0 = jnp.concatenate(
        [src,
         jnp.broadcast_to(pe[None], (B, S, D_PE)),
         jnp.broadcast_to(io[None], (B, S, D_IO))], axis=-1)  # (B, S, D)
    if use_pallas:
        kparams = prepare_kernel_params(params, n_head=n_head)
        out = encoder_stack_pallas(x0, src_mask, kparams, n_head=n_head)
    else:
        out = encoder_stack_ref(x0, src_mask, params, n_head=n_head)
    return out[:, :, :n_embd]                                 # slice to n_embd


# ---------------------------------------------------------------------------
# Deterministic parameter construction (synthetic; shapes from __init__)
# ---------------------------------------------------------------------------
def init_params(key, n_embd, n_layer):
    D = n_embd + D_PE + D_IO
    DFF = n_embd                     # dim_feedforward = config.n_embd
    keys = jax.random.split(key, 7)

    def lin_w(k, out_f, in_f):
        return (jax.random.normal(k, (n_layer, out_f, in_f), jnp.float32)
                * (1.0 / math.sqrt(in_f)))

    return {
        'in_out': jax.random.normal(keys[0], (2, D_IO), jnp.float32) * 0.02,
        'in_w':  lin_w(keys[1], 3 * D, D),
        'in_b':  jax.random.normal(keys[2], (n_layer, 1, 3 * D), jnp.float32) * 0.01,
        'out_w': lin_w(keys[3], D, D),
        'out_b': jnp.zeros((n_layer, 1, D), jnp.float32),
        'ln1_w': jnp.ones((n_layer, 1, D), jnp.float32),
        'ln1_b': jnp.zeros((n_layer, 1, D), jnp.float32),
        'ln2_w': jnp.ones((n_layer, 1, D), jnp.float32),
        'ln2_b': jnp.zeros((n_layer, 1, D), jnp.float32),
        'l1_w':  lin_w(keys[4], DFF, D),
        'l1_b':  jax.random.normal(keys[5], (n_layer, 1, DFF), jnp.float32) * 0.01,
        'l2_w':  lin_w(keys[6], D, DFF),
        'l2_b':  jnp.zeros((n_layer, 1, D), jnp.float32),
    }


if __name__ == "__main__":
    # config: n_embd=64, n_head=3 (D = 64+64+256 = 384, head_dim = 128), n_layer=2
    n_embd, n_head, n_layer = 64, 3, 2
    B, S = 2, 8

    key = jax.random.PRNGKey(0)
    kp_, ks_ = jax.random.split(key)
    params = init_params(kp_, n_embd, n_layer)

    src = jax.random.normal(ks_, (B, S, n_embd), jnp.float32)
    src_mask = jnp.zeros((S, S), jnp.float32)   # additive attention mask

    fwd = jax.jit(functools.partial(transformer_model_forward,
                                    n_head=n_head, n_embd=n_embd,
                                    use_pallas=True))
    out = jax.block_until_ready(fwd(src, src_mask, params))

    ref = transformer_model_forward(src, src_mask, params,
                                    n_head=n_head, n_embd=n_embd,
                                    use_pallas=False)

    assert out.shape == (B, S, n_embd)
    assert bool(jnp.all(jnp.isfinite(out)))
    # bf16 matmul inputs + approx reciprocal vs f32 reference -> loose tolerance.
    err = float(jnp.max(jnp.abs(out - ref)))
    assert bool(jnp.allclose(out, ref, atol=5e-2, rtol=5e-2)), f"max abs err {err}"
    print("KERNEL_OK")
</pallas_src>

<mosaic_0001>
module attributes {stable_mosaic.version = 11 : i64} {
  func.func @encoder_layer_kernel(%arg0: i32, %arg1: i32, %arg2: memref<1x8x384xf32, #tpu.memory_space<vmem>>, %arg3: memref<8x8xf32, #tpu.memory_space<vmem>>, %arg4: memref<1x384x1152xbf16, #tpu.memory_space<vmem>>, %arg5: memref<1x1x1152xf32, #tpu.memory_space<vmem>>, %arg6: memref<1x384x384xbf16, #tpu.memory_space<vmem>>, %arg7: memref<1x1x384xf32, #tpu.memory_space<vmem>>, %arg8: memref<1x1x384xf32, #tpu.memory_space<vmem>>, %arg9: memref<1x1x384xf32, #tpu.memory_space<vmem>>, %arg10: memref<1x1x384xf32, #tpu.memory_space<vmem>>, %arg11: memref<1x1x384xf32, #tpu.memory_space<vmem>>, %arg12: memref<1x384x128xbf16, #tpu.memory_space<vmem>>, %arg13: memref<1x1x128xf32, #tpu.memory_space<vmem>>, %arg14: memref<1x128x384xbf16, #tpu.memory_space<vmem>>, %arg15: memref<1x1x384xf32, #tpu.memory_space<vmem>>, %arg16: memref<1x8x384xf32, #tpu.memory_space<vmem>>) attributes {dimension_semantics = [#tpu.dimension_semantics<parallel>, #tpu.dimension_semantics<arbitrary>], iteration_bounds = array<i64: 2, 2>, scalar_prefetch = 0 : i64, scratch_operands = 0 : i64, tpu.core_type = #tpu.core_type<tc>, window_params = [{transform_indices = @transform_0, window_bounds = array<i64: 1, 8, 384>}, {pipeline_mode = #tpu.pipeline_mode<synchronous>, transform_indices = @transform_1, window_bounds = array<i64: 8, 8>}, {transform_indices = @transform_2, window_bounds = array<i64: 1, 384, 1152>}, {transform_indices = @transform_3, window_bounds = array<i64: 1, 1, 1152>}, {transform_indices = @transform_4, window_bounds = array<i64: 1, 384, 384>}, {transform_indices = @transform_5, window_bounds = array<i64: 1, 1, 384>}, {transform_indices = @transform_6, window_bounds = array<i64: 1, 1, 384>}, {transform_indices = @transform_7, window_bounds = array<i64: 1, 1, 384>}, {transform_indices = @transform_8, window_bounds = array<i64: 1, 1, 384>}, {transform_indices = @transform_9, window_bounds = array<i64: 1, 1, 384>}, {transform_indices = @transform_10, window_bounds = array<i64: 1, 384, 128>}, {transform_indices = @transform_11, window_bounds = array<i64: 1, 1, 128>}, {transform_indices = @transform_12, window_bounds = array<i64: 1, 128, 384>}, {transform_indices = @transform_13, window_bounds = array<i64: 1, 1, 384>}, {transform_indices = @transform_14, window_bounds = array<i64: 1, 8, 384>}]} {
    %c0_i32 = arith.constant 0 : i32
    %0 = arith.cmpi eq, %arg1, %c0_i32 : i32
    %1 = arith.extui %0 : i1 to i32
    %c0_i32_0 = arith.constant 0 : i32
    %2 = arith.cmpi ne, %1, %c0_i32_0 : i32
    scf.if %2 {
      %c0_70 = arith.constant 0 : index
      %c0_71 = arith.constant 0 : index
      %c0_72 = arith.constant 0 : index
      %151 = vector.load %arg2[%c0_70, %c0_71, %c0_72] : memref<1x8x384xf32, #tpu.memory_space<vmem>>, vector<1x8x384xf32>
      %c0_73 = arith.constant 0 : index
      %c0_74 = arith.constant 0 : index
      %c0_75 = arith.constant 0 : index
      %152 = vector.load %arg16[%c0_73, %c0_74, %c0_75] : memref<1x8x384xf32, #tpu.memory_space<vmem>>, vector<1x8x384xf32>
      tpu.vector_store %arg16[%c0_73, %c0_74, %c0_75], %151 {strides = array<i32>} : memref<1x8x384xf32, #tpu.memory_space<vmem>>, vector<1x8x384xf32>,
    } else {
    }
    %c0 = arith.constant 0 : index
    %c0_1 = arith.constant 0 : index
    %c0_2 = arith.constant 0 : index
    %3 = vector.load %arg16[%c0, %c0_1, %c0_2] : memref<1x8x384xf32, #tpu.memory_space<vmem>>, vector<1x8x384xf32>
    %4 = vector.shape_cast %3 : vector<1x8x384xf32> to vector<8x384xf32>
    %c0_3 = arith.constant 0 : index
    %c0_4 = arith.constant 0 : index
    %5 = vector.load %arg3[%c0_3, %c0_4] : memref<8x8xf32, #tpu.memory_space<vmem>>, vector<8x8xf32>
    %6 = arith.truncf %4 : vector<8x384xf32> to vector<8x384xbf16>
    %c0_5 = arith.constant 0 : index
    %c0_6 = arith.constant 0 : index
    %c0_7 = arith.constant 0 : index
    %7 = vector.load %arg4[%c0_5, %c0_6, %c0_7] : memref<1x384x1152xbf16, #tpu.memory_space<vmem>>, vector<1x384x1152xbf16>
    %8 = vector.shape_cast %7 : vector<1x384x1152xbf16> to vector<384x1152xbf16>
    %cst = arith.constant dense<0.000000e+00> : vector<8x1152xf32>
    %9 = tpu.matmul %6, %8, %cst {dimension_numbers = #tpu.dot_dimension_numbers<[1], [0], [0], [1], [0, 0, 1, 1], [], []>} : vector<8x384xbf16>, vector<384x1152xbf16>, vector<8x1152xf32> -> vector<8x1152xf32>
    %c0_8 = arith.constant 0 : index
    %c0_9 = arith.constant 0 : index
    %c0_10 = arith.constant 0 : index
    %10 = vector.load %arg5[%c0_8, %c0_9, %c0_10] : memref<1x1x1152xf32, #tpu.memory_space<vmem>>, vector<1x1x1152xf32>
    %11 = vector.shape_cast %10 : vector<1x1x1152xf32> to vector<1x1152xf32>
    %12 = vector.broadcast %11 : vector<1x1152xf32> to vector<8x1152xf32>
    %13 = arith.addf %9, %12 : vector<8x1152xf32>
    %14 = arith.truncf %13 : vector<8x1152xf32> to vector<8x1152xbf16>
    %15 = vector.extract_strided_slice %14 {offsets = [0, 0], sizes = [8, 128], strides = [1, 1]} : vector<8x1152xbf16> to vector<8x128xbf16>
    %16 = vector.extract_strided_slice %14 {offsets = [0, 384], sizes = [8, 128], strides = [1, 1]} : vector<8x1152xbf16> to vector<8x128xbf16>
    %17 = vector.extract_strided_slice %14 {offsets = [0, 768], sizes = [8, 128], strides = [1, 1]} : vector<8x1152xbf16> to vector<8x128xbf16>
    "tpu.trace_start"() <{level = 10 : i32, message = "qd,kd->qk"}> : () -> ()
    %cst_11 = arith.constant dense<0.000000e+00> : vector<8x8xf32>
    %18 = tpu.matmul %15, %16, %cst_11 {dimension_numbers = #tpu.dot_dimension_numbers<[1], [1], [0], [0], [0, 0, 1, 0], [], []>} : vector<8x128xbf16>, vector<8x128xbf16>, vector<8x8xf32> -> vector<8x8xf32>
    "tpu.trace_stop"() : () -> ()
    %19 = arith.addf %18, %5 : vector<8x8xf32>
    %cst_12 = arith.constant dense<0xFF800000> : vector<8xf32>
    %20 = vector.multi_reduction <maximumf>, %19, %cst_12 [1] : vector<8x8xf32> to vector<8xf32>
    %21 = vector.shape_cast %20 : vector<8xf32> to vector<8x1xf32>
    %22 = vector.broadcast %21 : vector<8x1xf32> to vector<8x8xf32>
    %23 = arith.subf %19, %22 : vector<8x8xf32>
    %24 = math.exp %23 : vector<8x8xf32>
    %cst_13 = arith.constant dense<0.000000e+00> : vector<8xf32>
    %25 = vector.multi_reduction <add>, %24, %cst_13 [1] : vector<8x8xf32> to vector<8xf32>
    %26 = vector.shape_cast %25 : vector<8xf32> to vector<8x1xf32>
    %27 = tpu.reciprocal %26 {approx = true} : vector<8x1xf32> -> vector<8x1xf32>
    %28 = vector.broadcast %27 : vector<8x1xf32> to vector<8x8xf32>
    %29 = arith.mulf %24, %28 : vector<8x8xf32>
    %30 = arith.truncf %29 : vector<8x8xf32> to vector<8x8xbf16>
    %cst_14 = arith.constant dense<0.000000e+00> : vector<8x128xf32>
    %31 = tpu.matmul %30, %17, %cst_14 {dimension_numbers = #tpu.dot_dimension_numbers<[1], [0], [0], [1], [0, 0, 1, 1], [], []>} : vector<8x8xbf16>, vector<8x128xbf16>, vector<8x128xf32> -> vector<8x128xf32>
    %32 = vector.extract_strided_slice %14 {offsets = [0, 128], sizes = [8, 128], strides = [1, 1]} : vector<8x1152xbf16> to vector<8x128xbf16>
    %33 = vector.extract_strided_slice %14 {offsets = [0, 512], sizes = [8, 128], strides = [1, 1]} : vector<8x1152xbf16> to vector<8x128xbf16>
    %34 = vector.extract_strided_slice %14 {offsets = [0, 896], sizes = [8, 128], strides = [1, 1]} : vector<8x1152xbf16> to vector<8x128xbf16>
    "tpu.trace_start"() <{level = 10 : i32, message = "qd,kd->qk"}> : () -> ()
    %cst_15 = arith.constant dense<0.000000e+00> : vector<8x8xf32>
    %35 = tpu.matmul %32, %33, %cst_15 {dimension_numbers = #tpu.dot_dimension_numbers<[1], [1], [0], [0], [0, 0, 1, 0], [], []>} : vector<8x128xbf16>, vector<8x128xbf16>, vector<8x8xf32> -> vector<8x8xf32>
    "tpu.trace_stop"() : () -> ()
    %36 = arith.addf %35, %5 : vector<8x8xf32>
    %cst_16 = arith.constant dense<0xFF800000> : vector<8xf32>
    %37 = vector.multi_reduction <maximumf>, %36, %cst_16 [1] : vector<8x8xf32> to vector<8xf32>
    %38 = vector.shape_cast %37 : vector<8xf32> to vector<8x1xf32>
    %39 = vector.broadcast %38 : vector<8x1xf32> to vector<8x8xf32>
    %40 = arith.subf %36, %39 : vector<8x8xf32>
    %41 = math.exp %40 : vector<8x8xf32>
    %cst_17 = arith.constant dense<0.000000e+00> : vector<8xf32>
    %42 = vector.multi_reduction <add>, %41, %cst_17 [1] : vector<8x8xf32> to vector<8xf32>
    %43 = vector.shape_cast %42 : vector<8xf32> to vector<8x1xf32>
    %44 = tpu.reciprocal %43 {approx = true} : vector<8x1xf32> -> vector<8x1xf32>
    %45 = vector.broadcast %44 : vector<8x1xf32> to vector<8x8xf32>
    %46 = arith.mulf %41, %45 : vector<8x8xf32>
    %47 = arith.truncf %46 : vector<8x8xf32> to vector<8x8xbf16>
    %cst_18 = arith.constant dense<0.000000e+00> : vector<8x128xf32>
    %48 = tpu.matmul %47, %34, %cst_18 {dimension_numbers = #tpu.dot_dimension_numbers<[1], [0], [0], [1], [0, 0, 1, 1], [], []>} : vector<8x8xbf16>, vector<8x128xbf16>, vector<8x128xf32> -> vector<8x128xf32>
    %49 = vector.extract_strided_slice %14 {offsets = [0, 256], sizes = [8, 128], strides = [1, 1]} : vector<8x1152xbf16> to vector<8x128xbf16>
    %50 = vector.extract_strided_slice %14 {offsets = [0, 640], sizes = [8, 128], strides = [1, 1]} : vector<8x1152xbf16> to vector<8x128xbf16>
    %51 = vector.extract_strided_slice %14 {offsets = [0, 1024], sizes = [8, 128], strides = [1, 1]} : vector<8x1152xbf16> to vector<8x128xbf16>
    "tpu.trace_start"() <{level = 10 : i32, message = "qd,kd->qk"}> : () -> ()
    %cst_19 = arith.constant dense<0.000000e+00> : vector<8x8xf32>
    %52 = tpu.matmul %49, %50, %cst_19 {dimension_numbers = #tpu.dot_dimension_numbers<[1], [1], [0], [0], [0, 0, 1, 0], [], []>} : vector<8x128xbf16>, vector<8x128xbf16>, vector<8x8xf32> -> vector<8x8xf32>
    "tpu.trace_stop"() : () -> ()
    %53 = arith.addf %52, %5 : vector<8x8xf32>
    %cst_20 = arith.constant dense<0xFF800000> : vector<8xf32>
    %54 = vector.multi_reduction <maximumf>, %53, %cst_20 [1] : vector<8x8xf32> to vector<8xf32>
    %55 = vector.shape_cast %54 : vector<8xf32> to vector<8x1xf32>
    %56 = vector.broadcast %55 : vector<8x1xf32> to vector<8x8xf32>
    %57 = arith.subf %53, %56 : vector<8x8xf32>
    %58 = math.exp %57 : vector<8x8xf32>
    %cst_21 = arith.constant dense<0.000000e+00> : vector<8xf32>
    %59 = vector.multi_reduction <add>, %58, %cst_21 [1] : vector<8x8xf32> to vector<8xf32>
    %60 = vector.shape_cast %59 : vector<8xf32> to vector<8x1xf32>
    %61 = tpu.reciprocal %60 {approx = true} : vector<8x1xf32> -> vector<8x1xf32>
    %62 = vector.broadcast %61 : vector<8x1xf32> to vector<8x8xf32>
    %63 = arith.mulf %58, %62 : vector<8x8xf32>
    %64 = arith.truncf %63 : vector<8x8xf32> to vector<8x8xbf16>
    %cst_22 = arith.constant dense<0.000000e+00> : vector<8x128xf32>
    %65 = tpu.matmul %64, %51, %cst_22 {dimension_numbers = #tpu.dot_dimension_numbers<[1], [0], [0], [1], [0, 0, 1, 1], [], []>} : vector<8x8xbf16>, vector<8x128xbf16>, vector<8x128xf32> -> vector<8x128xf32>
    %66 = tpu.concatenate %31, %48, %65 in 1 : vector<8x128xf32>, vector<8x128xf32>, vector<8x128xf32> -> vector<8x384xf32>
    %67 = arith.truncf %66 : vector<8x384xf32> to vector<8x384xbf16>
    %c0_23 = arith.constant 0 : index
    %c0_24 = arith.constant 0 : index
    %c0_25 = arith.constant 0 : index
    %68 = vector.load %arg6[%c0_23, %c0_24, %c0_25] : memref<1x384x384xbf16, #tpu.memory_space<vmem>>, vector<1x384x384xbf16>
    %69 = vector.shape_cast %68 : vector<1x384x384xbf16> to vector<384x384xbf16>
    %cst_26 = arith.constant dense<0.000000e+00> : vector<8x384xf32>
    %70 = tpu.matmul %67, %69, %cst_26 {dimension_numbers = #tpu.dot_dimension_numbers<[1], [0], [0], [1], [0, 0, 1, 1], [], []>} : vector<8x384xbf16>, vector<384x384xbf16>, vector<8x384xf32> -> vector<8x384xf32>
    %c0_27 = arith.constant 0 : index
    %c0_28 = arith.constant 0 : index
    %c0_29 = arith.constant 0 : index
    %71 = vector.load %arg7[%c0_27, %c0_28, %c0_29] : memref<1x1x384xf32, #tpu.memory_space<vmem>>, vector<1x1x384xf32>
    %72 = vector.shape_cast %71 : vector<1x1x384xf32> to vector<1x384xf32>
    %73 = vector.broadcast %72 : vector<1x384xf32> to vector<8x384xf32>
    %74 = arith.addf %70, %73 : vector<8x384xf32>
    %75 = arith.addf %4, %74 : vector<8x384xf32>
    %c0_30 = arith.constant 0 : index
    %c0_31 = arith.constant 0 : index
    %c0_32 = arith.constant 0 : index
    %76 = vector.load %arg8[%c0_30, %c0_31, %c0_32] : memref<1x1x384xf32, #tpu.memory_space<vmem>>, vector<1x1x384xf32>
    %77 = vector.shape_cast %76 : vector<1x1x384xf32> to vector<1x384xf32>
    %c0_33 = arith.constant 0 : index
    %c0_34 = arith.constant 0 : index
    %c0_35 = arith.constant 0 : index
    %78 = vector.load %arg9[%c0_33, %c0_34, %c0_35] : memref<1x1x384xf32, #tpu.memory_space<vmem>>, vector<1x1x384xf32>
    %79 = vector.shape_cast %78 : vector<1x1x384xf32> to vector<1x384xf32>
    %cst_36 = arith.constant dense<0.000000e+00> : vector<8xf32>
    %80 = vector.multi_reduction <add>, %75, %cst_36 [1] : vector<8x384xf32> to vector<8xf32>
    %81 = vector.shape_cast %80 : vector<8xf32> to vector<8x1xf32>
    %cst_37 = arith.constant 3.840000e+02 : f32
    %82 = vector.broadcast %cst_37 : f32 to vector<8x1xf32>
    %83 = arith.divf %81, %82 : vector<8x1xf32>
    %84 = vector.broadcast %83 : vector<8x1xf32> to vector<8x384xf32>
    %85 = arith.subf %75, %84 : vector<8x384xf32>
    %86 = arith.mulf %85, %85 : vector<8x384xf32>
    %cst_38 = arith.constant dense<0.000000e+00> : vector<8xf32>
    %87 = vector.multi_reduction <add>, %86, %cst_38 [1] : vector<8x384xf32> to vector<8xf32>
    %88 = vector.shape_cast %87 : vector<8xf32> to vector<8x1xf32>
    %cst_39 = arith.constant 3.840000e+02 : f32
    %89 = vector.broadcast %cst_39 : f32 to vector<8x1xf32>
    %90 = arith.divf %88, %89 : vector<8x1xf32>
    %91 = vector.broadcast %83 : vector<8x1xf32> to vector<8x384xf32>
    %92 = arith.subf %75, %91 : vector<8x384xf32>
    %cst_40 = arith.constant 9.99999974E-6 : f32
    %93 = vector.broadcast %cst_40 : f32 to vector<8x1xf32>
    %94 = arith.addf %90, %93 : vector<8x1xf32>
    %95 = math.rsqrt %94 : vector<8x1xf32>
    %96 = vector.broadcast %95 : vector<8x1xf32> to vector<8x384xf32>
    %97 = arith.mulf %92, %96 : vector<8x384xf32>
    %98 = vector.broadcast %77 : vector<1x384xf32> to vector<8x384xf32>
    %99 = arith.mulf %97, %98 : vector<8x384xf32>
    %100 = vector.broadcast %79 : vector<1x384xf32> to vector<8x384xf32>
    %101 = arith.addf %99, %100 : vector<8x384xf32>
    %102 = arith.truncf %101 : vector<8x384xf32> to vector<8x384xbf16>
    %c0_41 = arith.constant 0 : index
    %c0_42 = arith.constant 0 : index
    %c0_43 = arith.constant 0 : index
    %103 = vector.load %arg12[%c0_41, %c0_42, %c0_43] : memref<1x384x128xbf16, #tpu.memory_space<vmem>>, vector<1x384x128xbf16>
    %104 = vector.shape_cast %103 : vector<1x384x128xbf16> to vector<384x128xbf16>
    %cst_44 = arith.constant dense<0.000000e+00> : vector<8x128xf32>
    %105 = tpu.matmul %102, %104, %cst_44 {dimension_numbers = #tpu.dot_dimension_numbers<[1], [0], [0], [1], [0, 0, 1, 1], [], []>} : vector<8x384xbf16>, vector<384x128xbf16>, vector<8x128xf32> -> vector<8x128xf32>
    %c0_45 = arith.constant 0 : index
    %c0_46 = arith.constant 0 : index
    %c0_47 = arith.constant 0 : index
    %106 = vector.load %arg13[%c0_45, %c0_46, %c0_47] : memref<1x1x128xf32, #tpu.memory_space<vmem>>, vector<1x1x128xf32>
    %107 = vector.shape_cast %106 : vector<1x1x128xf32> to vector<1x128xf32>
    %108 = vector.broadcast %107 : vector<1x128xf32> to vector<8x128xf32>
    %109 = arith.addf %105, %108 : vector<8x128xf32>
    %cst_48 = arith.constant 0.000000e+00 : f32
    %110 = vector.broadcast %cst_48 : f32 to vector<8x128xf32>
    %111 = arith.maximumf %109, %110 : vector<8x128xf32>
    %112 = arith.truncf %111 : vector<8x128xf32> to vector<8x128xbf16>
    %c0_49 = arith.constant 0 : index
    %c0_50 = arith.constant 0 : index
    %c0_51 = arith.constant 0 : index
    %113 = vector.load %arg14[%c0_49, %c0_50, %c0_51] : memref<1x128x384xbf16, #tpu.memory_space<vmem>>, vector<1x128x384xbf16>
    %114 = vector.shape_cast %113 : vector<1x128x384xbf16> to vector<128x384xbf16>
    %cst_52 = arith.constant dense<0.000000e+00> : vector<8x384xf32>
    %115 = tpu.matmul %112, %114, %cst_52 {dimension_numbers = #tpu.dot_dimension_numbers<[1], [0], [0], [1], [0, 0, 1, 1], [], []>} : vector<8x128xbf16>, vector<128x384xbf16>, vector<8x384xf32> -> vector<8x384xf32>
    %c0_53 = arith.constant 0 : index
    %c0_54 = arith.constant 0 : index
    %c0_55 = arith.constant 0 : index
    %116 = vector.load %arg15[%c0_53, %c0_54, %c0_55] : memref<1x1x384xf32, #tpu.memory_space<vmem>>, vector<1x1x384xf32>
    %117 = vector.shape_cast %116 : vector<1x1x384xf32> to vector<1x384xf32>
    %118 = vector.broadcast %117 : vector<1x384xf32> to vector<8x384xf32>
    %119 = arith.addf %115, %118 : vector<8x384xf32>
    %120 = arith.addf %101, %119 : vector<8x384xf32>
    %c0_56 = arith.constant 0 : index
    %c0_57 = arith.constant 0 : index
    %c0_58 = arith.constant 0 : index
    %121 = vector.load %arg10[%c0_56, %c0_57, %c0_58] : memref<1x1x384xf32, #tpu.memory_space<vmem>>, vector<1x1x384xf32>
    %122 = vector.shape_cast %121 : vector<1x1x384xf32> to vector<1x384xf32>
    %c0_59 = arith.constant 0 : index
    %c0_60 = arith.constant 0 : index
    %c0_61 = arith.constant 0 : index
    %123 = vector.load %arg11[%c0_59, %c0_60, %c0_61] : memref<1x1x384xf32, #tpu.memory_space<vmem>>, vector<1x1x384xf32>
    %124 = vector.shape_cast %123 : vector<1x1x384xf32> to vector<1x384xf32>
    %cst_62 = arith.constant dense<0.000000e+00> : vector<8xf32>
    %125 = vector.multi_reduction <add>, %120, %cst_62 [1] : vector<8x384xf32> to vector<8xf32>
    %126 = vector.shape_cast %125 : vector<8xf32> to vector<8x1xf32>
    %cst_63 = arith.constant 3.840000e+02 : f32
    %127 = vector.broadcast %cst_63 : f32 to vector<8x1xf32>
    %128 = arith.divf %126, %127 : vector<8x1xf32>
    %129 = vector.broadcast %128 : vector<8x1xf32> to vector<8x384xf32>
    %130 = arith.subf %120, %129 : vector<8x384xf32>
    %131 = arith.mulf %130, %130 : vector<8x384xf32>
    %cst_64 = arith.constant dense<0.000000e+00> : vector<8xf32>
    %132 = vector.multi_reduction <add>, %131, %cst_64 [1] : vector<8x384xf32> to vector<8xf32>
    %133 = vector.shape_cast %132 : vector<8xf32> to vector<8x1xf32>
    %cst_65 = arith.constant 3.840000e+02 : f32
    %134 = vector.broadcast %cst_65 : f32 to vector<8x1xf32>
    %135 = arith.divf %133, %134 : vector<8x1xf32>
    %136 = vector.broadcast %128 : vector<8x1xf32> to vector<8x384xf32>
    %137 = arith.subf %120, %136 : vector<8x384xf32>
    %cst_66 = arith.constant 9.99999974E-6 : f32
    %138 = vector.broadcast %cst_66 : f32 to vector<8x1xf32>
    %139 = arith.addf %135, %138 : vector<8x1xf32>
    %140 = math.rsqrt %139 : vector<8x1xf32>
    %141 = vector.broadcast %140 : vector<8x1xf32> to vector<8x384xf32>
    %142 = arith.mulf %137, %141 : vector<8x384xf32>
    %143 = vector.broadcast %122 : vector<1x384xf32> to vector<8x384xf32>
    %144 = arith.mulf %142, %143 : vector<8x384xf32>
    %145 = vector.broadcast %124 : vector<1x384xf32> to vector<8x384xf32>
    %146 = arith.addf %144, %145 : vector<8x384xf32>
    %147 = arith.addf %146, %4 : vector<8x384xf32>
    %c0_67 = arith.constant 0 : index
    %c0_68 = arith.constant 0 : index
    %c0_69 = arith.constant 0 : index
    %148 = vector.load %arg16[%c0_67, %c0_68, %c0_69] : memref<1x8x384xf32, #tpu.memory_space<vmem>>, vector<1x8x384xf32>
    %149 = vector.shape_cast %148 : vector<1x8x384xf32> to vector<8x384xf32>
    %150 = vector.shape_cast %147 : vector<8x384xf32> to vector<1x8x384xf32>
    tpu.vector_store %arg16[%c0_67, %c0_68, %c0_69], %150 {strides = array<i32>} : memref<1x8x384xf32, #tpu.memory_space<vmem>>, vector<1x8x384xf32>,
    return
  }
  func.func @transform_0(%arg0: i32, %arg1: i32) -> (i32, i32, i32) {
    %c0_i32 = arith.constant 0 : i32
    %c0_i32_0 = arith.constant 0 : i32
    %c0_i32_1 = arith.constant 0 : i32
    return %arg0, %c0_i32, %c0_i32_0 : i32, i32, i32
  }
  func.func @transform_1(%arg0: i32, %arg1: i32) -> (i32, i32) {
    %c0_i32 = arith.constant 0 : i32
    %c0_i32_0 = arith.constant 0 : i32
    %c0_i32_1 = arith.constant 0 : i32
    return %c0_i32, %c0_i32_0 : i32, i32
  }
  func.func @transform_2(%arg0: i32, %arg1: i32) -> (i32, i32, i32) {
    %c0_i32 = arith.constant 0 : i32
    %c0_i32_0 = arith.constant 0 : i32
    %c0_i32_1 = arith.constant 0 : i32
    return %arg1, %c0_i32, %c0_i32_0 : i32, i32, i32
  }
  func.func @transform_3(%arg0: i32, %arg1: i32) -> (i32, i32, i32) {
    %c0_i32 = arith.constant 0 : i32
    %c0_i32_0 = arith.constant 0 : i32
    %c0_i32_1 = arith.constant 0 : i32
    return %arg1, %c0_i32, %c0_i32_0 : i32, i32, i32
  }
  func.func @transform_4(%arg0: i32, %arg1: i32) -> (i32, i32, i32) {
    %c0_i32 = arith.constant 0 : i32
    %c0_i32_0 = arith.constant 0 : i32
    %c0_i32_1 = arith.constant 0 : i32
    return %arg1, %c0_i32, %c0_i32_0 : i32, i32, i32
  }
  func.func @transform_5(%arg0: i32, %arg1: i32) -> (i32, i32, i32) {
    %c0_i32 = arith.constant 0 : i32
    %c0_i32_0 = arith.constant 0 : i32
    %c0_i32_1 = arith.constant 0 : i32
    return %arg1, %c0_i32, %c0_i32_0 : i32, i32, i32
  }
  func.func @transform_6(%arg0: i32, %arg1: i32) -> (i32, i32, i32) {
    %c0_i32 = arith.constant 0 : i32
    %c0_i32_0 = arith.constant 0 : i32
    %c0_i32_1 = arith.constant 0 : i32
    return %arg1, %c0_i32, %c0_i32_0 : i32, i32, i32
  }
  func.func @transform_7(%arg0: i32, %arg1: i32) -> (i32, i32, i32) {
    %c0_i32 = arith.constant 0 : i32
    %c0_i32_0 = arith.constant 0 : i32
    %c0_i32_1 = arith.constant 0 : i32
    return %arg1, %c0_i32, %c0_i32_0 : i32, i32, i32
  }
  func.func @transform_8(%arg0: i32, %arg1: i32) -> (i32, i32, i32) {
    %c0_i32 = arith.constant 0 : i32
    %c0_i32_0 = arith.constant 0 : i32
    %c0_i32_1 = arith.constant 0 : i32
    return %arg1, %c0_i32, %c0_i32_0 : i32, i32, i32
  }
  func.func @transform_9(%arg0: i32, %arg1: i32) -> (i32, i32, i32) {
    %c0_i32 = arith.constant 0 : i32
    %c0_i32_0 = arith.constant 0 : i32
    %c0_i32_1 = arith.constant 0 : i32
    return %arg1, %c0_i32, %c0_i32_0 : i32, i32, i32
  }
  func.func @transform_10(%arg0: i32, %arg1: i32) -> (i32, i32, i32) {
    %c0_i32 = arith.constant 0 : i32
    %c0_i32_0 = arith.constant 0 : i32
    %c0_i32_1 = arith.constant 0 : i32
    return %arg1, %c0_i32, %c0_i32_0 : i32, i32, i32
  }
  func.func @transform_11(%arg0: i32, %arg1: i32) -> (i32, i32, i32) {
    %c0_i32 = arith.constant 0 : i32
    %c0_i32_0 = arith.constant 0 : i32
    %c0_i32_1 = arith.constant 0 : i32
    return %arg1, %c0_i32, %c0_i32_0 : i32, i32, i32
  }
  func.func @transform_12(%arg0: i32, %arg1: i32) -> (i32, i32, i32) {
    %c0_i32 = arith.constant 0 : i32
    %c0_i32_0 = arith.constant 0 : i32
    %c0_i32_1 = arith.constant 0 : i32
    return %arg1, %c0_i32, %c0_i32_0 : i32, i32, i32
  }
  func.func @transform_13(%arg0: i32, %arg1: i32) -> (i32, i32, i32) {
    %c0_i32 = arith.constant 0 : i32
    %c0_i32_0 = arith.constant 0 : i32
    %c0_i32_1 = arith.constant 0 : i32
    return %arg1, %c0_i32, %c0_i32_0 : i32, i32, i32
  }
  func.func @transform_14(%arg0: i32, %arg1: i32) -> (i32, i32, i32) {
    %c0_i32 = arith.constant 0 : i32
    %c0_i32_0 = arith.constant 0 : i32
    %c0_i32_1 = arith.constant 0 : i32
    return %arg0, %c0_i32, %c0_i32_0 : i32, i32, i32
  }
}

</mosaic_0001>

<llo_original>
// kernel: transformer_model_forward.1
$region0: #{transformer_model_forward.1}
  #allocation0 [shape = 'u32[]', space=smem, size = 0x4, offset = 0x4, fixed_abs, tag = 'smem constant byte address 0x4 - core index']
  #allocation1 [shape = 'u32[144,128]{1,0:T(1,128)}', space=vmem, size = 0x12000, scoped, tag = 'internal scratch']
  %s0 = inlined_call_operand.vmem [shape: f32[2,8,384], index: 0, kind: input, shape index: {}, may-alias: {0,14}]
  %s1 = inlined_call_operand.vmem [shape: f32[8,8], index: 1, kind: input, shape index: {}]
  %s2 = inlined_call_operand.vmem [shape: bf16[2,384,1152], index: 2, kind: input, shape index: {}]
  %s3 = inlined_call_operand.vmem [shape: f32[2,1,1152], index: 3, kind: input, shape index: {}]
  %s4 = inlined_call_operand.vmem [shape: bf16[2,384,384], index: 4, kind: input, shape index: {}]
  %s5 = inlined_call_operand.vmem [shape: f32[2,1,384], index: 5, kind: input, shape index: {}]
  %s6 = inlined_call_operand.vmem [shape: f32[2,1,384], index: 6, kind: input, shape index: {}]
  %s7 = inlined_call_operand.vmem [shape: f32[2,1,384], index: 7, kind: input, shape index: {}]
  %s8 = inlined_call_operand.vmem [shape: f32[2,1,384], index: 8, kind: input, shape index: {}]
  %s9 = inlined_call_operand.vmem [shape: f32[2,1,384], index: 9, kind: input, shape index: {}]
  %s10 = inlined_call_operand.vmem [shape: bf16[2,384,128], index: 10, kind: input, shape index: {}]
  %s11 = inlined_call_operand.vmem [shape: f32[2,1,128], index: 11, kind: input, shape index: {}]
  %s12 = inlined_call_operand.vmem [shape: bf16[2,128,384], index: 12, kind: input, shape index: {}]
  %s13 = inlined_call_operand.vmem [shape: f32[2,1,384], index: 13, kind: input, shape index: {}]
  %s14 = inlined_call_operand.vmem [shape: f32[2,8,384], index: 14, kind: output, shape index: {}, may-alias: {0,14}]
  %s15 = sld [smem:[#allocation0]]
  $region93: #{transformer_model_forward.1} parent=0
    _
  %s17 = ssub.s32 1, %s15
  %s18 = scalar_select 0, %s17, %s15
  loop: start=0, step=1, limit=6
  $region2: #{transformer_model_forward.1} parent=0 // loop_pre_header
    _
  $region3: #{transformer_model_forward.1} parent=0 // loop_header
    %s20 = sphi 0, %s24
    %p21 = scmp.ge.s32.totalorder %s20, 6
    %s27 = sphi 0, %s39
    %s28 = sphi 0, %s35
    %s29 = sphi 0, %s27
    %s30 = sphi 0, %s28
    %s31 = sphi 0, %s29
    %s32 = sphi 0, %s30
    %s42 = sphi 0, %s44
    %s45 = sphi 0, %s42
    %s46 = sphi 0, %s45
    %s62 = sphi 0, %s46
    %s66 = sphi 0, %s66
    %s68 = sphi 0, %s66
    %s69 = sphi 0, %s68
    %s83 = sphi 0, %s69
    %s89 = sphi 0, %s91
    %s92 = sphi 0, %s89
    %s93 = sphi 0, %s92
    %s109 = sphi 0, %s93
    %s115 = sphi 0, %s117
    %s118 = sphi 0, %s115
    %s119 = sphi 0, %s118
    %s135 = sphi 0, %s119
    %s141 = sphi 0, %s143
    %s144 = sphi 0, %s141
    %s145 = sphi 0, %s144
    %s161 = sphi 0, %s145
    %s167 = sphi 0, %s169
    %s170 = sphi 0, %s167
    %s171 = sphi 0, %s170
    %s187 = sphi 0, %s171
    %s193 = sphi 0, %s195
    %s196 = sphi 0, %s193
    %s197 = sphi 0, %s196
    %s213 = sphi 0, %s197
    %s219 = sphi 0, %s221
    %s222 = sphi 0, %s219
    %s223 = sphi 0, %s222
    %s239 = sphi 0, %s223
    %s245 = sphi 0, %s247
    %s248 = sphi 0, %s245
    %s249 = sphi 0, %s248
    %s265 = sphi 0, %s249
    %s271 = sphi 0, %s273
    %s274 = sphi 0, %s271
    %s275 = sphi 0, %s274
    %s291 = sphi 0, %s275
    %s297 = sphi 0, %s299
    %s300 = sphi 0, %s297
    %s301 = sphi 0, %s300
    %s317 = sphi 0, %s301
    %s323 = sphi 0, %s325
    %s326 = sphi 0, %s323
    %s327 = sphi 0, %s326
    %s343 = sphi 0, %s327
    %s349 = sphi 0, %s351
    %s352 = sphi 0, %s349
    %s353 = sphi 0, %s352
    %s369 = sphi 0, %s353
    %s375 = sphi 0, %s377
    %s378 = sphi 0, %s375
    %s379 = sphi 0, %s378
    %s395 = sphi 0, %s379
    %s401 = sphi 0, %s403
    %s404 = sphi 0, %s401
    %s405 = sphi 0, %s404
    %s421 = sphi 0, %s405
  $region4: #{transformer_model_forward.1} parent=0 // loop_header_branch
    %23 = sbr.rel (%p21) target = $region8
  $region5: #{transformer_model_forward.1} parent=0 // loop_body
    %s25 = ssub.s32 %s20, 1
    %s26 = ssub.s32 %s20, 2
    %s33 = sadd.s32 1, %s28
    %p34 = scmp.ge.s32.totalorder %s33, 2
    %s35 = scalar_select %p34, 0, %s33
    %s36 = sadd.s32 1, %s27
    %s37 = scalar_select %p34, %s36, %s27
    %p38 = scmp.ge.s32.totalorder %s37, 2
    %s39 = scalar_select %p38, 0, %s37
    %s40 = ssub.s32 %s27, %s39
    %p41 = scmp.eq.s32.totalorder %s40, 0
    %s43 = sadd.s32 %s42, 1
    %s44 = scalar_select %p41, %s42, %s43
    %p47 = pneg %p41
    %p48 = scmp.eq.s32.totalorder %s20, 3
    %p49 = por %p47, %p48
    %p50 = scmp.ne.s32.totalorder %s42, %s45
    %p51 = scmp.eq.s32.totalorder %s20, 0
    %p52 = por %p50, %p51
    %p53 = scmp.ne.s32.totalorder %s42, %s45
    %p54 = scmp.eq.s32.totalorder %s25, 3
    %p55 = por %p53, %p54
    %p56 = scmp.ne.s32.totalorder %s45, %s46
    %p57 = scmp.eq.s32.totalorder %s25, 0
    %p58 = por %p56, %p57
    %p59 = scmp.ne.s32.totalorder %s45, %s46
    %p60 = scmp.eq.s32.totalorder %s26, 3
    %p61 = por %p59, %p60
    %p63 = scmp.ne.s32.totalorder %s46, %s62
    %p64 = scmp.eq.s32.totalorder %s26, 0
    %p65 = por %p63, %p64
    %s67 = sadd.s32 %s66, 1
    %p70 = scmp.eq.s32.totalorder %s20, 3
    %p71 = scmp.ne.s32.totalorder %s66, %s68
    %p72 = scmp.eq.s32.totalorder %s20, 0
    %p73 = por %p71, %p72
    %p74 = scmp.ne.s32.totalorder %s66, %s68
    %p75 = scmp.eq.s32.totalorder %s25, 3
    %p76 = por %p74, %p75
    %p77 = scmp.ne.s32.totalorder %s68, %s69
    %p78 = scmp.eq.s32.totalorder %s25, 0
    %p79 = por %p77, %p78
    %p80 = scmp.ne.s32.totalorder %s68, %s69
    %p81 = scmp.eq.s32.totalorder %s26, 3
    %p82 = por %p80, %p81
    %p84 = scmp.ne.s32.totalorder %s69, %s83
    %p85 = scmp.eq.s32.totalorder %s26, 0
    %p86 = por %p84, %p85
    %s87 = ssub.s32 %s28, %s35
    %p88 = scmp.eq.s32.totalorder %s87, 0
    %s90 = sadd.s32 %s89, 1
    %s91 = scalar_select %p88, %s89, %s90
    %p94 = pneg %p88
    %p95 = scmp.eq.s32.totalorder %s20, 3
    %p96 = por %p94, %p95
    %p97 = scmp.ne.s32.totalorder %s89, %s92
    %p98 = scmp.eq.s32.totalorder %s20, 0
    %p99 = por %p97, %p98
    %p100 = scmp.ne.s32.totalorder %s89, %s92
    %p101 = scmp.eq.s32.totalorder %s25, 3
    %p102 = por %p100, %p101
    %p103 = scmp.ne.s32.totalorder %s92, %s93
    %p104 = scmp.eq.s32.totalorder %s25, 0
    %p105 = por %p103, %p104
    %p106 = scmp.ne.s32.totalorder %s92, %s93
    %p107 = scmp.eq.s32.totalorder %s26, 3
    %p108 = por %p106, %p107
    %p110 = scmp.ne.s32.totalorder %s93, %s109
    %p111 = scmp.eq.s32.totalorder %s26, 0
    %p112 = por %p110, %p111
    %s113 = ssub.s32 %s28, %s35
    %p114 = scmp.eq.s32.totalorder %s113, 0
    %s116 = sadd.s32 %s115, 1
    %s117 = scalar_select %p114, %s115, %s116
    %p120 = pneg %p114
    %p121 = scmp.eq.s32.totalorder %s20, 3
    %p122 = por %p120, %p121
    %p123 = scmp.ne.s32.totalorder %s115, %s118
    %p124 = scmp.eq.s32.totalorder %s20, 0
    %p125 = por %p123, %p124
    %p126 = scmp.ne.s32.totalorder %s115, %s118
    %p127 = scmp.eq.s32.totalorder %s25, 3
    %p128 = por %p126, %p127
    %p129 = scmp.ne.s32.totalorder %s118, %s119
    %p130 = scmp.eq.s32.totalorder %s25, 0
    %p131 = por %p129, %p130
    %p132 = scmp.ne.s32.totalorder %s118, %s119
    %p133 = scmp.eq.s32.totalorder %s26, 3
    %p134 = por %p132, %p133
    %p136 = scmp.ne.s32.totalorder %s119, %s135
    %p137 = scmp.eq.s32.totalorder %s26, 0
    %p138 = por %p136, %p137
    %s139 = ssub.s32 %s28, %s35
    %p140 = scmp.eq.s32.totalorder %s139, 0
    %s142 = sadd.s32 %s141, 1
    %s143 = scalar_select %p140, %s141, %s142
    %p146 = pneg %p140
    %p147 = scmp.eq.s32.totalorder %s20, 3
    %p148 = por %p146, %p147
    %p149 = scmp.ne.s32.totalorder %s141, %s144
    %p150 = scmp.eq.s32.totalorder %s20, 0
    %p151 = por %p149, %p150
    %p152 = scmp.ne.s32.totalorder %s141, %s144
    %p153 = scmp.eq.s32.totalorder %s25, 3
    %p154 = por %p152, %p153
    %p155 = scmp.ne.s32.totalorder %s144, %s145
    %p156 = scmp.eq.s32.totalorder %s25, 0
    %p157 = por %p155, %p156
    %p158 = scmp.ne.s32.totalorder %s144, %s145
    %p159 = scmp.eq.s32.totalorder %s26, 3
    %p160 = por %p158, %p159
    %p162 = scmp.ne.s32.totalorder %s145, %s161
    %p163 = scmp.eq.s32.totalorder %s26, 0
    %p164 = por %p162, %p163
    %s165 = ssub.s32 %s28, %s35
    %p166 = scmp.eq.s32.totalorder %s165, 0
    %s168 = sadd.s32 %s167, 1
    %s169 = scalar_select %p166, %s167, %s168
    %p172 = pneg %p166
    %p173 = scmp.eq.s32.totalorder %s20, 3
    %p174 = por %p172, %p173
    %p175 = scmp.ne.s32.totalorder %s167, %s170
    %p176 = scmp.eq.s32.totalorder %s20, 0
    %p177 = por %p175, %p176
    %p178 = scmp.ne.s32.totalorder %s167, %s170
    %p179 = scmp.eq.s32.totalorder %s25, 3
    %p180 = por %p178, %p179
    %p181 = scmp.ne.s32.totalorder %s170, %s171
    %p182 = scmp.eq.s32.totalorder %s25, 0
    %p183 = por %p181, %p182
    %p184 = scmp.ne.s32.totalorder %s170, %s171
    %p185 = scmp.eq.s32.totalorder %s26, 3
    %p186 = por %p184, %p185
    %p188 = scmp.ne.s32.totalorder %s171, %s187
    %p189 = scmp.eq.s32.totalorder %s26, 0
    %p190 = por %p188, %p189
    %s191 = ssub.s32 %s28, %s35
    %p192 = scmp.eq.s32.totalorder %s191, 0
    %s194 = sadd.s32 %s193, 1
    %s195 = scalar_select %p192, %s193, %s194
    %p198 = pneg %p192
    %p199 = scmp.eq.s32.totalorder %s20, 3
    %p200 = por %p198, %p199
    %p201 = scmp.ne.s32.totalorder %s193, %s196
    %p202 = scmp.eq.s32.totalorder %s20, 0
    %p203 = por %p201, %p202
    %p204 = scmp.ne.s32.totalorder %s193, %s196
    %p205 = scmp.eq.s32.totalorder %s25, 3
    %p206 = por %p204, %p205
    %p207 = scmp.ne.s32.totalorder %s196, %s197
    %p208 = scmp.eq.s32.totalorder %s25, 0
    %p209 = por %p207, %p208
    %p210 = scmp.ne.s32.totalorder %s196, %s197
    %p211 = scmp.eq.s32.totalorder %s26, 3
    %p212 = por %p210, %p211
    %p214 = scmp.ne.s32.totalorder %s197, %s213
    %p215 = scmp.eq.s32.totalorder %s26, 0
    %p216 = por %p214, %p215
    %s217 = ssub.s32 %s28, %s35
    %p218 = scmp.eq.s32.totalorder %s217, 0
    %s220 = sadd.s32 %s219, 1
    %s221 = scalar_select %p218, %s219, %s220
    %p224 = pneg %p218
    %p225 = scmp.eq.s32.totalorder %s20, 3
    %p226 = por %p224, %p225
    %p227 = scmp.ne.s32.totalorder %s219, %s222
    %p228 = scmp.eq.s32.totalorder %s20, 0
    %p229 = por %p227, %p228
    %p230 = scmp.ne.s32.totalorder %s219, %s222
    %p231 = scmp.eq.s32.totalorder %s25, 3
    %p232 = por %p230, %p231
    %p233 = scmp.ne.s32.totalorder %s222, %s223
    %p234 = scmp.eq.s32.totalorder %s25, 0
    %p235 = por %p233, %p234
    %p236 = scmp.ne.s32.totalorder %s222, %s223
    %p237 = scmp.eq.s32.totalorder %s26, 3
    %p238 = por %p236, %p237
    %p240 = scmp.ne.s32.totalorder %s223, %s239
    %p241 = scmp.eq.s32.totalorder %s26, 0
    %p242 = por %p240, %p241
    %s243 = ssub.s32 %s28, %s35
    %p244 = scmp.eq.s32.totalorder %s243, 0
    %s246 = sadd.s32 %s245, 1
    %s247 = scalar_select %p244, %s245, %s246
    %p250 = pneg %p244
    %p251 = scmp.eq.s32.totalorder %s20, 3
    %p252 = por %p250, %p251
    %p253 = scmp.ne.s32.totalorder %s245, %s248
    %p254 = scmp.eq.s32.totalorder %s20, 0
    %p255 = por %p253, %p254
    %p256 = scmp.ne.s32.totalorder %s245, %s248
    %p257 = scmp.eq.s32.totalorder %s25, 3
    %p258 = por %p256, %p257
    %p259 = scmp.ne.s32.totalorder %s248, %s249
    %p260 = scmp.eq.s32.totalorder %s25, 0
    %p261 = por %p259, %p260
    %p262 = scmp.ne.s32.totalorder %s248, %s249
    %p263 = scmp.eq.s32.totalorder %s26, 3
    %p264 = por %p262, %p263
    %p266 = scmp.ne.s32.totalorder %s249, %s265
    %p267 = scmp.eq.s32.totalorder %s26, 0
    %p268 = por %p266, %p267
    %s269 = ssub.s32 %s28, %s35
    %p270 = scmp.eq.s32.totalorder %s269, 0
    %s272 = sadd.s32 %s271, 1
    %s273 = scalar_select %p270, %s271, %s272
    %p276 = pneg %p270
    %p277 = scmp.eq.s32.totalorder %s20, 3
    %p278 = por %p276, %p277
    %p279 = scmp.ne.s32.totalorder %s271, %s274
    %p280 = scmp.eq.s32.totalorder %s20, 0
    %p281 = por %p279, %p280
    %p282 = scmp.ne.s32.totalorder %s271, %s274
    %p283 = scmp.eq.s32.totalorder %s25, 3
    %p284 = por %p282, %p283
    %p285 = scmp.ne.s32.totalorder %s274, %s275
    %p286 = scmp.eq.s32.totalorder %s25, 0
    %p287 = por %p285, %p286
    %p288 = scmp.ne.s32.totalorder %s274, %s275
    %p289 = scmp.eq.s32.totalorder %s26, 3
    %p290 = por %p288, %p289
    %p292 = scmp.ne.s32.totalorder %s275, %s291
    %p293 = scmp.eq.s32.totalorder %s26, 0
    %p294 = por %p292, %p293
    %s295 = ssub.s32 %s28, %s35
    %p296 = scmp.eq.s32.totalorder %s295, 0
    %s298 = sadd.s32 %s297, 1
    %s299 = scalar_select %p296, %s297, %s298
    %p302 = pneg %p296
    %p303 = scmp.eq.s32.totalorder %s20, 3
    %p304 = por %p302, %p303
    %p305 = scmp.ne.s32.totalorder %s297, %s300
    %p306 = scmp.eq.s32.totalorder %s20, 0
    %p307 = por %p305, %p306
    %p308 = scmp.ne.s32.totalorder %s297, %s300
    %p309 = scmp.eq.s32.totalorder %s25, 3
    %p310 = por %p308, %p309
    %p311 = scmp.ne.s32.totalorder %s300, %s301
    %p312 = scmp.eq.s32.totalorder %s25, 0
    %p313 = por %p311, %p312
    %p314 = scmp.ne.s32.totalorder %s300, %s301
    %p315 = scmp.eq.s32.totalorder %s26, 3
    %p316 = por %p314, %p315
    %p318 = scmp.ne.s32.totalorder %s301, %s317
    %p319 = scmp.eq.s32.totalorder %s26, 0
    %p320 = por %p318, %p319
    %s321 = ssub.s32 %s28, %s35
    %p322 = scmp.eq.s32.totalorder %s321, 0
    %s324 = sadd.s32 %s323, 1
    %s325 = scalar_select %p322, %s323, %s324
    %p328 = pneg %p322
    %p329 = scmp.eq.s32.totalorder %s20, 3
    %p330 = por %p328, %p329
    %p331 = scmp.ne.s32.totalorder %s323, %s326
    %p332 = scmp.eq.s32.totalorder %s20, 0
    %p333 = por %p331, %p332
    %p334 = scmp.ne.s32.totalorder %s323, %s326
    %p335 = scmp.eq.s32.totalorder %s25, 3
    %p336 = por %p334, %p335
    %p337 = scmp.ne.s32.totalorder %s326, %s327
    %p338 = scmp.eq.s32.totalorder %s25, 0
    %p339 = por %p337, %p338
    %p340 = scmp.ne.s32.totalorder %s326, %s327
    %p341 = scmp.eq.s32.totalorder %s26, 3
    %p342 = por %p340, %p341
    %p344 = scmp.ne.s32.totalorder %s327, %s343
    %p345 = scmp.eq.s32.totalorder %s26, 0
    %p346 = por %p344, %p345
    %s347 = ssub.s32 %s28, %s35
    %p348 = scmp.eq.s32.totalorder %s347, 0
    %s350 = sadd.s32 %s349, 1
    %s351 = scalar_select %p348, %s349, %s350
    %p354 = pneg %p348
    %p355 = scmp.eq.s32.totalorder %s20, 3
    %p356 = por %p354, %p355
    %p357 = scmp.ne.s32.totalorder %s349, %s352
    %p358 = scmp.eq.s32.totalorder %s20, 0
    %p359 = por %p357, %p358
    %p360 = scmp.ne.s32.totalorder %s349, %s352
    %p361 = scmp.eq.s32.totalorder %s25, 3
    %p362 = por %p360, %p361
    %p363 = scmp.ne.s32.totalorder %s352, %s353
    %p364 = scmp.eq.s32.totalorder %s25, 0
    %p365 = por %p363, %p364
    %p366 = scmp.ne.s32.totalorder %s352, %s353
    %p367 = scmp.eq.s32.totalorder %s26, 3
    %p368 = por %p366, %p367
    %p370 = scmp.ne.s32.totalorder %s353, %s369
    %p371 = scmp.eq.s32.totalorder %s26, 0
    %p372 = por %p370, %p371
    %s373 = ssub.s32 %s28, %s35
    %p374 = scmp.eq.s32.totalorder %s373, 0
    %s376 = sadd.s32 %s375, 1
    %s377 = scalar_select %p374, %s375, %s376
    %p380 = pneg %p374
    %p381 = scmp.eq.s32.totalorder %s20, 3
    %p382 = por %p380, %p381
    %p383 = scmp.ne.s32.totalorder %s375, %s378
    %p384 = scmp.eq.s32.totalorder %s20, 0
    %p385 = por %p383, %p384
    %p386 = scmp.ne.s32.totalorder %s375, %s378
    %p387 = scmp.eq.s32.totalorder %s25, 3
    %p388 = por %p386, %p387
    %p389 = scmp.ne.s32.totalorder %s378, %s379
    %p390 = scmp.eq.s32.totalorder %s25, 0
    %p391 = por %p389, %p390
    %p392 = scmp.ne.s32.totalorder %s378, %s379
    %p393 = scmp.eq.s32.totalorder %s26, 3
    %p394 = por %p392, %p393
    %p396 = scmp.ne.s32.totalorder %s379, %s395
    %p397 = scmp.eq.s32.totalorder %s26, 0
    %p398 = por %p396, %p397
    %s399 = ssub.s32 %s27, %s39
    %p400 = scmp.eq.s32.totalorder %s399, 0
    %s402 = sadd.s32 %s401, 1
    %s403 = scalar_select %p400, %s401, %s402
    %p406 = pneg %p400
    %p407 = scmp.eq.s32.totalorder %s20, 3
    %p408 = por %p406, %p407
    %p409 = scmp.ne.s32.totalorder %s401, %s404
    %p410 = scmp.eq.s32.totalorder %s20, 0
    %p411 = por %p409, %p410
    %p412 = scmp.ne.s32.totalorder %s401, %s404
    %p413 = scmp.eq.s32.totalorder %s25, 3
    %p414 = por %p412, %p413
    %p415 = scmp.ne.s32.totalorder %s404, %s405
    %p416 = scmp.eq.s32.totalorder %s25, 0
    %p417 = por %p415, %p416
    %p418 = scmp.ne.s32.totalorder %s404, %s405
    %p419 = scmp.eq.s32.totalorder %s26, 3
    %p420 = por %p418, %p419
    %p422 = scmp.ne.s32.totalorder %s405, %s421
    %p423 = scmp.eq.s32.totalorder %s26, 0
    %p424 = por %p422, %p423
    %p425 = scmp.le.s32.totalorder 1, %s20
    %p426 = scmp.lt.s32.totalorder %s20, 5
    %p427 = pnand %p425, %p426
    %p428 = pneg %p427
    // Predicated region
    $region9: #{transformer_model_forward.1} parent=5 // pred_check
      _
    $region10: #{transformer_model_forward.1} parent=5 // pred_check_branch
      %430 = sbr.rel (%p427) target = $region12
    $region11: #{transformer_model_forward.1} parent=5 // pred_region
      %s431 = ssub.s32 %s20, 1
      // Predicated region
      $region13: #{transformer_model_forward.1} parent=11 // pred_check
        %p432 = pneg %p79
      $region14: #{transformer_model_forward.1} parent=11 // pred_check_branch
        %434 = sbr.rel (%p432) target = $region16
      $region15: #{transformer_model_forward.1} parent=11 // pred_region
        _
      $region16: #{transformer_model_forward.1} parent=11 // pred_fallthru
        _
    $region12: #{transformer_model_forward.1} parent=5 // pred_fallthru
      _
    %p435 = scmp.lt.s32.totalorder %s20, 4
    // Predicated region
    $region17: #{transformer_model_forward.1} parent=5 // pred_check
      %p436 = pneg %p435
    $region18: #{transformer_model_forward.1} parent=5 // pred_check_branch
      %438 = sbr.rel (%p436) target = $region20
    $region19: #{transformer_model_forward.1} parent=5 // pred_region
      // Predicated region
      $region21: #{transformer_model_forward.1} parent=19 // pred_check
        %p439 = pneg %p52
      $region22: #{transformer_model_forward.1} parent=19 // pred_check_branch
        %441 = sbr.rel (%p439) target = $region24
      $region23: #{transformer_model_forward.1} parent=19 // pred_region
        %p442 = scmp.lt.s32.totalorder %s27, 1
        %s443 = scalar_select %p442, %s27, 1
        %s444 = smul.addr %s443, 3
        %s445 = smul.addr %s444, 8
        %s446 = scalar_lea.vmem %s0, %s445
      $region24: #{transformer_model_forward.1} parent=19 // pred_fallthru
        _
      // Predicated region
      $region25: #{transformer_model_forward.1} parent=19 // pred_check
        %p447 = pneg %p99
      $region26: #{transformer_model_forward.1} parent=19 // pred_check_branch
        %449 = sbr.rel (%p447) target = $region28
      $region27: #{transformer_model_forward.1} parent=19 // pred_region
        %p450 = scmp.lt.s32.totalorder %s28, 1
        %s451 = scalar_select %p450, %s28, 1
        %s452 = smul.addr %s451, 432
        %s453 = smul.addr %s452, 4
        %s454 = scalar_lea.vmem %s2, %s453
      $region28: #{transformer_model_forward.1} parent=19 // pred_fallthru
        _
      // Predicated region
      $region29: #{transformer_model_forward.1} parent=19 // pred_check
        %p455 = pneg %p125
      $region30: #{transformer_model_forward.1} parent=19 // pred_check_branch
        %457 = sbr.rel (%p455) target = $region32
      $region31: #{transformer_model_forward.1} parent=19 // pred_region
        %p458 = scmp.lt.s32.totalorder %s28, 1
        %s459 = scalar_select %p458, %s28, 1
        %s460 = smul.addr %s459, 9
        %s461 = scalar_lea.vmem %s3, %s460
      $region32: #{transformer_model_forward.1} parent=19 // pred_fallthru
        _
      // Predicated region
      $region33: #{transformer_model_forward.1} parent=19 // pred_check
        %p462 = pneg %p151
      $region34: #{transformer_model_forward.1} parent=19 // pred_check_branch
        %464 = sbr.rel (%p462) target = $region36
      $region35: #{transformer_model_forward.1} parent=19 // pred_region
        %p465 = scmp.lt.s32.totalorder %s28, 1
        %s466 = scalar_select %p465, %s28, 1
        %s467 = smul.addr %s466, 144
        %s468 = smul.addr %s467, 4
        %s469 = scalar_lea.vmem %s4, %s468
      $region36: #{transformer_model_forward.1} parent=19 // pred_fallthru
        _
      // Predicated region
      $region37: #{transformer_model_forward.1} parent=19 // pred_check
        %p470 = pneg %p177
      $region38: #{transformer_model_forward.1} parent=19 // pred_check_branch
        %472 = sbr.rel (%p470) target = $region40
      $region39: #{transformer_model_forward.1} parent=19 // pred_region
        %p473 = scmp.lt.s32.totalorder %s28, 1
        %s474 = scalar_select %p473, %s28, 1
        %s475 = smul.addr %s474, 3
        %s476 = scalar_lea.vmem %s5, %s475
      $region40: #{transformer_model_forward.1} parent=19 // pred_fallthru
        _
      // Predicated region
      $region41: #{transformer_model_forward.1} parent=19 // pred_check
        %p477 = pneg %p203
      $region42: #{transformer_model_forward.1} parent=19 // pred_check_branch
        %479 = sbr.rel (%p477) target = $region44
      $region43: #{transformer_model_forward.1} parent=19 // pred_region
        %p480 = scmp.lt.s32.totalorder %s28, 1
        %s481 = scalar_select %p480, %s28, 1
        %s482 = smul.addr %s481, 3
        %s483 = scalar_lea.vmem %s6, %s482
      $region44: #{transformer_model_forward.1} parent=19 // pred_fallthru
        _
      // Predicated region
      $region45: #{transformer_model_forward.1} parent=19 // pred_check
        %p484 = pneg %p229
      $region46: #{transformer_model_forward.1} parent=19 // pred_check_branch
        %486 = sbr.rel (%p484) target = $region48
      $region47: #{transformer_model_forward.1} parent=19 // pred_region
        %p487 = scmp.lt.s32.totalorder %s28, 1
        %s488 = scalar_select %p487, %s28, 1
        %s489 = smul.addr %s488, 3
        %s490 = scalar_lea.vmem %s7, %s489
      $region48: #{transformer_model_forward.1} parent=19 // pred_fallthru
        _
      // Predicated region
      $region49: #{transformer_model_forward.1} parent=19 // pred_check
        %p491 = pneg %p255
      $region50: #{transformer_model_forward.1} parent=19 // pred_check_branch
        %493 = sbr.rel (%p491) target = $region52
      $region51: #{transformer_model_forward.1} parent=19 // pred_region
        %p494 = scmp.lt.s32.totalorder %s28, 1
        %s495 = scalar_select %p494, %s28, 1
        %s496 = smul.addr %s495, 3
        %s497 = scalar_lea.vmem %s8, %s496
      $region52: #{transformer_model_forward.1} parent=19 // pred_fallthru
        _
      // Predicated region
      $region53: #{transformer_model_forward.1} parent=19 // pred_check
        %p498 = pneg %p281
      $region54: #{transformer_model_forward.1} parent=19 // pred_check_branch
        %500 = sbr.rel (%p498) target = $region56
      $region55: #{transformer_model_forward.1} parent=19 // pred_region
        %p501 = scmp.lt.s32.totalorder %s28, 1
        %s502 = scalar_select %p501, %s28, 1
        %s503 = smul.addr %s502, 3
        %s504 = scalar_lea.vmem %s9, %s503
      $region56: #{transformer_model_forward.1} parent=19 // pred_fallthru
        _
      // Predicated region
      $region57: #{transformer_model_forward.1} parent=19 // pred_check
        %p505 = pneg %p307
      $region58: #{transformer_model_forward.1} parent=19 // pred_check_branch
        %507 = sbr.rel (%p505) target = $region60
      $region59: #{transformer_model_forward.1} parent=19 // pred_region
        %p508 = scmp.lt.s32.totalorder %s28, 1
        %s509 = scalar_select %p508, %s28, 1
        %s510 = smul.addr %s509, 48
        %s511 = smul.addr %s510, 4
        %s512 = scalar_lea.vmem %s10, %s511
      $region60: #{transformer_model_forward.1} parent=19 // pred_fallthru
        _
      // Predicated region
      $region61: #{transformer_model_forward.1} parent=19 // pred_check
        %p513 = pneg %p333
      $region62: #{transformer_model_forward.1} parent=19 // pred_check_branch
        %515 = sbr.rel (%p513) target = $region64
      $region63: #{transformer_model_forward.1} parent=19 // pred_region
        %p516 = scmp.lt.s32.totalorder %s28, 1
        %s517 = scalar_select %p516, %s28, 1
        %s518 = scalar_lea.vmem %s11, %s517
      $region64: #{transformer_model_forward.1} parent=19 // pred_fallthru
        _
      // Predicated region
      $region65: #{transformer_model_forward.1} parent=19 // pred_check
        %p519 = pneg %p359
      $region66: #{transformer_model_forward.1} parent=19 // pred_check_branch
        %521 = sbr.rel (%p519) target = $region68
      $region67: #{transformer_model_forward.1} parent=19 // pred_region
        %p522 = scmp.lt.s32.totalorder %s28, 1
        %s523 = scalar_select %p522, %s28, 1
        %s524 = smul.addr %s523, 48
        %s525 = smul.addr %s524, 4
        %s526 = scalar_lea.vmem %s12, %s525
      $region68: #{transformer_model_forward.1} parent=19 // pred_fallthru
        _
      // Predicated region
      $region69: #{transformer_model_forward.1} parent=19 // pred_check
        %p527 = pneg %p385
      $region70: #{transformer_model_forward.1} parent=19 // pred_check_branch
        %529 = sbr.rel (%p527) target = $region72
      $region71: #{transformer_model_forward.1} parent=19 // pred_region
        %p530 = scmp.lt.s32.totalorder %s28, 1
        %s531 = scalar_select %p530, %s28, 1
        %s532 = smul.addr %s531, 3
        %s533 = scalar_lea.vmem %s13, %s532
      $region72: #{transformer_model_forward.1} parent=19 // pred_fallthru
        _
    $region20: #{transformer_model_forward.1} parent=5 // pred_fallthru
      _
    %p534 = scmp.le.s32.totalorder 1, %s20
    %p535 = scmp.lt.s32.totalorder %s20, 5
    %p536 = pnand %p534, %p535
    %p537 = pneg %p536
    // Predicated region
    $region73: #{transformer_model_forward.1} parent=5 // pred_check
      _
    $region74: #{transformer_model_forward.1} parent=5 // pred_check_branch
      %539 = sbr.rel (%p536) target = $region76
    $region75: #{transformer_model_forward.1} parent=5 // pred_region
      %s540 = ssub.s32 %s20, 1
      %p541 = scmp.lt.s32.totalorder %s29, 1
      %s542 = scalar_select %p541, %s29, 1
      %s543 = smul.addr %s542, 3
      %s544 = smul.addr %s543, 8
      %s545 = scalar_lea.vmem %s0, %s544
      %p546 = pneg %p58
      %p547 = pneg %p55
      %p548 = pneg %p79
      %p549 = pneg %p76
      %p550 = scmp.lt.s32.totalorder %s30, 1
      %s551 = scalar_select %p550, %s30, 1
      %s552 = smul.addr %s551, 432
      %s553 = smul.addr %s552, 4
      %s554 = scalar_lea.vmem %s2, %s553
      %p555 = pneg %p105
      %p556 = pneg %p102
      %p557 = scmp.lt.s32.totalorder %s30, 1
      %s558 = scalar_select %p557, %s30, 1
      %s559 = smul.addr %s558, 9
      %s560 = scalar_lea.vmem %s3, %s559
      %p561 = pneg %p131
      %p562 = pneg %p128
      %p563 = scmp.lt.s32.totalorder %s30, 1
      %s564 = scalar_select %p563, %s30, 1
      %s565 = smul.addr %s564, 144
      %s566 = smul.addr %s565, 4
      %s567 = scalar_lea.vmem %s4, %s566
      %p568 = pneg %p157
      %p569 = pneg %p154
      %p570 = scmp.lt.s32.totalorder %s30, 1
      %s571 = scalar_select %p570, %s30, 1
      %s572 = smul.addr %s571, 3
      %s573 = scalar_lea.vmem %s5, %s572
      %p574 = pneg %p183
      %p575 = pneg %p180
      %p576 = scmp.lt.s32.totalorder %s30, 1
      %s577 = scalar_select %p576, %s30, 1
      %s578 = smul.addr %s577, 3
      %s579 = scalar_lea.vmem %s6, %s578
      %p580 = pneg %p209
      %p581 = pneg %p206
      %p582 = scmp.lt.s32.totalorder %s30, 1
      %s583 = scalar_select %p582, %s30, 1
      %s584 = smul.addr %s583, 3
      %s585 = scalar_lea.vmem %s7, %s584
      %p586 = pneg %p235
      %p587 = pneg %p232
      %p588 = scmp.lt.s32.totalorder %s30, 1
      %s589 = scalar_select %p588, %s30, 1
      %s590 = smul.addr %s589, 3
      %s591 = scalar_lea.vmem %s8, %s590
      %p592 = pneg %p261
      %p593 = pneg %p258
      %p594 = scmp.lt.s32.totalorder %s30, 1
      %s595 = scalar_select %p594, %s30, 1
      %s596 = smul.addr %s595, 3
      %s597 = scalar_lea.vmem %s9, %s596
      %p598 = pneg %p287
      %p599 = pneg %p284
      %p600 = scmp.lt.s32.totalorder %s30, 1
      %s601 = scalar_select %p600, %s30, 1
      %s602 = smul.addr %s601, 48
      %s603 = smul.addr %s602, 4
      %s604 = scalar_lea.vmem %s10, %s603
      %p605 = pneg %p313
      %p606 = pneg %p310
      %p607 = scmp.lt.s32.totalorder %s30, 1
      %s608 = scalar_select %p607, %s30, 1
      %s609 = scalar_lea.vmem %s11, %s608
      %p610 = pneg %p339
      %p611 = pneg %p336
      %p612 = scmp.lt.s32.totalorder %s30, 1
      %s613 = scalar_select %p612, %s30, 1
      %s614 = smul.addr %s613, 48
      %s615 = smul.addr %s614, 4
      %s616 = scalar_lea.vmem %s12, %s615
      %p617 = pneg %p365
      %p618 = pneg %p362
      %p619 = scmp.lt.s32.totalorder %s30, 1
      %s620 = scalar_select %p619, %s30, 1
      %s621 = smul.addr %s620, 3
      %s622 = scalar_lea.vmem %s13, %s621
      %p623 = pneg %p391
      %p624 = pneg %p388
      %p625 = pneg %p417
      %p626 = pneg %p414
      %p627 = scmp.lt.s32.totalorder %s29, 1
      %s628 = scalar_select %p627, %s29, 1
      %s629 = smul.addr %s628, 3
      %s630 = smul.addr %s629, 8
      %s631 = scalar_lea.vmem %s14, %s630
      %p632 = scmp.lt.s32.totalorder %s29, 1
      %s633 = scalar_select %p632, %s29, 1
      %s634 = smul.addr %s633, 3
      %s635 = smul.addr %s634, 8
      %s636 = scalar_lea.vmem %s0, %s635
      %p637 = scmp.lt.s32.totalorder %s30, 1
      %s638 = scalar_select %p637, %s30, 1
      %s639 = smul.addr %s638, 432
      %s640 = smul.addr %s639, 4
      %s641 = scalar_lea.vmem %s2, %s640
      %p642 = scmp.lt.s32.totalorder %s30, 1
      %s643 = scalar_select %p642, %s30, 1
      %s644 = smul.addr %s643, 9
      %s645 = scalar_lea.vmem %s3, %s644
      %p646 = scmp.lt.s32.totalorder %s30, 1
      %s647 = scalar_select %p646, %s30, 1
      %s648 = smul.addr %s647, 144
      %s649 = smul.addr %s648, 4
      %s650 = scalar_lea.vmem %s4, %s649
      %p651 = scmp.lt.s32.totalorder %s30, 1
      %s652 = scalar_select %p651, %s30, 1
      %s653 = smul.addr %s652, 3
      %s654 = scalar_lea.vmem %s5, %s653
      %p655 = scmp.lt.s32.totalorder %s30, 1
      %s656 = scalar_select %p655, %s30, 1
      %s657 = smul.addr %s656, 3
      %s658 = scalar_lea.vmem %s6, %s657
      %p659 = scmp.lt.s32.totalorder %s30, 1
      %s660 = scalar_select %p659, %s30, 1
      %s661 = smul.addr %s660, 3
      %s662 = scalar_lea.vmem %s7, %s661
      %p663 = scmp.lt.s32.totalorder %s30, 1
      %s664 = scalar_select %p663, %s30, 1
      %s665 = smul.addr %s664, 3
      %s666 = scalar_lea.vmem %s8, %s665
      %p667 = scmp.lt.s32.totalorder %s30, 1
      %s668 = scalar_select %p667, %s30, 1
      %s669 = smul.addr %s668, 3
      %s670 = scalar_lea.vmem %s9, %s669
      %p671 = scmp.lt.s32.totalorder %s30, 1
      %s672 = scalar_select %p671, %s30, 1
      %s673 = smul.addr %s672, 48
      %s674 = smul.addr %s673, 4
      %s675 = scalar_lea.vmem %s10, %s674
      %p676 = scmp.lt.s32.totalorder %s30, 1
      %s677 = scalar_select %p676, %s30, 1
      %s678 = scalar_lea.vmem %s11, %s677
      %p679 = scmp.lt.s32.totalorder %s30, 1
      %s680 = scalar_select %p679, %s30, 1
      %s681 = smul.addr %s680, 48
      %s682 = smul.addr %s681, 4
      %s683 = scalar_lea.vmem %s12, %s682
      %p684 = scmp.lt.s32.totalorder %s30, 1
      %s685 = scalar_select %p684, %s30, 1
      %s686 = smul.addr %s685, 3
      %s687 = scalar_lea.vmem %s13, %s686
      %p688 = scmp.lt.s32.totalorder %s29, 1
      %s689 = scalar_select %p688, %s29, 1
      %s690 = smul.addr %s689, 3
      %s691 = smul.addr %s690, 8
      %s692 = scalar_lea.vmem %s14, %s691
      %p694 = scmp.eq.s32.totalorder %s30, 0
      // Predicated region
      $region77: #{transformer_model_forward.1} parent=75 // pred_check
        %p695 = pneg %p694
      $region78: #{transformer_model_forward.1} parent=75 // pred_check_branch
        %697 = sbr.rel (%p695) target = $region80
      $region79: #{transformer_model_forward.1} parent=75 // pred_region
        %v698 = vld [vmem:[%s636] sm:$0xff]
        %v699 = vld [vmem:[%s636 + $0x8] sm:$0xff]
        %v700 = vld [vmem:[%s636 + $0x10] sm:$0xff]
        %701 = vst [vmem:[%s692] sm:$0xff] %v698
        %702 = vst [vmem:[%s692 + $0x8] sm:$0xff] %v699
        %703 = vst [vmem:[%s692 + $0x10] sm:$0xff] %v700
      $region80: #{transformer_model_forward.1} parent=75 // pred_fallthru
        _
      %v704 = vld [vmem:[%s692] sm:$0xff]
      %v705 = vld [vmem:[%s692 + $0x8] sm:$0xff]
      %v706 = vld [vmem:[%s692 + $0x10] sm:$0xff]
      %v707 = vld [vmem:[%s1] sm:$0xff]
      %v708 = vpack.c.bf16 %v704, %v704
      %v709 = vpack.c.bf16 %v705, %v705
      %v710 = vpack.c.bf16 %v706, %v706
      %v711 = vld [vmem:[%s641] sm:$0xff]
      %v712 = vld [vmem:[%s641 + $0x8] sm:$0xff]
      %v713 = vld [vmem:[%s641 + $0x10] sm:$0xff]
      %v714 = vld [vmem:[%s641 + $0x18] sm:$0xff]
      %v715 = vld [vmem:[%s641 + $0x20] sm:$0xf]
      %v716 = vld [vmem:[%s641 + $0x24] sm:$0xff]
      %v717 = vld [vmem:[%s641 + $0x2c] sm:$0xff]
      %v718 = vld [vmem:[%s641 + $0x34] sm:$0xff]
      %v719 = vld [vmem:[%s641 + $0x3c] sm:$0xff]
      %v720 = vld [vmem:[%s641 + $0x44] sm:$0xf]
      %v721 = vld [vmem:[%s641 + $0x48] sm:$0xff]
      %v722 = vld [vmem:[%s641 + $0x50] sm:$0xff]
      %v723 = vld [vmem:[%s641 + $0x58] sm:$0xff]
      %v724 = vld [vmem:[%s641 + $0x60] sm:$0xff]
      %v725 = vld [vmem:[%s641 + $0x68] sm:$0xf]
      %v726 = vld [vmem:[%s641 + $0x6c] sm:$0xff]
      %v727 = vld [vmem:[%s641 + $0x74] sm:$0xff]
      %v728 = vld [vmem:[%s641 + $0x7c] sm:$0xff]
      %v729 = vld [vmem:[%s641 + $0x84] sm:$0xff]
      %v730 = vld [vmem:[%s641 + $0x8c] sm:$0xf]
      %v731 = vld [vmem:[%s641 + $0x90] sm:$0xff]
      %v732 = vld [vmem:[%s641 + $0x98] sm:$0xff]
      %v733 = vld [vmem:[%s641 + $0xa0] sm:$0xff]
      %v734 = vld [vmem:[%s641 + $0xa8] sm:$0xff]
      %v735 = vld [vmem:[%s641 + $0xb0] sm:$0xf]
      %v736 = vld [vmem:[%s641 + $0xb4] sm:$0xff]
      %v737 = vld [vmem:[%s641 + $0xbc] sm:$0xff]
      %v738 = vld [vmem:[%s641 + $0xc4] sm:$0xff]
      %v739 = vld [vmem:[%s641 + $0xcc] sm:$0xff]
      %v740 = vld [vmem:[%s641 + $0xd4] sm:$0xf]
      %v741 = vld [vmem:[%s641 + $0xd8] sm:$0xff]
      %v742 = vld [vmem:[%s641 + $0xe0] sm:$0xff]
      %v743 = vld [vmem:[%s641 + $0xe8] sm:$0xff]
      %v744 = vld [vmem:[%s641 + $0xf0] sm:$0xff]
      %v745 = vld [vmem:[%s641 + $0xf8] sm:$0xf]
      %v746 = vld [vmem:[%s641 + $0xfc] sm:$0xff]
      %v747 = vld [vmem:[%s641 + $0x104] sm:$0xff]
      %v748 = vld [vmem:[%s641 + $0x10c] sm:$0xff]
      %v749 = vld [vmem:[%s641 + $0x114] sm:$0xff]
      %v750 = vld [vmem:[%s641 + $0x11c] sm:$0xf]
      %v751 = vld [vmem:[%s641 + $0x120] sm:$0xff]
      %v752 = vld [vmem:[%s641 + $0x128] sm:$0xff]
      %v753 = vld [vmem:[%s641 + $0x130] sm:$0xff]
      %v754 = vld [vmem:[%s641 + $0x138] sm:$0xff]
      %v755 = vld [vmem:[%s641 + $0x140] sm:$0xf]
      %v756 = vld [vmem:[%s641 + $0x144] sm:$0xff]
      %v757 = vld [vmem:[%s641 + $0x14c] sm:$0xff]
      %v758 = vld [vmem:[%s641 + $0x154] sm:$0xff]
      %v759 = vld [vmem:[%s641 + $0x15c] sm:$0xff]
      %v760 = vld [vmem:[%s641 + $0x164] sm:$0xf]
      %v761 = vld [vmem:[%s641 + $0x168] sm:$0xff]
      %v762 = vld [vmem:[%s641 + $0x170] sm:$0xff]
      %v763 = vld [vmem:[%s641 + $0x178] sm:$0xff]
      %v764 = vld [vmem:[%s641 + $0x180] sm:$0xff]
      %v765 = vld [vmem:[%s641 + $0x188] sm:$0xf]
      %v766 = vld [vmem:[%s641 + $0x18c] sm:$0xff]
      %v767 = vld [vmem:[%s641 + $0x194] sm:$0xff]
      %v768 = vld [vmem:[%s641 + $0x19c] sm:$0xff]
      %v769 = vld [vmem:[%s641 + $0x1a4] sm:$0xff]
      %v770 = vld [vmem:[%s641 + $0x1ac] sm:$0xf]
      %v771 = vld [vmem:[%s641 + $0x1b0] sm:$0xff]
      %v772 = vld [vmem:[%s641 + $0x1b8] sm:$0xff]
      %v773 = vld [vmem:[%s641 + $0x1c0] sm:$0xff]
      %v774 = vld [vmem:[%s641 + $0x1c8] sm:$0xff]
      %v775 = vld [vmem:[%s641 + $0x1d0] sm:$0xf]
      %v776 = vld [vmem:[%s641 + $0x1d4] sm:$0xff]
      %v777 = vld [vmem:[%s641 + $0x1dc] sm:$0xff]
      %v778 = vld [vmem:[%s641 + $0x1e4] sm:$0xff]
      %v779 = vld [vmem:[%s641 + $0x1ec] sm:$0xff]
      %v780 = vld [vmem:[%s641 + $0x1f4] sm:$0xf]
      %v781 = vld [vmem:[%s641 + $0x1f8] sm:$0xff]
      %v782 = vld [vmem:[%s641 + $0x200] sm:$0xff]
      %v783 = vld [vmem:[%s641 + $0x208] sm:$0xff]
      %v784 = vld [vmem:[%s641 + $0x210] sm:$0xff]
      %v785 = vld [vmem:[%s641 + $0x218] sm:$0xf]
      %v786 = vld [vmem:[%s641 + $0x21c] sm:$0xff]
      %v787 = vld [vmem:[%s641 + $0x224] sm:$0xff]
      %v788 = vld [vmem:[%s641 + $0x22c] sm:$0xff]
      %v789 = vld [vmem:[%s641 + $0x234] sm:$0xff]
      %v790 = vld [vmem:[%s641 + $0x23c] sm:$0xf]
      %v791 = vld [vmem:[%s641 + $0x240] sm:$0xff]
      %v792 = vld [vmem:[%s641 + $0x248] sm:$0xff]
      %v793 = vld [vmem:[%s641 + $0x250] sm:$0xff]
      %v794 = vld [vmem:[%s641 + $0x258] sm:$0xff]
      %v795 = vld [vmem:[%s641 + $0x260] sm:$0xf]
      %v796 = vld [vmem:[%s641 + $0x264] sm:$0xff]
      %v797 = vld [vmem:[%s641 + $0x26c] sm:$0xff]
      %v798 = vld [vmem:[%s641 + $0x274] sm:$0xff]
      %v799 = vld [vmem:[%s641 + $0x27c] sm:$0xff]
      %v800 = vld [vmem:[%s641 + $0x284] sm:$0xf]
      %v801 = vld [vmem:[%s641 + $0x288] sm:$0xff]
      %v802 = vld [vmem:[%s641 + $0x290] sm:$0xff]
      %v803 = vld [vmem:[%s641 + $0x298] sm:$0xff]
      %v804 = vld [vmem:[%s641 + $0x2a0] sm:$0xff]
      %v805 = vld [vmem:[%s641 + $0x2a8] sm:$0xf]
      %v806 = vld [vmem:[%s641 + $0x2ac] sm:$0xff]
      %v807 = vld [vmem:[%s641 + $0x2b4] sm:$0xff]
      %v808 = vld [vmem:[%s641 + $0x2bc] sm:$0xff]
      %v809 = vld [vmem:[%s641 + $0x2c4] sm:$0xff]
      %v810 = vld [vmem:[%s641 + $0x2cc] sm:$0xf]
      %v811 = vld [vmem:[%s641 + $0x2d0] sm:$0xff]
      %v812 = vld [vmem:[%s641 + $0x2d8] sm:$0xff]
      %v813 = vld [vmem:[%s641 + $0x2e0] sm:$0xff]
      %v814 = vld [vmem:[%s641 + $0x2e8] sm:$0xff]
      %v815 = vld [vmem:[%s641 + $0x2f0] sm:$0xf]
      %v816 = vld [vmem:[%s641 + $0x2f4] sm:$0xff]
      %v817 = vld [vmem:[%s641 + $0x2fc] sm:$0xff]
      %v818 = vld [vmem:[%s641 + $0x304] sm:$0xff]
      %v819 = vld [vmem:[%s641 + $0x30c] sm:$0xff]
      %v820 = vld [vmem:[%s641 + $0x314] sm:$0xf]
      %v821 = vld [vmem:[%s641 + $0x318] sm:$0xff]
      %v822 = vld [vmem:[%s641 + $0x320] sm:$0xff]
      %v823 = vld [vmem:[%s641 + $0x328] sm:$0xff]
      %v824 = vld [vmem:[%s641 + $0x330] sm:$0xff]
      %v825 = vld [vmem:[%s641 + $0x338] sm:$0xf]
      %v826 = vld [vmem:[%s641 + $0x33c] sm:$0xff]
      %v827 = vld [vmem:[%s641 + $0x344] sm:$0xff]
      %v828 = vld [vmem:[%s641 + $0x34c] sm:$0xff]
      %v829 = vld [vmem:[%s641 + $0x354] sm:$0xff]
      %v830 = vld [vmem:[%s641 + $0x35c] sm:$0xf]
      %v831 = vld [vmem:[%s641 + $0x360] sm:$0xff]
      %v832 = vld [vmem:[%s641 + $0x368] sm:$0xff]
      %v833 = vld [vmem:[%s641 + $0x370] sm:$0xff]
      %v834 = vld [vmem:[%s641 + $0x378] sm:$0xff]
      %v835 = vld [vmem:[%s641 + $0x380] sm:$0xf]
      %v836 = vld [vmem:[%s641 + $0x384] sm:$0xff]
      %v837 = vld [vmem:[%s641 + $0x38c] sm:$0xff]
      %v838 = vld [vmem:[%s641 + $0x394] sm:$0xff]
      %v839 = vld [vmem:[%s641 + $0x39c] sm:$0xff]
      %v840 = vld [vmem:[%s641 + $0x3a4] sm:$0xf]
      %v841 = vld [vmem:[%s641 + $0x3a8] sm:$0xff]
      %v842 = vld [vmem:[%s641 + $0x3b0] sm:$0xff]
      %v843 = vld [vmem:[%s641 + $0x3b8] sm:$0xff]
      %v844 = vld [vmem:[%s641 + $0x3c0] sm:$0xff]
      %v845 = vld [vmem:[%s641 + $0x3c8] sm:$0xf]
      %v846 = vld [vmem:[%s641 + $0x3cc] sm:$0xff]
      %v847 = vld [vmem:[%s641 + $0x3d4] sm:$0xff]
      %v848 = vld [vmem:[%s641 + $0x3dc] sm:$0xff]
      %v849 = vld [vmem:[%s641 + $0x3e4] sm:$0xff]
      %v850 = vld [vmem:[%s641 + $0x3ec] sm:$0xf]
      %v851 = vld [vmem:[%s641 + $0x3f0] sm:$0xff]
      %v852 = vld [vmem:[%s641 + $0x3f8] sm:$0xff]
      %v853 = vld [vmem:[%s641 + $0x400] sm:$0xff]
      %v854 = vld [vmem:[%s641 + $0x408] sm:$0xff]
      %v855 = vld [vmem:[%s641 + $0x410] sm:$0xf]
      %v856 = vld [vmem:[%s641 + $0x414] sm:$0xff]
      %v857 = vld [vmem:[%s641 + $0x41c] sm:$0xff]
      %v858 = vld [vmem:[%s641 + $0x424] sm:$0xff]
      %v859 = vld [vmem:[%s641 + $0x42c] sm:$0xff]
      %v860 = vld [vmem:[%s641 + $0x434] sm:$0xf]
      %v861 = vld [vmem:[%s641 + $0x438] sm:$0xff]
      %v862 = vld [vmem:[%s641 + $0x440] sm:$0xff]
      %v863 = vld [vmem:[%s641 + $0x448] sm:$0xff]
      %v864 = vld [vmem:[%s641 + $0x450] sm:$0xff]
      %v865 = vld [vmem:[%s641 + $0x458] sm:$0xf]
      %v866 = vld [vmem:[%s641 + $0x45c] sm:$0xff]
      %v867 = vld [vmem:[%s641 + $0x464] sm:$0xff]
      %v868 = vld [vmem:[%s641 + $0x46c] sm:$0xff]
      %v869 = vld [vmem:[%s641 + $0x474] sm:$0xff]
      %v870 = vld [vmem:[%s641 + $0x47c] sm:$0xf]
      %v871 = vld [vmem:[%s641 + $0x480] sm:$0xff]
      %v872 = vld [vmem:[%s641 + $0x488] sm:$0xff]
      %v873 = vld [vmem:[%s641 + $0x490] sm:$0xff]
      %v874 = vld [vmem:[%s641 + $0x498] sm:$0xff]
      %v875 = vld [vmem:[%s641 + $0x4a0] sm:$0xf]
      %v876 = vld [vmem:[%s641 + $0x4a4] sm:$0xff]
      %v877 = vld [vmem:[%s641 + $0x4ac] sm:$0xff]
      %v878 = vld [vmem:[%s641 + $0x4b4] sm:$0xff]
      %v879 = vld [vmem:[%s641 + $0x4bc] sm:$0xff]
      %v880 = vld [vmem:[%s641 + $0x4c4] sm:$0xf]
      %v881 = vld [vmem:[%s641 + $0x4c8] sm:$0xff]
      %v882 = vld [vmem:[%s641 + $0x4d0] sm:$0xff]
      %v883 = vld [vmem:[%s641 + $0x4d8] sm:$0xff]
      %v884 = vld [vmem:[%s641 + $0x4e0] sm:$0xff]
      %v885 = vld [vmem:[%s641 + $0x4e8] sm:$0xf]
      %v886 = vld [vmem:[%s641 + $0x4ec] sm:$0xff]
      %v887 = vld [vmem:[%s641 + $0x4f4] sm:$0xff]
      %v888 = vld [vmem:[%s641 + $0x4fc] sm:$0xff]
      %v889 = vld [vmem:[%s641 + $0x504] sm:$0xff]
      %v890 = vld [vmem:[%s641 + $0x50c] sm:$0xf]
      %v891 = vld [vmem:[%s641 + $0x510] sm:$0xff]
      %v892 = vld [vmem:[%s641 + $0x518] sm:$0xff]
      %v893 = vld [vmem:[%s641 + $0x520] sm:$0xff]
      %v894 = vld [vmem:[%s641 + $0x528] sm:$0xff]
      %v895 = vld [vmem:[%s641 + $0x530] sm:$0xf]
      %v896 = vld [vmem:[%s641 + $0x534] sm:$0xff]
      %v897 = vld [vmem:[%s641 + $0x53c] sm:$0xff]
      %v898 = vld [vmem:[%s641 + $0x544] sm:$0xff]
      %v899 = vld [vmem:[%s641 + $0x54c] sm:$0xff]
      %v900 = vld [vmem:[%s641 + $0x554] sm:$0xf]
      %v901 = vld [vmem:[%s641 + $0x558] sm:$0xff]
      %v902 = vld [vmem:[%s641 + $0x560] sm:$0xff]
      %v903 = vld [vmem:[%s641 + $0x568] sm:$0xff]
      %v904 = vld [vmem:[%s641 + $0x570] sm:$0xff]
      %v905 = vld [vmem:[%s641 + $0x578] sm:$0xf]
      %v906 = vld [vmem:[%s641 + $0x57c] sm:$0xff]
      %v907 = vld [vmem:[%s641 + $0x584] sm:$0xff]
      %v908 = vld [vmem:[%s641 + $0x58c] sm:$0xff]
      %v909 = vld [vmem:[%s641 + $0x594] sm:$0xff]
      %v910 = vld [vmem:[%s641 + $0x59c] sm:$0xf]
      %v911 = vld [vmem:[%s641 + $0x5a0] sm:$0xff]
      %v912 = vld [vmem:[%s641 + $0x5a8] sm:$0xff]
      %v913 = vld [vmem:[%s641 + $0x5b0] sm:$0xff]
      %v914 = vld [vmem:[%s641 + $0x5b8] sm:$0xff]
      %v915 = vld [vmem:[%s641 + $0x5c0] sm:$0xf]
      %v916 = vld [vmem:[%s641 + $0x5c4] sm:$0xff]
      %v917 = vld [vmem:[%s641 + $0x5cc] sm:$0xff]
      %v918 = vld [vmem:[%s641 + $0x5d4] sm:$0xff]
      %v919 = vld [vmem:[%s641 + $0x5dc] sm:$0xff]
      %v920 = vld [vmem:[%s641 + $0x5e4] sm:$0xf]
      %v921 = vld [vmem:[%s641 + $0x5e8] sm:$0xff]
      %v922 = vld [vmem:[%s641 + $0x5f0] sm:$0xff]
      %v923 = vld [vmem:[%s641 + $0x5f8] sm:$0xff]
      %v924 = vld [vmem:[%s641 + $0x600] sm:$0xff]
      %v925 = vld [vmem:[%s641 + $0x608] sm:$0xf]
      %v926 = vld [vmem:[%s641 + $0x60c] sm:$0xff]
      %v927 = vld [vmem:[%s641 + $0x614] sm:$0xff]
      %v928 = vld [vmem:[%s641 + $0x61c] sm:$0xff]
      %v929 = vld [vmem:[%s641 + $0x624] sm:$0xff]
      %v930 = vld [vmem:[%s641 + $0x62c] sm:$0xf]
      %v931 = vld [vmem:[%s641 + $0x630] sm:$0xff]
      %v932 = vld [vmem:[%s641 + $0x638] sm:$0xff]
      %v933 = vld [vmem:[%s641 + $0x640] sm:$0xff]
      %v934 = vld [vmem:[%s641 + $0x648] sm:$0xff]
      %v935 = vld [vmem:[%s641 + $0x650] sm:$0xf]
      %v936 = vld [vmem:[%s641 + $0x654] sm:$0xff]
      %v937 = vld [vmem:[%s641 + $0x65c] sm:$0xff]
      %v938 = vld [vmem:[%s641 + $0x664] sm:$0xff]
      %v939 = vld [vmem:[%s641 + $0x66c] sm:$0xff]
      %v940 = vld [vmem:[%s641 + $0x674] sm:$0xf]
      %v941 = vld [vmem:[%s641 + $0x678] sm:$0xff]
      %v942 = vld [vmem:[%s641 + $0x680] sm:$0xff]
      %v943 = vld [vmem:[%s641 + $0x688] sm:$0xff]
      %v944 = vld [vmem:[%s641 + $0x690] sm:$0xff]
      %v945 = vld [vmem:[%s641 + $0x698] sm:$0xf]
      %v946 = vld [vmem:[%s641 + $0x69c] sm:$0xff]
      %v947 = vld [vmem:[%s641 + $0x6a4] sm:$0xff]
      %v948 = vld [vmem:[%s641 + $0x6ac] sm:$0xff]
      %v949 = vld [vmem:[%s641 + $0x6b4] sm:$0xff]
      %v950 = vld [vmem:[%s641 + $0x6bc] sm:$0xf]
      %v951 = vld [vmem:[%s645] sm:$0xff]
      %v952 = vld [vmem:[%s645 + $0x8] sm:$0x1]
      %v955 = vlaneseq
      %v956 = vshrl.u32 %v955, 7
      %v957 = vsub.s32 0, %v956
      %v958 = vrot.slane %v951, %v957
      %v959 = vlaneseq
      %v960 = vshrl.u32 %v959, 7
      %v961 = vsub.s32 1, %v960
      %v962 = vrot.slane %v951, %v961
      %v963 = vlaneseq
      %v964 = vshrl.u32 %v963, 7
      %v965 = vsub.s32 2, %v964
      %v966 = vrot.slane %v951, %v965
      %v967 = vlaneseq
      %v968 = vshrl.u32 %v967, 7
      %v969 = vsub.s32 3, %v968
      %v970 = vrot.slane %v951, %v969
      %v971 = vlaneseq
      %v972 = vshrl.u32 %v971, 7
      %v973 = vsub.s32 4, %v972
      %v974 = vrot.slane %v951, %v973
      %v975 = vlaneseq
      %v976 = vshrl.u32 %v975, 7
      %v977 = vsub.s32 5, %v976
      %v978 = vrot.slane %v951, %v977
      %v979 = vlaneseq
      %v980 = vshrl.u32 %v979, 7
      %v981 = vsub.s32 6, %v980
      %v982 = vrot.slane %v951, %v981
      %v983 = vlaneseq
      %v984 = vshrl.u32 %v983, 7
      %v985 = vsub.s32 7, %v984
      %v986 = vrot.slane %v951, %v985
      %v987 = vlaneseq
      %v988 = vshrl.u32 %v987, 7
      %v989 = vsub.s32 0, %v988
      %v990 = vrot.slane %v952, %v989
      %v1240 = vunpack.c.l.b16 %v711
      %v1241 = vunpack.c.h.b16 %v711
      %v1242 = vunpack.c.l.b16 %v712
      %v1243 = vunpack.c.h.b16 %v712
      %v1244 = vunpack.c.l.b16 %v713
      %v1245 = vunpack.c.h.b16 %v713
      %v1246 = vunpack.c.l.b16 %v714
      %v1247 = vunpack.c.h.b16 %v714
      %v1248 = vunpack.c.l.b16 %v715
      %v1249 = vunpack.c.l.b16 %v716
      %v1250 = vunpack.c.h.b16 %v716
      %v1251 = vunpack.c.l.b16 %v717
      %v1252 = vunpack.c.h.b16 %v717
      %v1253 = vunpack.c.l.b16 %v718
      %v1254 = vunpack.c.h.b16 %v718
      %v1255 = vunpack.c.l.b16 %v719
      %v1256 = vunpack.c.h.b16 %v719
      %v1257 = vunpack.c.l.b16 %v720
      %v1258 = vunpack.c.l.b16 %v721
      %v1259 = vunpack.c.h.b16 %v721
      %v1260 = vunpack.c.l.b16 %v722
      %v1261 = vunpack.c.h.b16 %v722
      %v1262 = vunpack.c.l.b16 %v723
      %v1263 = vunpack.c.h.b16 %v723
      %v1264 = vunpack.c.l.b16 %v724
      %v1265 = vunpack.c.h.b16 %v724
      %v1266 = vunpack.c.l.b16 %v725
      %v1267 = vunpack.c.l.b16 %v726
      %v1268 = vunpack.c.h.b16 %v726
      %v1269 = vunpack.c.l.b16 %v727
      %v1270 = vunpack.c.h.b16 %v727
      %v1271 = vunpack.c.l.b16 %v728
      %v1272 = vunpack.c.h.b16 %v728
      %v1273 = vunpack.c.l.b16 %v729
      %v1274 = vunpack.c.h.b16 %v729
      %v1275 = vunpack.c.l.b16 %v730
      %v1276 = vunpack.c.l.b16 %v731
      %v1277 = vunpack.c.h.b16 %v731
      %v1278 = vunpack.c.l.b16 %v732
      %v1279 = vunpack.c.h.b16 %v732
      %v1280 = vunpack.c.l.b16 %v733
      %v1281 = vunpack.c.h.b16 %v733
      %v1282 = vunpack.c.l.b16 %v734
      %v1283 = vunpack.c.h.b16 %v734
      %v1284 = vunpack.c.l.b16 %v735
      %v1285 = vunpack.c.l.b16 %v736
      %v1286 = vunpack.c.h.b16 %v736
      %v1287 = vunpack.c.l.b16 %v737
      %v1288 = vunpack.c.h.b16 %v737
      %v1289 = vunpack.c.l.b16 %v738
      %v1290 = vunpack.c.h.b16 %v738
      %v1291 = vunpack.c.l.b16 %v739
      %v1292 = vunpack.c.h.b16 %v739
      %v1293 = vunpack.c.l.b16 %v740
      %v1294 = vunpack.c.l.b16 %v741
      %v1295 = vunpack.c.h.b16 %v741
      %v1296 = vunpack.c.l.b16 %v742
      %v1297 = vunpack.c.h.b16 %v742
      %v1298 = vunpack.c.l.b16 %v743
      %v1299 = vunpack.c.h.b16 %v743
      %v1300 = vunpack.c.l.b16 %v744
      %v1301 = vunpack.c.h.b16 %v744
      %v1302 = vunpack.c.l.b16 %v745
      %v1303 = vunpack.c.l.b16 %v746
      %v1304 = vunpack.c.h.b16 %v746
      %v1305 = vunpack.c.l.b16 %v747
      %v1306 = vunpack.c.h.b16 %v747
      %v1307 = vunpack.c.l.b16 %v748
      %v1308 = vunpack.c.h.b16 %v748
      %v1309 = vunpack.c.l.b16 %v749
      %v1310 = vunpack.c.h.b16 %v749
      %v1311 = vunpack.c.l.b16 %v750
      %v1312 = vunpack.c.l.b16 %v751
      %v1313 = vunpack.c.h.b16 %v751
      %v1314 = vunpack.c.l.b16 %v752
      %v1315 = vunpack.c.h.b16 %v752
      %v1316 = vunpack.c.l.b16 %v753
      %v1317 = vunpack.c.h.b16 %v753
      %v1318 = vunpack.c.l.b16 %v754
      %v1319 = vunpack.c.h.b16 %v754
      %v1320 = vunpack.c.l.b16 %v755
      %v1321 = vunpack.c.l.b16 %v756
      %v1322 = vunpack.c.h.b16 %v756
      %v1323 = vunpack.c.l.b16 %v757
      %v1324 = vunpack.c.h.b16 %v757
      %v1325 = vunpack.c.l.b16 %v758
      %v1326 = vunpack.c.h.b16 %v758
      %v1327 = vunpack.c.l.b16 %v759
      %v1328 = vunpack.c.h.b16 %v759
      %v1329 = vunpack.c.l.b16 %v760
      %v1330 = vunpack.c.l.b16 %v761
      %v1331 = vunpack.c.h.b16 %v761
      %v1332 = vunpack.c.l.b16 %v762
      %v1333 = vunpack.c.h.b16 %v762
      %v1334 = vunpack.c.l.b16 %v763
      %v1335 = vunpack.c.h.b16 %v763
      %v1336 = vunpack.c.l.b16 %v764
      %v1337 = vunpack.c.h.b16 %v764
      %v1338 = vunpack.c.l.b16 %v765
      %v1339 = vunpack.c.l.b16 %v766
      %v1340 = vunpack.c.h.b16 %v766
      %v1341 = vunpack.c.l.b16 %v767
      %v1342 = vunpack.c.h.b16 %v767
      %v1343 = vunpack.c.l.b16 %v768
      %v1344 = vunpack.c.h.b16 %v768
      %v1345 = vunpack.c.l.b16 %v769
      %v1346 = vunpack.c.h.b16 %v769
      %v1347 = vunpack.c.l.b16 %v770
      %v1348 = vunpack.c.l.b16 %v771
      %v1349 = vunpack.c.h.b16 %v771
      %v1350 = vunpack.c.l.b16 %v772
      %v1351 = vunpack.c.h.b16 %v772
      %v1352 = vunpack.c.l.b16 %v773
      %v1353 = vunpack.c.h.b16 %v773
      %v1354 = vunpack.c.l.b16 %v774
      %v1355 = vunpack.c.h.b16 %v774
      %v1356 = vunpack.c.l.b16 %v775
      %v1357 = vunpack.c.l.b16 %v776
      %v1358 = vunpack.c.h.b16 %v776
      %v1359 = vunpack.c.l.b16 %v777
      %v1360 = vunpack.c.h.b16 %v777
      %v1361 = vunpack.c.l.b16 %v778
      %v1362 = vunpack.c.h.b16 %v778
      %v1363 = vunpack.c.l.b16 %v779
      %v1364 = vunpack.c.h.b16 %v779
      %v1365 = vunpack.c.l.b16 %v780
      %v1366 = vunpack.c.l.b16 %v781
      %v1367 = vunpack.c.h.b16 %v781
      %v1368 = vunpack.c.l.b16 %v782
      %v1369 = vunpack.c.h.b16 %v782
      %v1370 = vunpack.c.l.b16 %v783
      %v1371 = vunpack.c.h.b16 %v783
      %v1372 = vunpack.c.l.b16 %v784
      %v1373 = vunpack.c.h.b16 %v784
      %v1374 = vunpack.c.l.b16 %v785
      %v1375 = vunpack.c.l.b16 %v786
      %v1376 = vunpack.c.h.b16 %v786
      %v1377 = vunpack.c.l.b16 %v787
      %v1378 = vunpack.c.h.b16 %v787
      %v1379 = vunpack.c.l.b16 %v788
      %v1380 = vunpack.c.h.b16 %v788
      %v1381 = vunpack.c.l.b16 %v789
      %v1382 = vunpack.c.h.b16 %v789
      %v1383 = vunpack.c.l.b16 %v790
      %v1384 = vunpack.c.l.b16 %v791
      %v1385 = vunpack.c.h.b16 %v791
      %v1386 = vunpack.c.l.b16 %v792
      %v1387 = vunpack.c.h.b16 %v792
      %v1388 = vunpack.c.l.b16 %v793
      %v1389 = vunpack.c.h.b16 %v793
      %v1390 = vunpack.c.l.b16 %v794
      %v1391 = vunpack.c.h.b16 %v794
      %v1392 = vunpack.c.l.b16 %v795
      %v1393 = vunpack.c.l.b16 %v796
      %v1394 = vunpack.c.h.b16 %v796
      %v1395 = vunpack.c.l.b16 %v797
      %v1396 = vunpack.c.h.b16 %v797
      %v1397 = vunpack.c.l.b16 %v798
      %v1398 = vunpack.c.h.b16 %v798
      %v1399 = vunpack.c.l.b16 %v799
      %v1400 = vunpack.c.h.b16 %v799
      %v1401 = vunpack.c.l.b16 %v800
      %v1402 = vunpack.c.l.b16 %v801
      %v1403 = vunpack.c.h.b16 %v801
      %v1404 = vunpack.c.l.b16 %v802
      %v1405 = vunpack.c.h.b16 %v802
      %v1406 = vunpack.c.l.b16 %v803
      %v1407 = vunpack.c.h.b16 %v803
      %v1408 = vunpack.c.l.b16 %v804
      %v1409 = vunpack.c.h.b16 %v804
      %v1410 = vunpack.c.l.b16 %v805
      %v1411 = vunpack.c.l.b16 %v806
      %v1412 = vunpack.c.h.b16 %v806
      %v1413 = vunpack.c.l.b16 %v807
      %v1414 = vunpack.c.h.b16 %v807
      %v1415 = vunpack.c.l.b16 %v808
      %v1416 = vunpack.c.h.b16 %v808
      %v1417 = vunpack.c.l.b16 %v809
      %v1418 = vunpack.c.h.b16 %v809
      %v1419 = vunpack.c.l.b16 %v810
      %v1420 = vunpack.c.l.b16 %v811
      %v1421 = vunpack.c.h.b16 %v811
      %v1422 = vunpack.c.l.b16 %v812
      %v1423 = vunpack.c.h.b16 %v812
      %v1424 = vunpack.c.l.b16 %v813
      %v1425 = vunpack.c.h.b16 %v813
      %v1426 = vunpack.c.l.b16 %v814
      %v1427 = vunpack.c.h.b16 %v814
      %v1428 = vunpack.c.l.b16 %v815
      %v1429 = vunpack.c.l.b16 %v816
      %v1430 = vunpack.c.h.b16 %v816
      %v1431 = vunpack.c.l.b16 %v817
      %v1432 = vunpack.c.h.b16 %v817
      %v1433 = vunpack.c.l.b16 %v818
      %v1434 = vunpack.c.h.b16 %v818
      %v1435 = vunpack.c.l.b16 %v819
      %v1436 = vunpack.c.h.b16 %v819
      %v1437 = vunpack.c.l.b16 %v820
      %v1438 = vunpack.c.l.b16 %v821
      %v1439 = vunpack.c.h.b16 %v821
      %v1440 = vunpack.c.l.b16 %v822
      %v1441 = vunpack.c.h.b16 %v822
      %v1442 = vunpack.c.l.b16 %v823
      %v1443 = vunpack.c.h.b16 %v823
      %v1444 = vunpack.c.l.b16 %v824
      %v1445 = vunpack.c.h.b16 %v824
      %v1446 = vunpack.c.l.b16 %v825
      %v1447 = vunpack.c.l.b16 %v826
      %v1448 = vunpack.c.h.b16 %v826
      %v1449 = vunpack.c.l.b16 %v827
      %v1450 = vunpack.c.h.b16 %v827
      %v1451 = vunpack.c.l.b16 %v828
      %v1452 = vunpack.c.h.b16 %v828
      %v1453 = vunpack.c.l.b16 %v829
      %v1454 = vunpack.c.h.b16 %v829
      %v1455 = vunpack.c.l.b16 %v830
      %v1456 = vunpack.c.l.b16 %v831
      %v1457 = vunpack.c.h.b16 %v831
      %v1458 = vunpack.c.l.b16 %v832
      %v1459 = vunpack.c.h.b16 %v832
      %v1460 = vunpack.c.l.b16 %v833
      %v1461 = vunpack.c.h.b16 %v833
      %v1462 = vunpack.c.l.b16 %v834
      %v1463 = vunpack.c.h.b16 %v834
      %v1464 = vunpack.c.l.b16 %v835
      %v1465 = vunpack.c.l.b16 %v836
      %v1466 = vunpack.c.h.b16 %v836
      %v1467 = vunpack.c.l.b16 %v837
      %v1468 = vunpack.c.h.b16 %v837
      %v1469 = vunpack.c.l.b16 %v838
      %v1470 = vunpack.c.h.b16 %v838
      %v1471 = vunpack.c.l.b16 %v839
      %v1472 = vunpack.c.h.b16 %v839
      %v1473 = vunpack.c.l.b16 %v840
      %v1474 = vunpack.c.l.b16 %v841
      %v1475 = vunpack.c.h.b16 %v841
      %v1476 = vunpack.c.l.b16 %v842
      %v1477 = vunpack.c.h.b16 %v842
      %v1478 = vunpack.c.l.b16 %v843
      %v1479 = vunpack.c.h.b16 %v843
      %v1480 = vunpack.c.l.b16 %v844
      %v1481 = vunpack.c.h.b16 %v844
      %v1482 = vunpack.c.l.b16 %v845
      %v1483 = vunpack.c.l.b16 %v846
      %v1484 = vunpack.c.h.b16 %v846
      %v1485 = vunpack.c.l.b16 %v847
      %v1486 = vunpack.c.h.b16 %v847
      %v1487 = vunpack.c.l.b16 %v848
      %v1488 = vunpack.c.h.b16 %v848
      %v1489 = vunpack.c.l.b16 %v849
      %v1490 = vunpack.c.h.b16 %v849
      %v1491 = vunpack.c.l.b16 %v850
      %v1492 = vunpack.c.l.b16 %v851
      %v1493 = vunpack.c.h.b16 %v851
      %v1494 = vunpack.c.l.b16 %v852
      %v1495 = vunpack.c.h.b16 %v852
      %v1496 = vunpack.c.l.b16 %v853
      %v1497 = vunpack.c.h.b16 %v853
      %v1498 = vunpack.c.l.b16 %v854
      %v1499 = vunpack.c.h.b16 %v854
      %v1500 = vunpack.c.l.b16 %v855
      %v1501 = vunpack.c.l.b16 %v856
      %v1502 = vunpack.c.h.b16 %v856
      %v1503 = vunpack.c.l.b16 %v857
      %v1504 = vunpack.c.h.b16 %v857
      %v1505 = vunpack.c.l.b16 %v858
      %v1506 = vunpack.c.h.b16 %v858
      %v1507 = vunpack.c.l.b16 %v859
      %v1508 = vunpack.c.h.b16 %v859
      %v1509 = vunpack.c.l.b16 %v860
      %v1510 = vunpack.c.l.b16 %v861
      %v1511 = vunpack.c.h.b16 %v861
      %v1512 = vunpack.c.l.b16 %v862
      %v1513 = vunpack.c.h.b16 %v862
      %v1514 = vunpack.c.l.b16 %v863
      %v1515 = vunpack.c.h.b16 %v863
      %v1516 = vunpack.c.l.b16 %v864
      %v1517 = vunpack.c.h.b16 %v864
      %v1518 = vunpack.c.l.b16 %v865
      %v1519 = vunpack.c.l.b16 %v866
      %v1520 = vunpack.c.h.b16 %v866
      %v1521 = vunpack.c.l.b16 %v867
      %v1522 = vunpack.c.h.b16 %v867
      %v1523 = vunpack.c.l.b16 %v868
      %v1524 = vunpack.c.h.b16 %v868
      %v1525 = vunpack.c.l.b16 %v869
      %v1526 = vunpack.c.h.b16 %v869
      %v1527 = vunpack.c.l.b16 %v870
      %v1528 = vunpack.c.l.b16 %v871
      %v1529 = vunpack.c.h.b16 %v871
      %v1530 = vunpack.c.l.b16 %v872
      %v1531 = vunpack.c.h.b16 %v872
      %v1532 = vunpack.c.l.b16 %v873
      %v1533 = vunpack.c.h.b16 %v873
      %v1534 = vunpack.c.l.b16 %v874
      %v1535 = vunpack.c.h.b16 %v874
      %v1536 = vunpack.c.l.b16 %v875
      %v1537 = vunpack.c.l.b16 %v876
      %v1538 = vunpack.c.h.b16 %v876
      %v1539 = vunpack.c.l.b16 %v877
      %v1540 = vunpack.c.h.b16 %v877
      %v1541 = vunpack.c.l.b16 %v878
      %v1542 = vunpack.c.h.b16 %v878
      %v1543 = vunpack.c.l.b16 %v879
      %v1544 = vunpack.c.h.b16 %v879
      %v1545 = vunpack.c.l.b16 %v880
      %v1546 = vunpack.c.l.b16 %v881
      %v1547 = vunpack.c.h.b16 %v881
      %v1548 = vunpack.c.l.b16 %v882
      %v1549 = vunpack.c.h.b16 %v882
      %v1550 = vunpack.c.l.b16 %v883
      %v1551 = vunpack.c.h.b16 %v883
      %v1552 = vunpack.c.l.b16 %v884
      %v1553 = vunpack.c.h.b16 %v884
      %v1554 = vunpack.c.l.b16 %v885
      %v1555 = vunpack.c.l.b16 %v886
      %v1556 = vunpack.c.h.b16 %v886
      %v1557 = vunpack.c.l.b16 %v887
      %v1558 = vunpack.c.h.b16 %v887
      %v1559 = vunpack.c.l.b16 %v888
      %v1560 = vunpack.c.h.b16 %v888
      %v1561 = vunpack.c.l.b16 %v889
      %v1562 = vunpack.c.h.b16 %v889
      %v1563 = vunpack.c.l.b16 %v890
      %v1564 = vunpack.c.l.b16 %v891
      %v1565 = vunpack.c.h.b16 %v891
      %v1566 = vunpack.c.l.b16 %v892
      %v1567 = vunpack.c.h.b16 %v892
      %v1568 = vunpack.c.l.b16 %v893
      %v1569 = vunpack.c.h.b16 %v893
      %v1570 = vunpack.c.l.b16 %v894
      %v1571 = vunpack.c.h.b16 %v894
      %v1572 = vunpack.c.l.b16 %v895
      %v1573 = vunpack.c.l.b16 %v896
      %v1574 = vunpack.c.h.b16 %v896
      %v1575 = vunpack.c.l.b16 %v897
      %v1576 = vunpack.c.h.b16 %v897
      %v1577 = vunpack.c.l.b16 %v898
      %v1578 = vunpack.c.h.b16 %v898
      %v1579 = vunpack.c.l.b16 %v899
      %v1580 = vunpack.c.h.b16 %v899
      %v1581 = vunpack.c.l.b16 %v900
      %v1582 = vunpack.c.l.b16 %v901
      %v1583 = vunpack.c.h.b16 %v901
      %v1584 = vunpack.c.l.b16 %v902
      %v1585 = vunpack.c.h.b16 %v902
      %v1586 = vunpack.c.l.b16 %v903
      %v1587 = vunpack.c.h.b16 %v903
      %v1588 = vunpack.c.l.b16 %v904
      %v1589 = vunpack.c.h.b16 %v904
      %v1590 = vunpack.c.l.b16 %v905
      %v1591 = vunpack.c.l.b16 %v906
      %v1592 = vunpack.c.h.b16 %v906
      %v1593 = vunpack.c.l.b16 %v907
      %v1594 = vunpack.c.h.b16 %v907
      %v1595 = vunpack.c.l.b16 %v908
      %v1596 = vunpack.c.h.b16 %v908
      %v1597 = vunpack.c.l.b16 %v909
      %v1598 = vunpack.c.h.b16 %v909
      %v1599 = vunpack.c.l.b16 %v910
      %v1600 = vunpack.c.l.b16 %v911
      %v1601 = vunpack.c.h.b16 %v911
      %v1602 = vunpack.c.l.b16 %v912
      %v1603 = vunpack.c.h.b16 %v912
      %v1604 = vunpack.c.l.b16 %v913
      %v1605 = vunpack.c.h.b16 %v913
      %v1606 = vunpack.c.l.b16 %v914
      %v1607 = vunpack.c.h.b16 %v914
      %v1608 = vunpack.c.l.b16 %v915
      %v1609 = vunpack.c.l.b16 %v916
      %v1610 = vunpack.c.h.b16 %v916
      %v1611 = vunpack.c.l.b16 %v917
      %v1612 = vunpack.c.h.b16 %v917
      %v1613 = vunpack.c.l.b16 %v918
      %v1614 = vunpack.c.h.b16 %v918
      %v1615 = vunpack.c.l.b16 %v919
      %v1616 = vunpack.c.h.b16 %v919
      %v1617 = vunpack.c.l.b16 %v920
      %v1618 = vunpack.c.l.b16 %v921
      %v1619 = vunpack.c.h.b16 %v921
      %v1620 = vunpack.c.l.b16 %v922
      %v1621 = vunpack.c.h.b16 %v922
      %v1622 = vunpack.c.l.b16 %v923
      %v1623 = vunpack.c.h.b16 %v923
      %v1624 = vunpack.c.l.b16 %v924
      %v1625 = vunpack.c.h.b16 %v924
      %v1626 = vunpack.c.l.b16 %v925
      %v1627 = vunpack.c.l.b16 %v926
      %v1628 = vunpack.c.h.b16 %v926
      %v1629 = vunpack.c.l.b16 %v927
      %v1630 = vunpack.c.h.b16 %v927
      %v1631 = vunpack.c.l.b16 %v928
      %v1632 = vunpack.c.h.b16 %v928
      %v1633 = vunpack.c.l.b16 %v929
      %v1634 = vunpack.c.h.b16 %v929
      %v1635 = vunpack.c.l.b16 %v930
      %v1636 = vunpack.c.l.b16 %v931
      %v1637 = vunpack.c.h.b16 %v931
      %v1638 = vunpack.c.l.b16 %v932
      %v1639 = vunpack.c.h.b16 %v932
      %v1640 = vunpack.c.l.b16 %v933
      %v1641 = vunpack.c.h.b16 %v933
      %v1642 = vunpack.c.l.b16 %v934
      %v1643 = vunpack.c.h.b16 %v934
      %v1644 = vunpack.c.l.b16 %v935
      %v1645 = vunpack.c.l.b16 %v936
      %v1646 = vunpack.c.h.b16 %v936
      %v1647 = vunpack.c.l.b16 %v937
      %v1648 = vunpack.c.h.b16 %v937
      %v1649 = vunpack.c.l.b16 %v938
      %v1650 = vunpack.c.h.b16 %v938
      %v1651 = vunpack.c.l.b16 %v939
      %v1652 = vunpack.c.h.b16 %v939
      %v1653 = vunpack.c.l.b16 %v940
      %v1654 = vunpack.c.l.b16 %v941
      %v1655 = vunpack.c.h.b16 %v941
      %v1656 = vunpack.c.l.b16 %v942
      %v1657 = vunpack.c.h.b16 %v942
      %v1658 = vunpack.c.l.b16 %v943
      %v1659 = vunpack.c.h.b16 %v943
      %v1660 = vunpack.c.l.b16 %v944
      %v1661 = vunpack.c.h.b16 %v944
      %v1662 = vunpack.c.l.b16 %v945
      %v1663 = vunpack.c.l.b16 %v946
      %v1664 = vunpack.c.h.b16 %v946
      %v1665 = vunpack.c.l.b16 %v947
      %v1666 = vunpack.c.h.b16 %v947
      %v1667 = vunpack.c.l.b16 %v948
      %v1668 = vunpack.c.h.b16 %v948
      %v1669 = vunpack.c.l.b16 %v949
      %v1670 = vunpack.c.h.b16 %v949
      %v1671 = vunpack.c.l.b16 %v950
      %v1672 = vpack.c.b16 %v1249, %v1240
      %v1673 = vpack.c.b16 %v1250, %v1241
      %v1674 = vpack.c.b16 %v1251, %v1242
      %v1675 = vpack.c.b16 %v1252, %v1243
      %v1676 = vpack.c.b16 %v1253, %v1244
      %v1677 = vpack.c.b16 %v1254, %v1245
      %v1678 = vpack.c.b16 %v1255, %v1246
      %v1679 = vpack.c.b16 %v1256, %v1247
      %v1680 = vpack.c.b16 %v1257, %v1248
      %v1681 = vpack.c.b16 %v1267, %v1258
      %v1682 = vpack.c.b16 %v1268, %v1259
      %v1683 = vpack.c.b16 %v1269, %v1260
      %v1684 = vpack.c.b16 %v1270, %v1261
      %v1685 = vpack.c.b16 %v1271, %v1262
      %v1686 = vpack.c.b16 %v1272, %v1263
      %v1687 = vpack.c.b16 %v1273, %v1264
      %v1688 = vpack.c.b16 %v1274, %v1265
      %v1689 = vpack.c.b16 %v1275, %v1266
      %v1690 = vpack.c.b16 %v1285, %v1276
      %v1691 = vpack.c.b16 %v1286, %v1277
      %v1692 = vpack.c.b16 %v1287, %v1278
      %v1693 = vpack.c.b16 %v1288, %v1279
      %v1694 = vpack.c.b16 %v1289, %v1280
      %v1695 = vpack.c.b16 %v1290, %v1281
      %v1696 = vpack.c.b16 %v1291, %v1282
      %v1697 = vpack.c.b16 %v1292, %v1283
      %v1698 = vpack.c.b16 %v1293, %v1284
      %v1699 = vpack.c.b16 %v1303, %v1294
      %v1700 = vpack.c.b16 %v1304, %v1295
      %v1701 = vpack.c.b16 %v1305, %v1296
      %v1702 = vpack.c.b16 %v1306, %v1297
      %v1703 = vpack.c.b16 %v1307, %v1298
      %v1704 = vpack.c.b16 %v1308, %v1299
      %v1705 = vpack.c.b16 %v1309, %v1300
      %v1706 = vpack.c.b16 %v1310, %v1301
      %v1707 = vpack.c.b16 %v1311, %v1302
      %v1708 = vpack.c.b16 %v1321, %v1312
      %v1709 = vpack.c.b16 %v1322, %v1313
      %v1710 = vpack.c.b16 %v1323, %v1314
      %v1711 = vpack.c.b16 %v1324, %v1315
      %v1712 = vpack.c.b16 %v1325, %v1316
      %v1713 = vpack.c.b16 %v1326, %v1317
      %v1714 = vpack.c.b16 %v1327, %v1318
      %v1715 = vpack.c.b16 %v1328, %v1319
      %v1716 = vpack.c.b16 %v1329, %v1320
      %v1717 = vpack.c.b16 %v1339, %v1330
      %v1718 = vpack.c.b16 %v1340, %v1331
      %v1719 = vpack.c.b16 %v1341, %v1332
      %v1720 = vpack.c.b16 %v1342, %v1333
      %v1721 = vpack.c.b16 %v1343, %v1334
      %v1722 = vpack.c.b16 %v1344, %v1335
      %v1723 = vpack.c.b16 %v1345, %v1336
      %v1724 = vpack.c.b16 %v1346, %v1337
      %v1725 = vpack.c.b16 %v1347, %v1338
      %v1726 = vpack.c.b16 %v1357, %v1348
      %v1727 = vpack.c.b16 %v1358, %v1349
      %v1728 = vpack.c.b16 %v1359, %v1350
      %v1729 = vpack.c.b16 %v1360, %v1351
      %v1730 = vpack.c.b16 %v1361, %v1352
      %v1731 = vpack.c.b16 %v1362, %v1353
      %v1732 = vpack.c.b16 %v1363, %v1354
      %v1733 = vpack.c.b16 %v1364, %v1355
      %v1734 = vpack.c.b16 %v1365, %v1356
      %v1735 = vpack.c.b16 %v1375, %v1366
      %v1736 = vpack.c.b16 %v1376, %v1367
      %v1737 = vpack.c.b16 %v1377, %v1368
      %v1738 = vpack.c.b16 %v1378, %v1369
      %v1739 = vpack.c.b16 %v1379, %v1370
      %v1740 = vpack.c.b16 %v1380, %v1371
      %v1741 = vpack.c.b16 %v1381, %v1372
      %v1742 = vpack.c.b16 %v1382, %v1373
      %v1743 = vpack.c.b16 %v1383, %v1374
      %v1744 = vpack.c.b16 %v1393, %v1384
      %v1745 = vpack.c.b16 %v1394, %v1385
      %v1746 = vpack.c.b16 %v1395, %v1386
      %v1747 = vpack.c.b16 %v1396, %v1387
      %v1748 = vpack.c.b16 %v1397, %v1388
      %v1749 = vpack.c.b16 %v1398, %v1389
      %v1750 = vpack.c.b16 %v1399, %v1390
      %v1751 = vpack.c.b16 %v1400, %v1391
      %v1752 = vpack.c.b16 %v1401, %v1392
      %v1753 = vpack.c.b16 %v1411, %v1402
      %v1754 = vpack.c.b16 %v1412, %v1403
      %v1755 = vpack.c.b16 %v1413, %v1404
      %v1756 = vpack.c.b16 %v1414, %v1405
      %v1757 = vpack.c.b16 %v1415, %v1406
      %v1758 = vpack.c.b16 %v1416, %v1407
      %v1759 = vpack.c.b16 %v1417, %v1408
      %v1760 = vpack.c.b16 %v1418, %v1409
      %v1761 = vpack.c.b16 %v1419, %v1410
      %v1762 = vpack.c.b16 %v1429, %v1420
      %v1763 = vpack.c.b16 %v1430, %v1421
      %v1764 = vpack.c.b16 %v1431, %v1422
      %v1765 = vpack.c.b16 %v1432, %v1423
      %v1766 = vpack.c.b16 %v1433, %v1424
      %v1767 = vpack.c.b16 %v1434, %v1425
      %v1768 = vpack.c.b16 %v1435, %v1426
      %v1769 = vpack.c.b16 %v1436, %v1427
      %v1770 = vpack.c.b16 %v1437, %v1428
      %v1771 = vpack.c.b16 %v1447, %v1438
      %v1772 = vpack.c.b16 %v1448, %v1439
      %v1773 = vpack.c.b16 %v1449, %v1440
      %v1774 = vpack.c.b16 %v1450, %v1441
      %v1775 = vpack.c.b16 %v1451, %v1442
      %v1776 = vpack.c.b16 %v1452, %v1443
      %v1777 = vpack.c.b16 %v1453, %v1444
      %v1778 = vpack.c.b16 %v1454, %v1445
      %v1779 = vpack.c.b16 %v1455, %v1446
      %v1780 = vpack.c.b16 %v1465, %v1456
      %v1781 = vpack.c.b16 %v1466, %v1457
      %v1782 = vpack.c.b16 %v1467, %v1458
      %v1783 = vpack.c.b16 %v1468, %v1459
      %v1784 = vpack.c.b16 %v1469, %v1460
      %v1785 = vpack.c.b16 %v1470, %v1461
      %v1786 = vpack.c.b16 %v1471, %v1462
      %v1787 = vpack.c.b16 %v1472, %v1463
      %v1788 = vpack.c.b16 %v1473, %v1464
      %v1789 = vpack.c.b16 %v1483, %v1474
      %v1790 = vpack.c.b16 %v1484, %v1475
      %v1791 = vpack.c.b16 %v1485, %v1476
      %v1792 = vpack.c.b16 %v1486, %v1477
      %v1793 = vpack.c.b16 %v1487, %v1478
      %v1794 = vpack.c.b16 %v1488, %v1479
      %v1795 = vpack.c.b16 %v1489, %v1480
      %v1796 = vpack.c.b16 %v1490, %v1481
      %v1797 = vpack.c.b16 %v1491, %v1482
      %v1798 = vpack.c.b16 %v1501, %v1492
      %v1799 = vpack.c.b16 %v1502, %v1493
      %v1800 = vpack.c.b16 %v1503, %v1494
      %v1801 = vpack.c.b16 %v1504, %v1495
      %v1802 = vpack.c.b16 %v1505, %v1496
      %v1803 = vpack.c.b16 %v1506, %v1497
      %v1804 = vpack.c.b16 %v1507, %v1498
      %v1805 = vpack.c.b16 %v1508, %v1499
      %v1806 = vpack.c.b16 %v1509, %v1500
      %v1807 = vpack.c.b16 %v1519, %v1510
      %v1808 = vpack.c.b16 %v1520, %v1511
      %v1809 = vpack.c.b16 %v1521, %v1512
      %v1810 = vpack.c.b16 %v1522, %v1513
      %v1811 = vpack.c.b16 %v1523, %v1514
      %v1812 = vpack.c.b16 %v1524, %v1515
      %v1813 = vpack.c.b16 %v1525, %v1516
      %v1814 = vpack.c.b16 %v1526, %v1517
      %v1815 = vpack.c.b16 %v1527, %v1518
      %v1816 = vpack.c.b16 %v1537, %v1528
      %v1817 = vpack.c.b16 %v1538, %v1529
      %v1818 = vpack.c.b16 %v1539, %v1530
      %v1819 = vpack.c.b16 %v1540, %v1531
      %v1820 = vpack.c.b16 %v1541, %v1532
      %v1821 = vpack.c.b16 %v1542, %v1533
      %v1822 = vpack.c.b16 %v1543, %v1534
      %v1823 = vpack.c.b16 %v1544, %v1535
      %v1824 = vpack.c.b16 %v1545, %v1536
      %v1825 = vpack.c.b16 %v1555, %v1546
      %v1826 = vpack.c.b16 %v1556, %v1547
      %v1827 = vpack.c.b16 %v1557, %v1548
      %v1828 = vpack.c.b16 %v1558, %v1549
      %v1829 = vpack.c.b16 %v1559, %v1550
      %v1830 = vpack.c.b16 %v1560, %v1551
      %v1831 = vpack.c.b16 %v1561, %v1552
      %v1832 = vpack.c.b16 %v1562, %v1553
      %v1833 = vpack.c.b16 %v1563, %v1554
      %v1834 = vpack.c.b16 %v1573, %v1564
      %v1835 = vpack.c.b16 %v1574, %v1565
      %v1836 = vpack.c.b16 %v1575, %v1566
      %v1837 = vpack.c.b16 %v1576, %v1567
      %v1838 = vpack.c.b16 %v1577, %v1568
      %v1839 = vpack.c.b16 %v1578, %v1569
      %v1840 = vpack.c.b16 %v1579, %v1570
      %v1841 = vpack.c.b16 %v1580, %v1571
      %v1842 = vpack.c.b16 %v1581, %v1572
      %v1843 = vpack.c.b16 %v1591, %v1582
      %v1844 = vpack.c.b16 %v1592, %v1583
      %v1845 = vpack.c.b16 %v1593, %v1584
      %v1846 = vpack.c.b16 %v1594, %v1585
      %v1847 = vpack.c.b16 %v1595, %v1586
      %v1848 = vpack.c.b16 %v1596, %v1587
      %v1849 = vpack.c.b16 %v1597, %v1588
      %v1850 = vpack.c.b16 %v1598, %v1589
      %v1851 = vpack.c.b16 %v1599, %v1590
      %v1852 = vpack.c.b16 %v1609, %v1600
      %v1853 = vpack.c.b16 %v1610, %v1601
      %v1854 = vpack.c.b16 %v1611, %v1602
      %v1855 = vpack.c.b16 %v1612, %v1603
      %v1856 = vpack.c.b16 %v1613, %v1604
      %v1857 = vpack.c.b16 %v1614, %v1605
      %v1858 = vpack.c.b16 %v1615, %v1606
      %v1859 = vpack.c.b16 %v1616, %v1607
      %v1860 = vpack.c.b16 %v1617, %v1608
      %v1861 = vpack.c.b16 %v1627, %v1618
      %v1862 = vpack.c.b16 %v1628, %v1619
      %v1863 = vpack.c.b16 %v1629, %v1620
      %v1864 = vpack.c.b16 %v1630, %v1621
      %v1865 = vpack.c.b16 %v1631, %v1622
      %v1866 = vpack.c.b16 %v1632, %v1623
      %v1867 = vpack.c.b16 %v1633, %v1624
      %v1868 = vpack.c.b16 %v1634, %v1625
      %v1869 = vpack.c.b16 %v1635, %v1626
      %v1870 = vpack.c.b16 %v1645, %v1636
      %v1871 = vpack.c.b16 %v1646, %v1637
      %v1872 = vpack.c.b16 %v1647, %v1638
      %v1873 = vpack.c.b16 %v1648, %v1639
      %v1874 = vpack.c.b16 %v1649, %v1640
      %v1875 = vpack.c.b16 %v1650, %v1641
      %v1876 = vpack.c.b16 %v1651, %v1642
      %v1877 = vpack.c.b16 %v1652, %v1643
      %v1878 = vpack.c.b16 %v1653, %v1644
      %v1879 = vpack.c.b16 %v1663, %v1654
      %v1880 = vpack.c.b16 %v1664, %v1655
      %v1881 = vpack.c.b16 %v1665, %v1656
      %v1882 = vpack.c.b16 %v1666, %v1657
      %v1883 = vpack.c.b16 %v1667, %v1658
      %v1884 = vpack.c.b16 %v1668, %v1659
      %v1885 = vpack.c.b16 %v1669, %v1660
      %v1886 = vpack.c.b16 %v1670, %v1661
      %v1887 = vpack.c.b16 %v1671, %v1662
      %2104 = vmatprep.subr.bf16.mxu0 %v1673
      %2105 = vmatpush1.bf16.msra.mxu0 %v1672
      %2106 = vmatprep.subr.bf16.mxu0 %v1682
      %2107 = vmatpush1.bf16.msra.mxu0 %v1681
      %2108 = vmatprep.subr.bf16.mxu0 %v1691
      %2109 = vmatpush1.bf16.msra.mxu0 %v1690
      %2110 = vmatprep.subr.bf16.mxu0 %v1700
      %2111 = vmatpush1.bf16.msra.mxu0 %v1699
      %2112 = vmatprep.subr.bf16.mxu0 %v1709
      %2113 = vmatpush1.bf16.msra.mxu0 %v1708
      %2114 = vmatprep.subr.bf16.mxu0 %v1718
      %2115 = vmatpush1.bf16.msra.mxu0 %v1717
      %2116 = vmatprep.subr.bf16.mxu0 %v1727
      %2117 = vmatpush1.bf16.msra.mxu0 %v1726
      %2118 = vmatprep.subr.bf16.mxu0 %v1736
      %2119 = vmatpush1.bf16.msra.mxu0 %v1735
      %2120 = vmatprep.subr.bf16.mxu0 %v1745
      %2121 = vmatpush1.bf16.msra.mxu0 %v1744
      %2122 = vmatprep.subr.bf16.mxu0 %v1754
      %2123 = vmatpush1.bf16.msra.mxu0 %v1753
      %2124 = vmatprep.subr.bf16.mxu0 %v1763
      %2125 = vmatpush1.bf16.msra.mxu0 %v1762
      %2126 = vmatprep.subr.bf16.mxu0 %v1772
      %2127 = vmatpush1.bf16.msra.mxu0 %v1771
      %2128 = vmatprep.subr.bf16.mxu0 %v1781
      %2129 = vmatpush1.bf16.msra.mxu0 %v1780
      %2130 = vmatprep.subr.bf16.mxu0 %v1790
      %2131 = vmatpush1.bf16.msra.mxu0 %v1789
      %2132 = vmatprep.subr.bf16.mxu0 %v1799
      %2133 = vmatpush1.bf16.msra.mxu0 %v1798
      %2134 = vmatprep.subr.bf16.mxu0 %v1808
      %2135 = vmatpush1.bf16.msra.mxu0 %v1807
      %2136 = vmatprep.mubr.bf16.mxu0 %v709
      %2137 = vmatmul.mubr.bf16.gmra.mrb[0].mxu0 %v708
      %v2138 = vpop.f32.mrb[0].mxu0
      %v2139 = vadd.f32 %v958, %v2138
      %v2140 = vpop.f32.mrb[0].mxu0
      %v2141 = vadd.f32 %v962, %v2140
      %v2142 = vpop.f32.mrb[0].mxu0
      %v2143 = vpop.f32.mrb[0].mxu0
      %2144 = vdwg.mxu0
      %2145 = vmatprep.subr.bf16.mxu0 %v1817
      %2146 = vmatpush1.bf16.msra.mxu0 %v1816
      %2147 = vmatprep.subr.bf16.mxu0 %v1826
      %2148 = vmatpush1.bf16.msra.mxu0 %v1825
      %2149 = vmatprep.subr.bf16.mxu0 %v1835
      %2150 = vmatpush1.bf16.msra.mxu0 %v1834
      %2151 = vmatprep.subr.bf16.mxu0 %v1844
      %2152 = vmatpush1.bf16.msra.mxu0 %v1843
      %2153 = vmatprep.subr.bf16.mxu0 %v1853
      %2154 = vmatpush1.bf16.msra.mxu0 %v1852
      %2155 = vmatprep.subr.bf16.mxu0 %v1862
      %2156 = vmatpush1.bf16.msra.mxu0 %v1861
      %2157 = vmatprep.subr.bf16.mxu0 %v1871
      %2158 = vmatpush1.bf16.msra.mxu0 %v1870
      %2159 = vmatprep.subr.bf16.mxu0 %v1880
      %2160 = vmatpush1.bf16.msra.mxu0 %v1879
      %2161 = vmatprep.subr.bf16.mxu0 0
      %2162 = vmatpush1.bf16.msra.mxu0 0
      %2163 = vmatprep.subr.bf16.mxu0 0
      %2164 = vmatpush1.bf16.msra.mxu0 0
      %2165 = vmatprep.subr.bf16.mxu0 0
      %2166 = vmatpush1.bf16.msra.mxu0 0
      %2167 = vmatprep.subr.bf16.mxu0 0
      %2168 = vmatpush1.bf16.msra.mxu0 0
      %2169 = vmatprep.subr.bf16.mxu0 0
      %2170 = vmatpush1.bf16.msra.mxu0 0
      %2171 = vmatprep.subr.bf16.mxu0 0
      %2172 = vmatpush1.bf16.msra.mxu0 0
      %2173 = vmatprep.subr.bf16.mxu0 0
      %2174 = vmatpush1.bf16.msra.mxu0 0
      %2175 = vmatprep.subr.bf16.mxu0 0
      %2176 = vmatpush1.bf16.msra.mxu0 0
      %2177 = vmatprep.mubr.bf16.mxu0 0
      %2178 = vmatmul.mubr.bf16.gmra.mrb[0].mxu0 %v710
      %v2179 = vpop.f32.mrb[0].mxu0
      %v2180 = vadd.f32 %v2139, %v2179
      %v2181 = vpop.f32.mrb[0].mxu0
      %v2182 = vadd.f32 %v2141, %v2181
      %v2183 = vpop.f32.mrb[0].mxu0
      %v2184 = vpop.f32.mrb[0].mxu0
      %2185 = vdwg.mxu0
      %2186 = vmatprep.subr.bf16.mxu0 %v1675
      %2187 = vmatpush1.bf16.msra.mxu0 %v1674
      %2188 = vmatprep.subr.bf16.mxu0 %v1684
      %2189 = vmatpush1.bf16.msra.mxu0 %v1683
      %2190 = vmatprep.subr.bf16.mxu0 %v1693
      %2191 = vmatpush1.bf16.msra.mxu0 %v1692
      %2192 = vmatprep.subr.bf16.mxu0 %v1702
      %2193 = vmatpush1.bf16.msra.mxu0 %v1701
      %2194 = vmatprep.subr.bf16.mxu0 %v1711
      %2195 = vmatpush1.bf16.msra.mxu0 %v1710
      %2196 = vmatprep.subr.bf16.mxu0 %v1720
      %2197 = vmatpush1.bf16.msra.mxu0 %v1719
      %2198 = vmatprep.subr.bf16.mxu0 %v1729
      %2199 = vmatpush1.bf16.msra.mxu0 %v1728
      %2200 = vmatprep.subr.bf16.mxu0 %v1738
      %2201 = vmatpush1.bf16.msra.mxu0 %v1737
      %2202 = vmatprep.subr.bf16.mxu0 %v1747
      %2203 = vmatpush1.bf16.msra.mxu0 %v1746
      %2204 = vmatprep.subr.bf16.mxu0 %v1756
      %2205 = vmatpush1.bf16.msra.mxu0 %v1755
      %2206 = vmatprep.subr.bf16.mxu0 %v1765
      %2207 = vmatpush1.bf16.msra.mxu0 %v1764
      %2208 = vmatprep.subr.bf16.mxu0 %v1774
      %2209 = vmatpush1.bf16.msra.mxu0 %v1773
      %2210 = vmatprep.subr.bf16.mxu0 %v1783
      %2211 = vmatpush1.bf16.msra.mxu0 %v1782
      %2212 = vmatprep.subr.bf16.mxu0 %v1792
      %2213 = vmatpush1.bf16.msra.mxu0 %v1791
      %2214 = vmatprep.subr.bf16.mxu0 %v1801
      %2215 = vmatpush1.bf16.msra.mxu0 %v1800
      %2216 = vmatprep.subr.bf16.mxu0 %v1810
      %2217 = vmatpush1.bf16.msra.mxu0 %v1809
      %2218 = vmatprep.mubr.bf16.mxu0 %v709
      %2219 = vmatmul.mubr.bf16.gmra.mrb[0].mxu0 %v708
      %v2220 = vpop.f32.mrb[0].mxu0
      %v2221 = vadd.f32 %v966, %v2220
      %v2222 = vpop.f32.mrb[0].mxu0
      %v2223 = vadd.f32 %v970, %v2222
      %v2224 = vpop.f32.mrb[0].mxu0
      %v2225 = vpop.f32.mrb[0].mxu0
      %2226 = vdwg.mxu0
      %2227 = vmatprep.subr.bf16.mxu0 %v1819
      %2228 = vmatpush1.bf16.msra.mxu0 %v1818
      %2229 = vmatprep.subr.bf16.mxu0 %v1828
      %2230 = vmatpush1.bf16.msra.mxu0 %v1827
      %2231 = vmatprep.subr.bf16.mxu0 %v1837
      %2232 = vmatpush1.bf16.msra.mxu0 %v1836
      %2233 = vmatprep.subr.bf16.mxu0 %v1846
      %2234 = vmatpush1.bf16.msra.mxu0 %v1845
      %2235 = vmatprep.subr.bf16.mxu0 %v1855
      %2236 = vmatpush1.bf16.msra.mxu0 %v1854
      %2237 = vmatprep.subr.bf16.mxu0 %v1864
      %2238 = vmatpush1.bf16.msra.mxu0 %v1863
      %2239 = vmatprep.subr.bf16.mxu0 %v1873
      %2240 = vmatpush1.bf16.msra.mxu0 %v1872
      %2241 = vmatprep.subr.bf16.mxu0 %v1882
      %2242 = vmatpush1.bf16.msra.mxu0 %v1881
      %2243 = vmatprep.subr.bf16.mxu0 0
      %2244 = vmatpush1.bf16.msra.mxu0 0
      %2245 = vmatprep.subr.bf16.mxu0 0
      %2246 = vmatpush1.bf16.msra.mxu0 0
      %2247 = vmatprep.subr.bf16.mxu0 0
      %2248 = vmatpush1.bf16.msra.mxu0 0
      %2249 = vmatprep.subr.bf16.mxu0 0
      %2250 = vmatpush1.bf16.msra.mxu0 0
      %2251 = vmatprep.subr.bf16.mxu0 0
      %2252 = vmatpush1.bf16.msra.mxu0 0
      %2253 = vmatprep.subr.bf16.mxu0 0
      %2254 = vmatpush1.bf16.msra.mxu0 0
      %2255 = vmatprep.subr.bf16.mxu0 0
      %2256 = vmatpush1.bf16.msra.mxu0 0
      %2257 = vmatprep.subr.bf16.mxu0 0
      %2258 = vmatpush1.bf16.msra.mxu0 0
      %2259 = vmatprep.mubr.bf16.mxu0 0
      %2260 = vmatmul.mubr.bf16.gmra.mrb[0].mxu0 %v710
      %v2261 = vpop.f32.mrb[0].mxu0
      %v2262 = vadd.f32 %v2221, %v2261
      %v2263 = vpop.f32.mrb[0].mxu0
      %v2264 = vadd.f32 %v2223, %v2263
      %v2265 = vpop.f32.mrb[0].mxu0
      %v2266 = vpop.f32.mrb[0].mxu0
      %2267 = vdwg.mxu0
      %2268 = vmatprep.subr.bf16.mxu0 %v1677
      %2269 = vmatpush1.bf16.msra.mxu0 %v1676
      %2270 = vmatprep.subr.bf16.mxu0 %v1686
      %2271 = vmatpush1.bf16.msra.mxu0 %v1685
      %2272 = vmatprep.subr.bf16.mxu0 %v1695
      %2273 = vmatpush1.bf16.msra.mxu0 %v1694
      %2274 = vmatprep.subr.bf16.mxu0 %v1704
      %2275 = vmatpush1.bf16.msra.mxu0 %v1703
      %2276 = vmatprep.subr.bf16.mxu0 %v1713
      %2277 = vmatpush1.bf16.msra.mxu0 %v1712
      %2278 = vmatprep.subr.bf16.mxu0 %v1722
      %2279 = vmatpush1.bf16.msra.mxu0 %v1721
      %2280 = vmatprep.subr.bf16.mxu0 %v1731
      %2281 = vmatpush1.bf16.msra.mxu0 %v1730
      %2282 = vmatprep.subr.bf16.mxu0 %v1740
      %2283 = vmatpush1.bf16.msra.mxu0 %v1739
      %2284 = vmatprep.subr.bf16.mxu0 %v1749
      %2285 = vmatpush1.bf16.msra.mxu0 %v1748
      %2286 = vmatprep.subr.bf16.mxu0 %v1758
      %2287 = vmatpush1.bf16.msra.mxu0 %v1757
      %2288 = vmatprep.subr.bf16.mxu0 %v1767
      %2289 = vmatpush1.bf16.msra.mxu0 %v1766
      %2290 = vmatprep.subr.bf16.mxu0 %v1776
      %2291 = vmatpush1.bf16.msra.mxu0 %v1775
      %2292 = vmatprep.subr.bf16.mxu0 %v1785
      %2293 = vmatpush1.bf16.msra.mxu0 %v1784
      %2294 = vmatprep.subr.bf16.mxu0 %v1794
      %2295 = vmatpush1.bf16.msra.mxu0 %v1793
      %2296 = vmatprep.subr.bf16.mxu0 %v1803
      %2297 = vmatpush1.bf16.msra.mxu0 %v1802
      %2298 = vmatprep.subr.bf16.mxu0 %v1812
      %2299 = vmatpush1.bf16.msra.mxu0 %v1811
      %2300 = vmatprep.mubr.bf16.mxu0 %v709
      %2301 = vmatmul.mubr.bf16.gmra.mrb[0].mxu0 %v708
      %v2302 = vpop.f32.mrb[0].mxu0
      %v2303 = vadd.f32 %v974, %v2302
      %v2304 = vpop.f32.mrb[0].mxu0
      %v2305 = vadd.f32 %v978, %v2304
      %v2306 = vpop.f32.mrb[0].mxu0
      %v2307 = vpop.f32.mrb[0].mxu0
      %2308 = vdwg.mxu0
      %2309 = vmatprep.subr.bf16.mxu0 %v1821
      %2310 = vmatpush1.bf16.msra.mxu0 %v1820
      %2311 = vmatprep.subr.bf16.mxu0 %v1830
      %2312 = vmatpush1.bf16.msra.mxu0 %v1829
      %2313 = vmatprep.subr.bf16.mxu0 %v1839
      %2314 = vmatpush1.bf16.msra.mxu0 %v1838
      %2315 = vmatprep.subr.bf16.mxu0 %v1848
      %2316 = vmatpush1.bf16.msra.mxu0 %v1847
      %2317 = vmatprep.subr.bf16.mxu0 %v1857
      %2318 = vmatpush1.bf16.msra.mxu0 %v1856
      %2319 = vmatprep.subr.bf16.mxu0 %v1866
      %2320 = vmatpush1.bf16.msra.mxu0 %v1865
      %2321 = vmatprep.subr.bf16.mxu0 %v1875
      %2322 = vmatpush1.bf16.msra.mxu0 %v1874
      %2323 = vmatprep.subr.bf16.mxu0 %v1884
      %2324 = vmatpush1.bf16.msra.mxu0 %v1883
      %2325 = vmatprep.subr.bf16.mxu0 0
      %2326 = vmatpush1.bf16.msra.mxu0 0
      %2327 = vmatprep.subr.bf16.mxu0 0
      %2328 = vmatpush1.bf16.msra.mxu0 0
      %2329 = vmatprep.subr.bf16.mxu0 0
      %2330 = vmatpush1.bf16.msra.mxu0 0
      %2331 = vmatprep.subr.bf16.mxu0 0
      %2332 = vmatpush1.bf16.msra.mxu0 0
      %2333 = vmatprep.subr.bf16.mxu0 0
      %2334 = vmatpush1.bf16.msra.mxu0 0
      %2335 = vmatprep.subr.bf16.mxu0 0
      %2336 = vmatpush1.bf16.msra.mxu0 0
      %2337 = vmatprep.subr.bf16.mxu0 0
      %2338 = vmatpush1.bf16.msra.mxu0 0
      %2339 = vmatprep.subr.bf16.mxu0 0
      %2340 = vmatpush1.bf16.msra.mxu0 0
      %2341 = vmatprep.mubr.bf16.mxu0 0
      %2342 = vmatmul.mubr.bf16.gmra.mrb[0].mxu0 %v710
      %v2343 = vpop.f32.mrb[0].mxu0
      %v2344 = vadd.f32 %v2303, %v2343
      %v2345 = vpop.f32.mrb[0].mxu0
      %v2346 = vadd.f32 %v2305, %v2345
      %v2347 = vpop.f32.mrb[0].mxu0
      %v2348 = vpop.f32.mrb[0].mxu0
      %2349 = vdwg.mxu0
      %2350 = vmatprep.subr.bf16.mxu0 %v1679
      %2351 = vmatpush1.bf16.msra.mxu0 %v1678
      %2352 = vmatprep.subr.bf16.mxu0 %v1688
      %2353 = vmatpush1.bf16.msra.mxu0 %v1687
      %2354 = vmatprep.subr.bf16.mxu0 %v1697
      %2355 = vmatpush1.bf16.msra.mxu0 %v1696
      %2356 = vmatprep.subr.bf16.mxu0 %v1706
      %2357 = vmatpush1.bf16.msra.mxu0 %v1705
      %2358 = vmatprep.subr.bf16.mxu0 %v1715
      %2359 = vmatpush1.bf16.msra.mxu0 %v1714
      %2360 = vmatprep.subr.bf16.mxu0 %v1724
      %2361 = vmatpush1.bf16.msra.mxu0 %v1723
      %2362 = vmatprep.subr.bf16.mxu0 %v1733
      %2363 = vmatpush1.bf16.msra.mxu0 %v1732
      %2364 = vmatprep.subr.bf16.mxu0 %v1742
      %2365 = vmatpush1.bf16.msra.mxu0 %v1741
      %2366 = vmatprep.subr.bf16.mxu0 %v1751
      %2367 = vmatpush1.bf16.msra.mxu0 %v1750
      %2368 = vmatprep.subr.bf16.mxu0 %v1760
      %2369 = vmatpush1.bf16.msra.mxu0 %v1759
      %2370 = vmatprep.subr.bf16.mxu0 %v1769
      %2371 = vmatpush1.bf16.msra.mxu0 %v1768
      %2372 = vmatprep.subr.bf16.mxu0 %v1778
      %2373 = vmatpush1.bf16.msra.mxu0 %v1777
      %2374 = vmatprep.subr.bf16.mxu0 %v1787
      %2375 = vmatpush1.bf16.msra.mxu0 %v1786
      %2376 = vmatprep.subr.bf16.mxu0 %v1796
      %2377 = vmatpush1.bf16.msra.mxu0 %v1795
      %2378 = vmatprep.subr.bf16.mxu0 %v1805
      %2379 = vmatpush1.bf16.msra.mxu0 %v1804
      %2380 = vmatprep.subr.bf16.mxu0 %v1814
      %2381 = vmatpush1.bf16.msra.mxu0 %v1813
      %2382 = vmatprep.mubr.bf16.mxu0 %v709
      %2383 = vmatmul.mubr.bf16.gmra.mrb[0].mxu0 %v708
      %v2384 = vpop.f32.mrb[0].mxu0
      %v2385 = vadd.f32 %v982, %v2384
      %v2386 = vpop.f32.mrb[0].mxu0
      %v2387 = vadd.f32 %v986, %v2386
      %v2388 = vpop.f32.mrb[0].mxu0
      %v2389 = vpop.f32.mrb[0].mxu0
      %2390 = vdwg.mxu0
      %2391 = vmatprep.subr.bf16.mxu0 %v1823
      %2392 = vmatpush1.bf16.msra.mxu0 %v1822
      %2393 = vmatprep.subr.bf16.mxu0 %v1832
      %2394 = vmatpush1.bf16.msra.mxu0 %v1831
      %2395 = vmatprep.subr.bf16.mxu0 %v1841
      %2396 = vmatpush1.bf16.msra.mxu0 %v1840
      %2397 = vmatprep.subr.bf16.mxu0 %v1850
      %2398 = vmatpush1.bf16.msra.mxu0 %v1849
      %2399 = vmatprep.subr.bf16.mxu0 %v1859
      %2400 = vmatpush1.bf16.msra.mxu0 %v1858
      %2401 = vmatprep.subr.bf16.mxu0 %v1868
      %2402 = vmatpush1.bf16.msra.mxu0 %v1867
      %2403 = vmatprep.subr.bf16.mxu0 %v1877
      %2404 = vmatpush1.bf16.msra.mxu0 %v1876
      %2405 = vmatprep.subr.bf16.mxu0 %v1886
      %2406 = vmatpush1.bf16.msra.mxu0 %v1885
      %2407 = vmatprep.subr.bf16.mxu0 0
      %2408 = vmatpush1.bf16.msra.mxu0 0
      %2409 = vmatprep.subr.bf16.mxu0 0
      %2410 = vmatpush1.bf16.msra.mxu0 0
      %2411 = vmatprep.subr.bf16.mxu0 0
      %2412 = vmatpush1.bf16.msra.mxu0 0
      %2413 = vmatprep.subr.bf16.mxu0 0
      %2414 = vmatpush1.bf16.msra.mxu0 0
      %2415 = vmatprep.subr.bf16.mxu0 0
      %2416 = vmatpush1.bf16.msra.mxu0 0
      %2417 = vmatprep.subr.bf16.mxu0 0
      %2418 = vmatpush1.bf16.msra.mxu0 0
      %2419 = vmatprep.subr.bf16.mxu0 0
      %2420 = vmatpush1.bf16.msra.mxu0 0
      %2421 = vmatprep.subr.bf16.mxu0 0
      %2422 = vmatpush1.bf16.msra.mxu0 0
      %2423 = vmatprep.mubr.bf16.mxu0 0
      %2424 = vmatmul.mubr.bf16.gmra.mrb[0].mxu0 %v710
      %v2425 = vpop.f32.mrb[0].mxu0
      %v2426 = vadd.f32 %v2385, %v2425
      %v2427 = vpop.f32.mrb[0].mxu0
      %v2428 = vadd.f32 %v2387, %v2427
      %v2429 = vpop.f32.mrb[0].mxu0
      %v2430 = vpop.f32.mrb[0].mxu0
      %2431 = vdwg.mxu0
      %2432 = vmatprep.subr.bf16.mxu0 0
      %2433 = vmatpush1.bf16.msra.mxu0 %v1680
      %2434 = vmatprep.subr.bf16.mxu0 0
      %2435 = vmatpush1.bf16.msra.mxu0 %v1689
      %2436 = vmatprep.subr.bf16.mxu0 0
      %2437 = vmatpush1.bf16.msra.mxu0 %v1698
      %2438 = vmatprep.subr.bf16.mxu0 0
      %2439 = vmatpush1.bf16.msra.mxu0 %v1707
      %2440 = vmatprep.subr.bf16.mxu0 0
      %2441 = vmatpush1.bf16.msra.mxu0 %v1716
      %2442 = vmatprep.subr.bf16.mxu0 0
      %2443 = vmatpush1.bf16.msra.mxu0 %v1725
      %2444 = vmatprep.subr.bf16.mxu0 0
      %2445 = vmatpush1.bf16.msra.mxu0 %v1734
      %2446 = vmatprep.subr.bf16.mxu0 0
      %2447 = vmatpush1.bf16.msra.mxu0 %v1743
      %2448 = vmatprep.subr.bf16.mxu0 0
      %2449 = vmatpush1.bf16.msra.mxu0 %v1752
      %2450 = vmatprep.subr.bf16.mxu0 0
      %2451 = vmatpush1.bf16.msra.mxu0 %v1761
      %2452 = vmatprep.subr.bf16.mxu0 0
      %2453 = vmatpush1.bf16.msra.mxu0 %v1770
      %2454 = vmatprep.subr.bf16.mxu0 0
      %2455 = vmatpush1.bf16.msra.mxu0 %v1779
      %2456 = vmatprep.subr.bf16.mxu0 0
      %2457 = vmatpush1.bf16.msra.mxu0 %v1788
      %2458 = vmatprep.subr.bf16.mxu0 0
      %2459 = vmatpush1.bf16.msra.mxu0 %v1797
      %2460 = vmatprep.subr.bf16.mxu0 0
      %2461 = vmatpush1.bf16.msra.mxu0 %v1806
      %2462 = vmatprep.subr.bf16.mxu0 0
      %2463 = vmatpush1.bf16.msra.mxu0 %v1815
      %2464 = vmatprep.mubr.bf16.mxu0 %v709
      %2465 = vmatmul.mubr.bf16.gmra.mrb[0].mxu0 %v708
      %v2466 = vpop.f32.mrb[0].mxu0
      %v2467 = vadd.f32 %v990, %v2466
      %v2468 = vpop.f32.mrb[0].mxu0
      %v2469 = vpop.f32.mrb[0].mxu0
      %v2470 = vpop.f32.mrb[0].mxu0
      %2471 = vdwg.mxu0
      %2472 = vmatprep.subr.bf16.mxu0 0
      %2473 = vmatpush1.bf16.msra.mxu0 %v1824
      %2474 = vmatprep.subr.bf16.mxu0 0
      %2475 = vmatpush1.bf16.msra.mxu0 %v1833
      %2476 = vmatprep.subr.bf16.mxu0 0
      %2477 = vmatpush1.bf16.msra.mxu0 %v1842
      %2478 = vmatprep.subr.bf16.mxu0 0
      %2479 = vmatpush1.bf16.msra.mxu0 %v1851
      %2480 = vmatprep.subr.bf16.mxu0 0
      %2481 = vmatpush1.bf16.msra.mxu0 %v1860
      %2482 = vmatprep.subr.bf16.mxu0 0
      %2483 = vmatpush1.bf16.msra.mxu0 %v1869
      %2484 = vmatprep.subr.bf16.mxu0 0
      %2485 = vmatpush1.bf16.msra.mxu0 %v1878
      %2486 = vmatprep.subr.bf16.mxu0 0
      %2487 = vmatpush1.bf16.msra.mxu0 %v1887
      %2488 = vmatprep.subr.bf16.mxu0 0
      %2489 = vmatpush1.bf16.msra.mxu0 0
      %2490 = vmatprep.subr.bf16.mxu0 0
      %2491 = vmatpush1.bf16.msra.mxu0 0
      %2492 = vmatprep.subr.bf16.mxu0 0
      %2493 = vmatpush1.bf16.msra.mxu0 0
      %2494 = vmatprep.subr.bf16.mxu0 0
      %2495 = vmatpush1.bf16.msra.mxu0 0
      %2496 = vmatprep.subr.bf16.mxu0 0
      %2497 = vmatpush1.bf16.msra.mxu0 0
      %2498 = vmatprep.subr.bf16.mxu0 0
      %2499 = vmatpush1.bf16.msra.mxu0 0
      %2500 = vmatprep.subr.bf16.mxu0 0
      %2501 = vmatpush1.bf16.msra.mxu0 0
      %2502 = vmatprep.subr.bf16.mxu0 0
      %2503 = vmatpush1.bf16.msra.mxu0 0
      %2504 = vmatprep.mubr.bf16.mxu0 0
      %2505 = vmatmul.mubr.bf16.gmra.mrb[0].mxu0 %v710
      %v2506 = vpop.f32.mrb[0].mxu0
      %v2507 = vadd.f32 %v2467, %v2506
      %v2508 = vpop.f32.mrb[0].mxu0
      %v2509 = vpop.f32.mrb[0].mxu0
      %v2510 = vpop.f32.mrb[0].mxu0
      %2511 = vdwg.mxu0
      %v2512 = vpack.c.bf16 %v2180, %v2180
      %v2513 = vpack.c.bf16 %v2182, %v2182
      %v2514 = vpack.c.bf16 %v2262, %v2262
      %v2515 = vpack.c.bf16 %v2264, %v2264
      %v2516 = vpack.c.bf16 %v2344, %v2344
      %v2517 = vpack.c.bf16 %v2346, %v2346
      %v2518 = vpack.c.bf16 %v2426, %v2426
      %v2519 = vpack.c.bf16 %v2428, %v2428
      %v2520 = vpack.c.bf16 %v2507, %v2507
      %2521 = vmatprep.subr.bf16.mxu0 0
      %2522 = vmatpush1.bf16.xpose.msra.mxu0 %v2515
      %2523 = vmatprep.subr.bf16.mxu0 0
      %2524 = vmatpush1.bf16.xpose.msra.mxu0 0
      %2525 = vmatprep.subr.bf16.mxu0 0
      %2526 = vmatpush1.bf16.xpose.msra.mxu0 0
      %2527 = vmatprep.subr.bf16.mxu0 0
      %2528 = vmatpush1.bf16.xpose.msra.mxu0 0
      %2529 = vmatprep.subr.bf16.mxu0 0
      %2530 = vmatpush1.bf16.xpose.msra.mxu0 0
      %2531 = vmatprep.subr.bf16.mxu0 0
      %2532 = vmatpush1.bf16.xpose.msra.mxu0 0
      %2533 = vmatprep.subr.bf16.mxu0 0
      %2534 = vmatpush1.bf16.xpose.msra.mxu0 0
      %2535 = vmatprep.subr.bf16.mxu0 0
      %2536 = vmatpush1.bf16.xpose.msra.mxu0 0
      %2537 = vmatprep.subr.bf16.mxu0 0
      %2538 = vmatpush1.bf16.xpose.msra.mxu0 0
      %2539 = vmatprep.subr.bf16.mxu0 0
      %2540 = vmatpush1.bf16.xpose.msra.mxu0 0
      %2541 = vmatprep.subr.bf16.mxu0 0
      %2542 = vmatpush1.bf16.xpose.msra.mxu0 0
      %2543 = vmatprep.subr.bf16.mxu0 0
      %2544 = vmatpush1.bf16.xpose.msra.mxu0 0
      %2545 = vmatprep.subr.bf16.mxu0 0
      %2546 = vmatpush1.bf16.xpose.msra.mxu0 0
      %2547 = vmatprep.subr.bf16.mxu0 0
      %2548 = vmatpush1.bf16.xpose.msra.mxu0 0
      %2549 = vmatprep.subr.bf16.mxu0 0
      %2550 = vmatpush1.bf16.xpose.msra.mxu0 0
      %2551 = vmatprep.subr.bf16.mxu0 0
      %2552 = vmatpush1.bf16.xpose.msra.mxu0 0
      %2553 = vmatprep.mubr.bf16.mxu0 0
      %2554 = vmatmul.mubr.bf16.gmra.mrb[0].mxu0 %v2512
      %v2555 = vpop.f32.mrb[0].mxu0
      %v2556 = vadd.f32 %v707, %v2555
      %v2557 = vpop.f32.mrb[0].mxu0
      %v2558 = vpop.f32.mrb[0].mxu0
      %v2559 = vpop.f32.mrb[0].mxu0
      %2560 = vdwg.mxu0
      %vm2561 = vcmask 64512
      %v2562 = vsel %vm2561, %v2556, -inf
      %2563 = vmax.xlane.f32.xlu0 %v2562
      %v2564 = vpop.xlane.xlu0 %2563
      %v2565 = vsub.f32 %v2556, %v2564
      %v2566 = vmul.f32 %v2565, 1.442695
      %v2567 = vpow.pop %v2566
      %v2568 = vsel %vm2561, %v2567, 0.0
      %2569 = vadd.xlane.f32.xlu0 %v2568
      %v2570 = vpop.xlane.xlu0 %2569
      %v2571 = vrcp.pop %v2570
      %v2572 = vmul.f32 %v2567, %v2571
      %v2573 = vpack.c.bf16 %v2572, %v2572
      %v2575 = vsel %vm2561, %v2573, 0
      %vm2577 = vcmask 1043456
      %v2579 = vsel %vm2577, %v2518, 0
      %2581 = vmatprep.subr.bf16.mxu0 0
      %2582 = vmatpush1.bf16.msra.mxu0 %v2579
      %2583 = vmatprep.subr.bf16.mxu0 0
      %2584 = vmatpush1.bf16.msra.mxu0 0
      %2585 = vmatprep.subr.bf16.mxu0 0
      %2586 = vmatpush1.bf16.msra.mxu0 0
      %2587 = vmatprep.subr.bf16.mxu0 0
      %2588 = vmatpush1.bf16.msra.mxu0 0
      %2589 = vmatprep.subr.bf16.mxu0 0
      %2590 = vmatpush1.bf16.msra.mxu0 0
      %2591 = vmatprep.subr.bf16.mxu0 0
      %2592 = vmatpush1.bf16.msra.mxu0 0
      %2593 = vmatprep.subr.bf16.mxu0 0
      %2594 = vmatpush1.bf16.msra.mxu0 0
      %2595 = vmatprep.subr.bf16.mxu0 0
      %2596 = vmatpush1.bf16.msra.mxu0 0
      %2597 = vmatprep.subr.bf16.mxu0 0
      %2598 = vmatpush1.bf16.msra.mxu0 0
      %2599 = vmatprep.subr.bf16.mxu0 0
      %2600 = vmatpush1.bf16.msra.mxu0 0
      %2601 = vmatprep.subr.bf16.mxu0 0
      %2602 = vmatpush1.bf16.msra.mxu0 0
      %2603 = vmatprep.subr.bf16.mxu0 0
      %2604 = vmatpush1.bf16.msra.mxu0 0
      %2605 = vmatprep.subr.bf16.mxu0 0
      %2606 = vmatpush1.bf16.msra.mxu0 0
      %2607 = vmatprep.subr.bf16.mxu0 0
      %2608 = vmatpush1.bf16.msra.mxu0 0
      %2609 = vmatprep.subr.bf16.mxu0 0
      %2610 = vmatpush1.bf16.msra.mxu0 0
      %2611 = vmatprep.subr.bf16.mxu0 0
      %2612 = vmatpush1.bf16.msra.mxu0 0
      %2613 = vmatprep.mubr.bf16.mxu0 0
      %2614 = vmatmul.mubr.bf16.gmra.mrb[0].mxu0 %v2575
      %v2615 = vpop.f32.mrb[0].mxu0
      %v2616 = vadd.f32 0.0, %v2615
      %v2617 = vpop.f32.mrb[0].mxu0
      %v2618 = vpop.f32.mrb[0].mxu0
      %v2619 = vpop.f32.mrb[0].mxu0
      %2620 = vdwg.mxu0
      %2621 = vmatprep.subr.bf16.mxu0 0
      %2622 = vmatpush1.bf16.xpose.msra.mxu0 %v2516
      %2623 = vmatprep.subr.bf16.mxu0 0
      %2624 = vmatpush1.bf16.xpose.msra.mxu0 0
      %2625 = vmatprep.subr.bf16.mxu0 0
      %2626 = vmatpush1.bf16.xpose.msra.mxu0 0
      %2627 = vmatprep.subr.bf16.mxu0 0
      %2628 = vmatpush1.bf16.xpose.msra.mxu0 0
      %2629 = vmatprep.subr.bf16.mxu0 0
      %2630 = vmatpush1.bf16.xpose.msra.mxu0 0
      %2631 = vmatprep.subr.bf16.mxu0 0
      %2632 = vmatpush1.bf16.xpose.msra.mxu0 0
      %2633 = vmatprep.subr.bf16.mxu0 0
      %2634 = vmatpush1.bf16.xpose.msra.mxu0 0
      %2635 = vmatprep.subr.bf16.mxu0 0
      %2636 = vmatpush1.bf16.xpose.msra.mxu0 0
      %2637 = vmatprep.subr.bf16.mxu0 0
      %2638 = vmatpush1.bf16.xpose.msra.mxu0 0
      %2639 = vmatprep.subr.bf16.mxu0 0
      %2640 = vmatpush1.bf16.xpose.msra.mxu0 0
      %2641 = vmatprep.subr.bf16.mxu0 0
      %2642 = vmatpush1.bf16.xpose.msra.mxu0 0
      %2643 = vmatprep.subr.bf16.mxu0 0
      %2644 = vmatpush1.bf16.xpose.msra.mxu0 0
      %2645 = vmatprep.subr.bf16.mxu0 0
      %2646 = vmatpush1.bf16.xpose.msra.mxu0 0
      %2647 = vmatprep.subr.bf16.mxu0 0
      %2648 = vmatpush1.bf16.xpose.msra.mxu0 0
      %2649 = vmatprep.subr.bf16.mxu0 0
      %2650 = vmatpush1.bf16.xpose.msra.mxu0 0
      %2651 = vmatprep.subr.bf16.mxu0 0
      %2652 = vmatpush1.bf16.xpose.msra.mxu0 0
      %2653 = vmatprep.mubr.bf16.mxu0 0
      %2654 = vmatmul.mubr.bf16.gmra.mrb[0].mxu0 %v2513
      %v2655 = vpop.f32.mrb[0].mxu0
      %v2656 = vadd.f32 %v707, %v2655
      %v2657 = vpop.f32.mrb[0].mxu0
      %v2658 = vpop.f32.mrb[0].mxu0
      %v2659 = vpop.f32.mrb[0].mxu0
      %2660 = vdwg.mxu0
      %v2661 = vsel %vm2561, %v2656, -inf
      %2662 = vmax.xlane.f32.xlu0 %v2661
      %v2663 = vpop.xlane.xlu0 %2662
      %v2664 = vsub.f32 %v2656, %v2663
      %v2665 = vmul.f32 %v2664, 1.442695
      %v2666 = vpow.pop %v2665
      %v2667 = vsel %vm2561, %v2666, 0.0
      %2668 = vadd.xlane.f32.xlu0 %v2667
      %v2669 = vpop.xlane.xlu0 %2668
      %v2670 = vrcp.pop %v2669
      %v2671 = vmul.f32 %v2666, %v2670
      %v2672 = vpack.c.bf16 %v2671, %v2671
      %v2674 = vsel %vm2561, %v2672, 0
      %v2677 = vsel %vm2577, %v2519, 0
      %2679 = vmatprep.subr.bf16.mxu0 0
      %2680 = vmatpush1.bf16.msra.mxu0 %v2677
      %2681 = vmatprep.subr.bf16.mxu0 0
      %2682 = vmatpush1.bf16.msra.mxu0 0
      %2683 = vmatprep.subr.bf16.mxu0 0
      %2684 = vmatpush1.bf16.msra.mxu0 0
      %2685 = vmatprep.subr.bf16.mxu0 0
      %2686 = vmatpush1.bf16.msra.mxu0 0
      %2687 = vmatprep.subr.bf16.mxu0 0
      %2688 = vmatpush1.bf16.msra.mxu0 0
      %2689 = vmatprep.subr.bf16.mxu0 0
      %2690 = vmatpush1.bf16.msra.mxu0 0
      %2691 = vmatprep.subr.bf16.mxu0 0
      %2692 = vmatpush1.bf16.msra.mxu0 0
      %2693 = vmatprep.subr.bf16.mxu0 0
      %2694 = vmatpush1.bf16.msra.mxu0 0
      %2695 = vmatprep.subr.bf16.mxu0 0
      %2696 = vmatpush1.bf16.msra.mxu0 0
      %2697 = vmatprep.subr.bf16.mxu0 0
      %2698 = vmatpush1.bf16.msra.mxu0 0
      %2699 = vmatprep.subr.bf16.mxu0 0
      %2700 = vmatpush1.bf16.msra.mxu0 0
      %2701 = vmatprep.subr.bf16.mxu0 0
      %2702 = vmatpush1.bf16.msra.mxu0 0
      %2703 = vmatprep.subr.bf16.mxu0 0
      %2704 = vmatpush1.bf16.msra.mxu0 0
      %2705 = vmatprep.subr.bf16.mxu0 0
      %2706 = vmatpush1.bf16.msra.mxu0 0
      %2707 = vmatprep.subr.bf16.mxu0 0
      %2708 = vmatpush1.bf16.msra.mxu0 0
      %2709 = vmatprep.subr.bf16.mxu0 0
      %2710 = vmatpush1.bf16.msra.mxu0 0
      %2711 = vmatprep.mubr.bf16.mxu0 0
      %2712 = vmatmul.mubr.bf16.gmra.mrb[0].mxu0 %v2674
      %v2713 = vpop.f32.mrb[0].mxu0
      %v2714 = vadd.f32 0.0, %v2713
      %v2715 = vpop.f32.mrb[0].mxu0
      %v2716 = vpop.f32.mrb[0].mxu0
      %v2717 = vpop.f32.mrb[0].mxu0
      %2718 = vdwg.mxu0
      %2719 = vmatprep.subr.bf16.mxu0 0
      %2720 = vmatpush1.bf16.xpose.msra.mxu0 %v2517
      %2721 = vmatprep.subr.bf16.mxu0 0
      %2722 = vmatpush1.bf16.xpose.msra.mxu0 0
      %2723 = vmatprep.subr.bf16.mxu0 0
      %2724 = vmatpush1.bf16.xpose.msra.mxu0 0
      %2725 = vmatprep.subr.bf16.mxu0 0
      %2726 = vmatpush1.bf16.xpose.msra.mxu0 0
      %2727 = vmatprep.subr.bf16.mxu0 0
      %2728 = vmatpush1.bf16.xpose.msra.mxu0 0
      %2729 = vmatprep.subr.bf16.mxu0 0
      %2730 = vmatpush1.bf16.xpose.msra.mxu0 0
      %2731 = vmatprep.subr.bf16.mxu0 0
      %2732 = vmatpush1.bf16.xpose.msra.mxu0 0
      %2733 = vmatprep.subr.bf16.mxu0 0
      %2734 = vmatpush1.bf16.xpose.msra.mxu0 0
      %2735 = vmatprep.subr.bf16.mxu0 0
      %2736 = vmatpush1.bf16.xpose.msra.mxu0 0
      %2737 = vmatprep.subr.bf16.mxu0 0
      %2738 = vmatpush1.bf16.xpose.msra.mxu0 0
      %2739 = vmatprep.subr.bf16.mxu0 0
      %2740 = vmatpush1.bf16.xpose.msra.mxu0 0
      %2741 = vmatprep.subr.bf16.mxu0 0
      %2742 = vmatpush1.bf16.xpose.msra.mxu0 0
      %2743 = vmatprep.subr.bf16.mxu0 0
      %2744 = vmatpush1.bf16.xpose.msra.mxu0 0
      %2745 = vmatprep.subr.bf16.mxu0 0
      %2746 = vmatpush1.bf16.xpose.msra.mxu0 0
      %2747 = vmatprep.subr.bf16.mxu0 0
      %2748 = vmatpush1.bf16.xpose.msra.mxu0 0
      %2749 = vmatprep.subr.bf16.mxu0 0
      %2750 = vmatpush1.bf16.xpose.msra.mxu0 0
      %2751 = vmatprep.mubr.bf16.mxu0 0
      %2752 = vmatmul.mubr.bf16.gmra.mrb[0].mxu0 %v2514
      %v2753 = vpop.f32.mrb[0].mxu0
      %v2754 = vadd.f32 %v707, %v2753
      %v2755 = vpop.f32.mrb[0].mxu0
      %v2756 = vpop.f32.mrb[0].mxu0
      %v2757 = vpop.f32.mrb[0].mxu0
      %2758 = vdwg.mxu0
      %v2759 = vsel %vm2561, %v2754, -inf
      %2760 = vmax.xlane.f32.xlu0 %v2759
      %v2761 = vpop.xlane.xlu0 %2760
      %v2762 = vsub.f32 %v2754, %v2761
      %v2763 = vmul.f32 %v2762, 1.442695
      %v2764 = vpow.pop %v2763
      %v2765 = vsel %vm2561, %v2764, 0.0
      %2766 = vadd.xlane.f32.xlu0 %v2765
      %v2767 = vpop.xlane.xlu0 %2766
      %v2768 = vrcp.pop %v2767
      %v2769 = vmul.f32 %v2764, %v2768
      %v2770 = vpack.c.bf16 %v2769, %v2769
      %v2772 = vsel %vm2561, %v2770, 0
      %v2775 = vsel %vm2577, %v2520, 0
      %2777 = vmatprep.subr.bf16.mxu0 0
      %2778 = vmatpush1.bf16.msra.mxu0 %v2775
      %2779 = vmatprep.subr.bf16.mxu0 0
      %2780 = vmatpush1.bf16.msra.mxu0 0
      %2781 = vmatprep.subr.bf16.mxu0 0
      %2782 = vmatpush1.bf16.msra.mxu0 0
      %2783 = vmatprep.subr.bf16.mxu0 0
      %2784 = vmatpush1.bf16.msra.mxu0 0
      %2785 = vmatprep.subr.bf16.mxu0 0
      %2786 = vmatpush1.bf16.msra.mxu0 0
      %2787 = vmatprep.subr.bf16.mxu0 0
      %2788 = vmatpush1.bf16.msra.mxu0 0
      %2789 = vmatprep.subr.bf16.mxu0 0
      %2790 = vmatpush1.bf16.msra.mxu0 0
      %2791 = vmatprep.subr.bf16.mxu0 0
      %2792 = vmatpush1.bf16.msra.mxu0 0
      %2793 = vmatprep.subr.bf16.mxu0 0
      %2794 = vmatpush1.bf16.msra.mxu0 0
      %2795 = vmatprep.subr.bf16.mxu0 0
      %2796 = vmatpush1.bf16.msra.mxu0 0
      %2797 = vmatprep.subr.bf16.mxu0 0
      %2798 = vmatpush1.bf16.msra.mxu0 0
      %2799 = vmatprep.subr.bf16.mxu0 0
      %2800 = vmatpush1.bf16.msra.mxu0 0
      %2801 = vmatprep.subr.bf16.mxu0 0
      %2802 = vmatpush1.bf16.msra.mxu0 0
      %2803 = vmatprep.subr.bf16.mxu0 0
      %2804 = vmatpush1.bf16.msra.mxu0 0
      %2805 = vmatprep.subr.bf16.mxu0 0
      %2806 = vmatpush1.bf16.msra.mxu0 0
      %2807 = vmatprep.subr.bf16.mxu0 0
      %2808 = vmatpush1.bf16.msra.mxu0 0
      %2809 = vmatprep.mubr.bf16.mxu0 0
      %2810 = vmatmul.mubr.bf16.gmra.mrb[0].mxu0 %v2772
      %v2811 = vpop.f32.mrb[0].mxu0
      %v2812 = vadd.f32 0.0, %v2811
      %v2813 = vpop.f32.mrb[0].mxu0
      %v2814 = vpop.f32.mrb[0].mxu0
      %v2815 = vpop.f32.mrb[0].mxu0
      %2816 = vdwg.mxu0
      %v2817 = vpack.c.bf16 %v2616, %v2616
      %v2818 = vpack.c.bf16 %v2714, %v2714
      %v2819 = vpack.c.bf16 %v2812, %v2812
      %v2820 = vld [vmem:[%s650] sm:$0xff]
      %v2821 = vld [vmem:[%s650 + $0x8] sm:$0xf]
      %v2822 = vld [vmem:[%s650 + $0xc] sm:$0xff]
      %v2823 = vld [vmem:[%s650 + $0x14] sm:$0xf]
      %v2824 = vld [vmem:[%s650 + $0x18] sm:$0xff]
      %v2825 = vld [vmem:[%s650 + $0x20] sm:$0xf]
      %v2826 = vld [vmem:[%s650 + $0x24] sm:$0xff]
      %v2827 = vld [vmem:[%s650 + $0x2c] sm:$0xf]
      %v2828 = vld [vmem:[%s650 + $0x30] sm:$0xff]
      %v2829 = vld [vmem:[%s650 + $0x38] sm:$0xf]
      %v2830 = vld [vmem:[%s650 + $0x3c] sm:$0xff]
      %v2831 = vld [vmem:[%s650 + $0x44] sm:$0xf]
      %v2832 = vld [vmem:[%s650 + $0x48] sm:$0xff]
      %v2833 = vld [vmem:[%s650 + $0x50] sm:$0xf]
      %v2834 = vld [vmem:[%s650 + $0x54] sm:$0xff]
      %v2835 = vld [vmem:[%s650 + $0x5c] sm:$0xf]
      %v2836 = vld [vmem:[%s650 + $0x60] sm:$0xff]
      %v2837 = vld [vmem:[%s650 + $0x68] sm:$0xf]
      %v2838 = vld [vmem:[%s650 + $0x6c] sm:$0xff]
      %v2839 = vld [vmem:[%s650 + $0x74] sm:$0xf]
      %v2840 = vld [vmem:[%s650 + $0x78] sm:$0xff]
      %v2841 = vld [vmem:[%s650 + $0x80] sm:$0xf]
      %v2842 = vld [vmem:[%s650 + $0x84] sm:$0xff]
      %v2843 = vld [vmem:[%s650 + $0x8c] sm:$0xf]
      %v2844 = vld [vmem:[%s650 + $0x90] sm:$0xff]
      %v2845 = vld [vmem:[%s650 + $0x98] sm:$0xf]
      %v2846 = vld [vmem:[%s650 + $0x9c] sm:$0xff]
      %v2847 = vld [vmem:[%s650 + $0xa4] sm:$0xf]
      %v2848 = vld [vmem:[%s650 + $0xa8] sm:$0xff]
      %v2849 = vld [vmem:[%s650 + $0xb0] sm:$0xf]
      %v2850 = vld [vmem:[%s650 + $0xb4] sm:$0xff]
      %v2851 = vld [vmem:[%s650 + $0xbc] sm:$0xf]
      %v2852 = vld [vmem:[%s650 + $0xc0] sm:$0xff]
      %v2853 = vld [vmem:[%s650 + $0xc8] sm:$0xf]
      %v2854 = vld [vmem:[%s650 + $0xcc] sm:$0xff]
      %v2855 = vld [vmem:[%s650 + $0xd4] sm:$0xf]
      %v2856 = vld [vmem:[%s650 + $0xd8] sm:$0xff]
      %v2857 = vld [vmem:[%s650 + $0xe0] sm:$0xf]
      %v2858 = vld [vmem:[%s650 + $0xe4] sm:$0xff]
      %v2859 = vld [vmem:[%s650 + $0xec] sm:$0xf]
      %v2860 = vld [vmem:[%s650 + $0xf0] sm:$0xff]
      %v2861 = vld [vmem:[%s650 + $0xf8] sm:$0xf]
      %v2862 = vld [vmem:[%s650 + $0xfc] sm:$0xff]
      %v2863 = vld [vmem:[%s650 + $0x104] sm:$0xf]
      %v2864 = vld [vmem:[%s650 + $0x108] sm:$0xff]
      %v2865 = vld [vmem:[%s650 + $0x110] sm:$0xf]
      %v2866 = vld [vmem:[%s650 + $0x114] sm:$0xff]
      %v2867 = vld [vmem:[%s650 + $0x11c] sm:$0xf]
      %v2868 = vld [vmem:[%s650 + $0x120] sm:$0xff]
      %v2869 = vld [vmem:[%s650 + $0x128] sm:$0xf]
      %v2870 = vld [vmem:[%s650 + $0x12c] sm:$0xff]
      %v2871 = vld [vmem:[%s650 + $0x134] sm:$0xf]
      %v2872 = vld [vmem:[%s650 + $0x138] sm:$0xff]
      %v2873 = vld [vmem:[%s650 + $0x140] sm:$0xf]
      %v2874 = vld [vmem:[%s650 + $0x144] sm:$0xff]
      %v2875 = vld [vmem:[%s650 + $0x14c] sm:$0xf]
      %v2876 = vld [vmem:[%s650 + $0x150] sm:$0xff]
      %v2877 = vld [vmem:[%s650 + $0x158] sm:$0xf]
      %v2878 = vld [vmem:[%s650 + $0x15c] sm:$0xff]
      %v2879 = vld [vmem:[%s650 + $0x164] sm:$0xf]
      %v2880 = vld [vmem:[%s650 + $0x168] sm:$0xff]
      %v2881 = vld [vmem:[%s650 + $0x170] sm:$0xf]
      %v2882 = vld [vmem:[%s650 + $0x174] sm:$0xff]
      %v2883 = vld [vmem:[%s650 + $0x17c] sm:$0xf]
      %v2884 = vld [vmem:[%s650 + $0x180] sm:$0xff]
      %v2885 = vld [vmem:[%s650 + $0x188] sm:$0xf]
      %v2886 = vld [vmem:[%s650 + $0x18c] sm:$0xff]
      %v2887 = vld [vmem:[%s650 + $0x194] sm:$0xf]
      %v2888 = vld [vmem:[%s650 + $0x198] sm:$0xff]
      %v2889 = vld [vmem:[%s650 + $0x1a0] sm:$0xf]
      %v2890 = vld [vmem:[%s650 + $0x1a4] sm:$0xff]
      %v2891 = vld [vmem:[%s650 + $0x1ac] sm:$0xf]
      %v2892 = vld [vmem:[%s650 + $0x1b0] sm:$0xff]
      %v2893 = vld [vmem:[%s650 + $0x1b8] sm:$0xf]
      %v2894 = vld [vmem:[%s650 + $0x1bc] sm:$0xff]
      %v2895 = vld [vmem:[%s650 + $0x1c4] sm:$0xf]
      %v2896 = vld [vmem:[%s650 + $0x1c8] sm:$0xff]
      %v2897 = vld [vmem:[%s650 + $0x1d0] sm:$0xf]
      %v2898 = vld [vmem:[%s650 + $0x1d4] sm:$0xff]
      %v2899 = vld [vmem:[%s650 + $0x1dc] sm:$0xf]
      %v2900 = vld [vmem:[%s650 + $0x1e0] sm:$0xff]
      %v2901 = vld [vmem:[%s650 + $0x1e8] sm:$0xf]
      %v2902 = vld [vmem:[%s650 + $0x1ec] sm:$0xff]
      %v2903 = vld [vmem:[%s650 + $0x1f4] sm:$0xf]
      %v2904 = vld [vmem:[%s650 + $0x1f8] sm:$0xff]
      %v2905 = vld [vmem:[%s650 + $0x200] sm:$0xf]
      %v2906 = vld [vmem:[%s650 + $0x204] sm:$0xff]
      %v2907 = vld [vmem:[%s650 + $0x20c] sm:$0xf]
      %v2908 = vld [vmem:[%s650 + $0x210] sm:$0xff]
      %v2909 = vld [vmem:[%s650 + $0x218] sm:$0xf]
      %v2910 = vld [vmem:[%s650 + $0x21c] sm:$0xff]
      %v2911 = vld [vmem:[%s650 + $0x224] sm:$0xf]
      %v2912 = vld [vmem:[%s650 + $0x228] sm:$0xff]
      %v2913 = vld [vmem:[%s650 + $0x230] sm:$0xf]
      %v2914 = vld [vmem:[%s650 + $0x234] sm:$0xff]
      %v2915 = vld [vmem:[%s650 + $0x23c] sm:$0xf]
      %v2916 = vld [vmem:[%s654] sm:$0x7]
      %v2918 = vlaneseq
      %v2919 = vshrl.u32 %v2918, 7
      %v2920 = vsub.s32 0, %v2919
      %v2921 = vrot.slane %v2916, %v2920
      %v2922 = vlaneseq
      %v2923 = vshrl.u32 %v2922, 7
      %v2924 = vsub.s32 1, %v2923
      %v2925 = vrot.slane %v2916, %v2924
      %v2926 = vlaneseq
      %v2927 = vshrl.u32 %v2926, 7
      %v2928 = vsub.s32 2, %v2927
      %v2929 = vrot.slane %v2916, %v2928
      %v3029 = vunpack.c.l.b16 %v2820
      %v3030 = vunpack.c.h.b16 %v2820
      %v3031 = vunpack.c.l.b16 %v2821
      %v3032 = vunpack.c.l.b16 %v2822
      %v3033 = vunpack.c.h.b16 %v2822
      %v3034 = vunpack.c.l.b16 %v2823
      %v3035 = vunpack.c.l.b16 %v2824
      %v3036 = vunpack.c.h.b16 %v2824
      %v3037 = vunpack.c.l.b16 %v2825
      %v3038 = vunpack.c.l.b16 %v2826
      %v3039 = vunpack.c.h.b16 %v2826
      %v3040 = vunpack.c.l.b16 %v2827
      %v3041 = vunpack.c.l.b16 %v2828
      %v3042 = vunpack.c.h.b16 %v2828
      %v3043 = vunpack.c.l.b16 %v2829
      %v3044 = vunpack.c.l.b16 %v2830
      %v3045 = vunpack.c.h.b16 %v2830
      %v3046 = vunpack.c.l.b16 %v2831
      %v3047 = vunpack.c.l.b16 %v2832
      %v3048 = vunpack.c.h.b16 %v2832
      %v3049 = vunpack.c.l.b16 %v2833
      %v3050 = vunpack.c.l.b16 %v2834
      %v3051 = vunpack.c.h.b16 %v2834
      %v3052 = vunpack.c.l.b16 %v2835
      %v3053 = vunpack.c.l.b16 %v2836
      %v3054 = vunpack.c.h.b16 %v2836
      %v3055 = vunpack.c.l.b16 %v2837
      %v3056 = vunpack.c.l.b16 %v2838
      %v3057 = vunpack.c.h.b16 %v2838
      %v3058 = vunpack.c.l.b16 %v2839
      %v3059 = vunpack.c.l.b16 %v2840
      %v3060 = vunpack.c.h.b16 %v2840
      %v3061 = vunpack.c.l.b16 %v2841
      %v3062 = vunpack.c.l.b16 %v2842
      %v3063 = vunpack.c.h.b16 %v2842
      %v3064 = vunpack.c.l.b16 %v2843
      %v3065 = vunpack.c.l.b16 %v2844
      %v3066 = vunpack.c.h.b16 %v2844
      %v3067 = vunpack.c.l.b16 %v2845
      %v3068 = vunpack.c.l.b16 %v2846
      %v3069 = vunpack.c.h.b16 %v2846
      %v3070 = vunpack.c.l.b16 %v2847
      %v3071 = vunpack.c.l.b16 %v2848
      %v3072 = vunpack.c.h.b16 %v2848
      %v3073 = vunpack.c.l.b16 %v2849
      %v3074 = vunpack.c.l.b16 %v2850
      %v3075 = vunpack.c.h.b16 %v2850
      %v3076 = vunpack.c.l.b16 %v2851
      %v3077 = vunpack.c.l.b16 %v2852
      %v3078 = vunpack.c.h.b16 %v2852
      %v3079 = vunpack.c.l.b16 %v2853
      %v3080 = vunpack.c.l.b16 %v2854
      %v3081 = vunpack.c.h.b16 %v2854
      %v3082 = vunpack.c.l.b16 %v2855
      %v3083 = vunpack.c.l.b16 %v2856
      %v3084 = vunpack.c.h.b16 %v2856
      %v3085 = vunpack.c.l.b16 %v2857
      %v3086 = vunpack.c.l.b16 %v2858
      %v3087 = vunpack.c.h.b16 %v2858
      %v3088 = vunpack.c.l.b16 %v2859
      %v3089 = vunpack.c.l.b16 %v2860
      %v3090 = vunpack.c.h.b16 %v2860
      %v3091 = vunpack.c.l.b16 %v2861
      %v3092 = vunpack.c.l.b16 %v2862
      %v3093 = vunpack.c.h.b16 %v2862
      %v3094 = vunpack.c.l.b16 %v2863
      %v3095 = vunpack.c.l.b16 %v2864
      %v3096 = vunpack.c.h.b16 %v2864
      %v3097 = vunpack.c.l.b16 %v2865
      %v3098 = vunpack.c.l.b16 %v2866
      %v3099 = vunpack.c.h.b16 %v2866
      %v3100 = vunpack.c.l.b16 %v2867
      %v3101 = vunpack.c.l.b16 %v2868
      %v3102 = vunpack.c.h.b16 %v2868
      %v3103 = vunpack.c.l.b16 %v2869
      %v3104 = vunpack.c.l.b16 %v2870
      %v3105 = vunpack.c.h.b16 %v2870
      %v3106 = vunpack.c.l.b16 %v2871
      %v3107 = vunpack.c.l.b16 %v2872
      %v3108 = vunpack.c.h.b16 %v2872
      %v3109 = vunpack.c.l.b16 %v2873
      %v3110 = vunpack.c.l.b16 %v2874
      %v3111 = vunpack.c.h.b16 %v2874
      %v3112 = vunpack.c.l.b16 %v2875
      %v3113 = vunpack.c.l.b16 %v2876
      %v3114 = vunpack.c.h.b16 %v2876
      %v3115 = vunpack.c.l.b16 %v2877
      %v3116 = vunpack.c.l.b16 %v2878
      %v3117 = vunpack.c.h.b16 %v2878
      %v3118 = vunpack.c.l.b16 %v2879
      %v3119 = vunpack.c.l.b16 %v2880
      %v3120 = vunpack.c.h.b16 %v2880
      %v3121 = vunpack.c.l.b16 %v2881
      %v3122 = vunpack.c.l.b16 %v2882
      %v3123 = vunpack.c.h.b16 %v2882
      %v3124 = vunpack.c.l.b16 %v2883
      %v3125 = vunpack.c.l.b16 %v2884
      %v3126 = vunpack.c.h.b16 %v2884
      %v3127 = vunpack.c.l.b16 %v2885
      %v3128 = vunpack.c.l.b16 %v2886
      %v3129 = vunpack.c.h.b16 %v2886
      %v3130 = vunpack.c.l.b16 %v2887
      %v3131 = vunpack.c.l.b16 %v2888
      %v3132 = vunpack.c.h.b16 %v2888
      %v3133 = vunpack.c.l.b16 %v2889
      %v3134 = vunpack.c.l.b16 %v2890
      %v3135 = vunpack.c.h.b16 %v2890
      %v3136 = vunpack.c.l.b16 %v2891
      %v3137 = vunpack.c.l.b16 %v2892
      %v3138 = vunpack.c.h.b16 %v2892
      %v3139 = vunpack.c.l.b16 %v2893
      %v3140 = vunpack.c.l.b16 %v2894
      %v3141 = vunpack.c.h.b16 %v2894
      %v3142 = vunpack.c.l.b16 %v2895
      %v3143 = vunpack.c.l.b16 %v2896
      %v3144 = vunpack.c.h.b16 %v2896
      %v3145 = vunpack.c.l.b16 %v2897
      %v3146 = vunpack.c.l.b16 %v2898
      %v3147 = vunpack.c.h.b16 %v2898
      %v3148 = vunpack.c.l.b16 %v2899
      %v3149 = vunpack.c.l.b16 %v2900
      %v3150 = vunpack.c.h.b16 %v2900
      %v3151 = vunpack.c.l.b16 %v2901
      %v3152 = vunpack.c.l.b16 %v2902
      %v3153 = vunpack.c.h.b16 %v2902
      %v3154 = vunpack.c.l.b16 %v2903
      %v3155 = vunpack.c.l.b16 %v2904
      %v3156 = vunpack.c.h.b16 %v2904
      %v3157 = vunpack.c.l.b16 %v2905
      %v3158 = vunpack.c.l.b16 %v2906
      %v3159 = vunpack.c.h.b16 %v2906
      %v3160 = vunpack.c.l.b16 %v2907
      %v3161 = vunpack.c.l.b16 %v2908
      %v3162 = vunpack.c.h.b16 %v2908
      %v3163 = vunpack.c.l.b16 %v2909
      %v3164 = vunpack.c.l.b16 %v2910
      %v3165 = vunpack.c.h.b16 %v2910
      %v3166 = vunpack.c.l.b16 %v2911
      %v3167 = vunpack.c.l.b16 %v2912
      %v3168 = vunpack.c.h.b16 %v2912
      %v3169 = vunpack.c.l.b16 %v2913
      %v3170 = vunpack.c.l.b16 %v2914
      %v3171 = vunpack.c.h.b16 %v2914
      %v3172 = vunpack.c.l.b16 %v2915
      %v3173 = vpack.c.b16 %v3032, %v3029
      %v3174 = vpack.c.b16 %v3033, %v3030
      %v3175 = vpack.c.b16 %v3034, %v3031
      %v3176 = vpack.c.b16 %v3038, %v3035
      %v3177 = vpack.c.b16 %v3039, %v3036
      %v3178 = vpack.c.b16 %v3040, %v3037
      %v3179 = vpack.c.b16 %v3044, %v3041
      %v3180 = vpack.c.b16 %v3045, %v3042
      %v3181 = vpack.c.b16 %v3046, %v3043
      %v3182 = vpack.c.b16 %v3050, %v3047
      %v3183 = vpack.c.b16 %v3051, %v3048
      %v3184 = vpack.c.b16 %v3052, %v3049
      %v3185 = vpack.c.b16 %v3056, %v3053
      %v3186 = vpack.c.b16 %v3057, %v3054
      %v3187 = vpack.c.b16 %v3058, %v3055
      %v3188 = vpack.c.b16 %v3062, %v3059
      %v3189 = vpack.c.b16 %v3063, %v3060
      %v3190 = vpack.c.b16 %v3064, %v3061
      %v3191 = vpack.c.b16 %v3068, %v3065
      %v3192 = vpack.c.b16 %v3069, %v3066
      %v3193 = vpack.c.b16 %v3070, %v3067
      %v3194 = vpack.c.b16 %v3074, %v3071
      %v3195 = vpack.c.b16 %v3075, %v3072
      %v3196 = vpack.c.b16 %v3076, %v3073
      %v3197 = vpack.c.b16 %v3080, %v3077
      %v3198 = vpack.c.b16 %v3081, %v3078
      %v3199 = vpack.c.b16 %v3082, %v3079
      %v3200 = vpack.c.b16 %v3086, %v3083
      %v3201 = vpack.c.b16 %v3087, %v3084
      %v3202 = vpack.c.b16 %v3088, %v3085
      %v3203 = vpack.c.b16 %v3092, %v3089
      %v3204 = vpack.c.b16 %v3093, %v3090
      %v3205 = vpack.c.b16 %v3094, %v3091
      %v3206 = vpack.c.b16 %v3098, %v3095
      %v3207 = vpack.c.b16 %v3099, %v3096
      %v3208 = vpack.c.b16 %v3100, %v3097
      %v3209 = vpack.c.b16 %v3104, %v3101
      %v3210 = vpack.c.b16 %v3105, %v3102
      %v3211 = vpack.c.b16 %v3106, %v3103
      %v3212 = vpack.c.b16 %v3110, %v3107
      %v3213 = vpack.c.b16 %v3111, %v3108
      %v3214 = vpack.c.b16 %v3112, %v3109
      %v3215 = vpack.c.b16 %v3116, %v3113
      %v3216 = vpack.c.b16 %v3117, %v3114
      %v3217 = vpack.c.b16 %v3118, %v3115
      %v3218 = vpack.c.b16 %v3122, %v3119
      %v3219 = vpack.c.b16 %v3123, %v3120
      %v3220 = vpack.c.b16 %v3124, %v3121
      %v3221 = vpack.c.b16 %v3128, %v3125
      %v3222 = vpack.c.b16 %v3129, %v3126
      %v3223 = vpack.c.b16 %v3130, %v3127
      %v3224 = vpack.c.b16 %v3134, %v3131
      %v3225 = vpack.c.b16 %v3135, %v3132
      %v3226 = vpack.c.b16 %v3136, %v3133
      %v3227 = vpack.c.b16 %v3140, %v3137
      %v3228 = vpack.c.b16 %v3141, %v3138
      %v3229 = vpack.c.b16 %v3142, %v3139
      %v3230 = vpack.c.b16 %v3146, %v3143
      %v3231 = vpack.c.b16 %v3147, %v3144
      %v3232 = vpack.c.b16 %v3148, %v3145
      %v3233 = vpack.c.b16 %v3152, %v3149
      %v3234 = vpack.c.b16 %v3153, %v3150
      %v3235 = vpack.c.b16 %v3154, %v3151
      %v3236 = vpack.c.b16 %v3158, %v3155
      %v3237 = vpack.c.b16 %v3159, %v3156
      %v3238 = vpack.c.b16 %v3160, %v3157
      %v3239 = vpack.c.b16 %v3164, %v3161
      %v3240 = vpack.c.b16 %v3165, %v3162
      %v3241 = vpack.c.b16 %v3166, %v3163
      %v3242 = vpack.c.b16 %v3170, %v3167
      %v3243 = vpack.c.b16 %v3171, %v3168
      %v3244 = vpack.c.b16 %v3172, %v3169
      %3317 = vmatprep.subr.bf16.mxu0 %v3174
      %3318 = vmatpush1.bf16.msra.mxu0 %v3173
      %3319 = vmatprep.subr.bf16.mxu0 %v3177
      %3320 = vmatpush1.bf16.msra.mxu0 %v3176
      %3321 = vmatprep.subr.bf16.mxu0 %v3180
      %3322 = vmatpush1.bf16.msra.mxu0 %v3179
      %3323 = vmatprep.subr.bf16.mxu0 %v3183
      %3324 = vmatpush1.bf16.msra.mxu0 %v3182
      %3325 = vmatprep.subr.bf16.mxu0 %v3186
      %3326 = vmatpush1.bf16.msra.mxu0 %v3185
      %3327 = vmatprep.subr.bf16.mxu0 %v3189
      %3328 = vmatpush1.bf16.msra.mxu0 %v3188
      %3329 = vmatprep.subr.bf16.mxu0 %v3192
      %3330 = vmatpush1.bf16.msra.mxu0 %v3191
      %3331 = vmatprep.subr.bf16.mxu0 %v3195
      %3332 = vmatpush1.bf16.msra.mxu0 %v3194
      %3333 = vmatprep.subr.bf16.mxu0 %v3198
      %3334 = vmatpush1.bf16.msra.mxu0 %v3197
      %3335 = vmatprep.subr.bf16.mxu0 %v3201
      %3336 = vmatpush1.bf16.msra.mxu0 %v3200
      %3337 = vmatprep.subr.bf16.mxu0 %v3204
      %3338 = vmatpush1.bf16.msra.mxu0 %v3203
      %3339 = vmatprep.subr.bf16.mxu0 %v3207
      %3340 = vmatpush1.bf16.msra.mxu0 %v3206
      %3341 = vmatprep.subr.bf16.mxu0 %v3210
      %3342 = vmatpush1.bf16.msra.mxu0 %v3209
      %3343 = vmatprep.subr.bf16.mxu0 %v3213
      %3344 = vmatpush1.bf16.msra.mxu0 %v3212
      %3345 = vmatprep.subr.bf16.mxu0 %v3216
      %3346 = vmatpush1.bf16.msra.mxu0 %v3215
      %3347 = vmatprep.subr.bf16.mxu0 %v3219
      %3348 = vmatpush1.bf16.msra.mxu0 %v3218
      %3349 = vmatprep.mubr.bf16.mxu0 %v2818
      %3350 = vmatmul.mubr.bf16.gmra.mrb[0].mxu0 %v2817
      %v3351 = vpop.f32.mrb[0].mxu0
      %v3352 = vadd.f32 %v2921, %v3351
      %v3353 = vpop.f32.mrb[0].mxu0
      %v3354 = vadd.f32 %v2925, %v3353
      %v3355 = vpop.f32.mrb[0].mxu0
      %v3356 = vpop.f32.mrb[0].mxu0
      %3357 = vdwg.mxu0
      %3358 = vmatprep.subr.bf16.mxu0 %v3222
      %3359 = vmatpush1.bf16.msra.mxu0 %v3221
      %3360 = vmatprep.subr.bf16.mxu0 %v3225
      %3361 = vmatpush1.bf16.msra.mxu0 %v3224
      %3362 = vmatprep.subr.bf16.mxu0 %v3228
      %3363 = vmatpush1.bf16.msra.mxu0 %v3227
      %3364 = vmatprep.subr.bf16.mxu0 %v3231
      %3365 = vmatpush1.bf16.msra.mxu0 %v3230
      %3366 = vmatprep.subr.bf16.mxu0 %v3234
      %3367 = vmatpush1.bf16.msra.mxu0 %v3233
      %3368 = vmatprep.subr.bf16.mxu0 %v3237
      %3369 = vmatpush1.bf16.msra.mxu0 %v3236
      %3370 = vmatprep.subr.bf16.mxu0 %v3240
      %3371 = vmatpush1.bf16.msra.mxu0 %v3239
      %3372 = vmatprep.subr.bf16.mxu0 %v3243
      %3373 = vmatpush1.bf16.msra.mxu0 %v3242
      %3374 = vmatprep.subr.bf16.mxu0 0
      %3375 = vmatpush1.bf16.msra.mxu0 0
      %3376 = vmatprep.subr.bf16.mxu0 0
      %3377 = vmatpush1.bf16.msra.mxu0 0
      %3378 = vmatprep.subr.bf16.mxu0 0
      %3379 = vmatpush1.bf16.msra.mxu0 0
      %3380 = vmatprep.subr.bf16.mxu0 0
      %3381 = vmatpush1.bf16.msra.mxu0 0
      %3382 = vmatprep.subr.bf16.mxu0 0
      %3383 = vmatpush1.bf16.msra.mxu0 0
      %3384 = vmatprep.subr.bf16.mxu0 0
      %3385 = vmatpush1.bf16.msra.mxu0 0
      %3386 = vmatprep.subr.bf16.mxu0 0
      %3387 = vmatpush1.bf16.msra.mxu0 0
      %3388 = vmatprep.subr.bf16.mxu0 0
      %3389 = vmatpush1.bf16.msra.mxu0 0
      %3390 = vmatprep.mubr.bf16.mxu0 0
      %3391 = vmatmul.mubr.bf16.gmra.mrb[0].mxu0 %v2819
      %v3392 = vpop.f32.mrb[0].mxu0
      %v3393 = vadd.f32 %v3352, %v3392
      %v3394 = vpop.f32.mrb[0].mxu0
      %v3395 = vadd.f32 %v3354, %v3394
      %v3396 = vpop.f32.mrb[0].mxu0
      %v3397 = vpop.f32.mrb[0].mxu0
      %3398 = vdwg.mxu0
      %3399 = vmatprep.subr.bf16.mxu0 0
      %3400 = vmatpush1.bf16.msra.mxu0 %v3175
      %3401 = vmatprep.subr.bf16.mxu0 0
      %3402 = vmatpush1.bf16.msra.mxu0 %v3178
      %3403 = vmatprep.subr.bf16.mxu0 0
      %3404 = vmatpush1.bf16.msra.mxu0 %v3181
      %3405 = vmatprep.subr.bf16.mxu0 0
      %3406 = vmatpush1.bf16.msra.mxu0 %v3184
      %3407 = vmatprep.subr.bf16.mxu0 0
      %3408 = vmatpush1.bf16.msra.mxu0 %v3187
      %3409 = vmatprep.subr.bf16.mxu0 0
      %3410 = vmatpush1.bf16.msra.mxu0 %v3190
      %3411 = vmatprep.subr.bf16.mxu0 0
      %3412 = vmatpush1.bf16.msra.mxu0 %v3193
      %3413 = vmatprep.subr.bf16.mxu0 0
      %3414 = vmatpush1.bf16.msra.mxu0 %v3196
      %3415 = vmatprep.subr.bf16.mxu0 0
      %3416 = vmatpush1.bf16.msra.mxu0 %v3199
      %3417 = vmatprep.subr.bf16.mxu0 0
      %3418 = vmatpush1.bf16.msra.mxu0 %v3202
      %3419 = vmatprep.subr.bf16.mxu0 0
      %3420 = vmatpush1.bf16.msra.mxu0 %v3205
      %3421 = vmatprep.subr.bf16.mxu0 0
      %3422 = vmatpush1.bf16.msra.mxu0 %v3208
      %3423 = vmatprep.subr.bf16.mxu0 0
      %3424 = vmatpush1.bf16.msra.mxu0 %v3211
      %3425 = vmatprep.subr.bf16.mxu0 0
      %3426 = vmatpush1.bf16.msra.mxu0 %v3214
      %3427 = vmatprep.subr.bf16.mxu0 0
      %3428 = vmatpush1.bf16.msra.mxu0 %v3217
      %3429 = vmatprep.subr.bf16.mxu0 0
      %3430 = vmatpush1.bf16.msra.mxu0 %v3220
      %3431 = vmatprep.mubr.bf16.mxu0 %v2818
      %3432 = vmatmul.mubr.bf16.gmra.mrb[0].mxu0 %v2817
      %v3433 = vpop.f32.mrb[0].mxu0
      %v3434 = vadd.f32 %v2929, %v3433
      %v3435 = vpop.f32.mrb[0].mxu0
      %v3436 = vpop.f32.mrb[0].mxu0
      %v3437 = vpop.f32.mrb[0].mxu0
      %3438 = vdwg.mxu0
      %3439 = vmatprep.subr.bf16.mxu0 0
      %3440 = vmatpush1.bf16.msra.mxu0 %v3223
      %3441 = vmatprep.subr.bf16.mxu0 0
      %3442 = vmatpush1.bf16.msra.mxu0 %v3226
      %3443 = vmatprep.subr.bf16.mxu0 0
      %3444 = vmatpush1.bf16.msra.mxu0 %v3229
      %3445 = vmatprep.subr.bf16.mxu0 0
      %3446 = vmatpush1.bf16.msra.mxu0 %v3232
      %3447 = vmatprep.subr.bf16.mxu0 0
      %3448 = vmatpush1.bf16.msra.mxu0 %v3235
      %3449 = vmatprep.subr.bf16.mxu0 0
      %3450 = vmatpush1.bf16.msra.mxu0 %v3238
      %3451 = vmatprep.subr.bf16.mxu0 0
      %3452 = vmatpush1.bf16.msra.mxu0 %v3241
      %3453 = vmatprep.subr.bf16.mxu0 0
      %3454 = vmatpush1.bf16.msra.mxu0 %v3244
      %3455 = vmatprep.subr.bf16.mxu0 0
      %3456 = vmatpush1.bf16.msra.mxu0 0
      %3457 = vmatprep.subr.bf16.mxu0 0
      %3458 = vmatpush1.bf16.msra.mxu0 0
      %3459 = vmatprep.subr.bf16.mxu0 0
      %3460 = vmatpush1.bf16.msra.mxu0 0
      %3461 = vmatprep.subr.bf16.mxu0 0
      %3462 = vmatpush1.bf16.msra.mxu0 0
      %3463 = vmatprep.subr.bf16.mxu0 0
      %3464 = vmatpush1.bf16.msra.mxu0 0
      %3465 = vmatprep.subr.bf16.mxu0 0
      %3466 = vmatpush1.bf16.msra.mxu0 0
      %3467 = vmatprep.subr.bf16.mxu0 0
      %3468 = vmatpush1.bf16.msra.mxu0 0
      %3469 = vmatprep.subr.bf16.mxu0 0
      %3470 = vmatpush1.bf16.msra.mxu0 0
      %3471 = vmatprep.mubr.bf16.mxu0 0
      %3472 = vmatmul.mubr.bf16.gmra.mrb[0].mxu0 %v2819
      %v3473 = vpop.f32.mrb[0].mxu0
      %v3474 = vadd.f32 %v3434, %v3473
      %v3475 = vpop.f32.mrb[0].mxu0
      %v3476 = vpop.f32.mrb[0].mxu0
      %v3477 = vpop.f32.mrb[0].mxu0
      %3478 = vdwg.mxu0
      %v3479 = vadd.f32 %v704, %v3393
      %v3480 = vadd.f32 %v705, %v3395
      %v3481 = vadd.f32 %v706, %v3474
      %v3482 = vld [vmem:[%s658] sm:$0x7]
      %v3483 = vld [vmem:[%s662] sm:$0x7]
      %v3484 = vadd.f32 %v3479, %v3480
      %v3485 = vadd.f32 %v3484, %v3481
      %3486 = vadd.xlane.f32.xlu0 %v3485
      %v3487 = vpop.xlane.xlu0 %3486
      %v3488 = vrcp.pop 384.0
      %v3489 = vmul.f32 %v3487, %v3488
      %v3490 = vsub.f32 %v3479, %v3489
      %v3491 = vsub.f32 %v3480, %v3489
      %v3492 = vsub.f32 %v3481, %v3489
      %v3493 = vmul.f32 %v3490, %v3490
      %v3494 = vmul.f32 %v3491, %v3491
      %v3495 = vmul.f32 %v3492, %v3492
      %v3496 = vadd.f32 %v3493, %v3494
      %v3497 = vadd.f32 %v3496, %v3495
      %3498 = vadd.xlane.f32.xlu0 %v3497
      %v3499 = vpop.xlane.xlu0 %3498
      %v3500 = vmul.f32 %v3499, %v3488
      %v3501 = vadd.f32 %v3500, 1e-05
      %v3502 = vrsqrt.pop %v3501
      %v3503 = vmul.f32 %v3490, %v3502
      %v3504 = vmul.f32 %v3491, %v3502
      %v3505 = vmul.f32 %v3492, %v3502
      %v3507 = vlaneseq
      %v3508 = vshrl.u32 %v3507, 7
      %v3509 = vsub.s32 0, %v3508
      %v3510 = vrot.slane %v3482, %v3509
      %v3511 = vlaneseq
      %v3512 = vshrl.u32 %v3511, 7
      %v3513 = vsub.s32 1, %v3512
      %v3514 = vrot.slane %v3482, %v3513
      %v3515 = vlaneseq
      %v3516 = vshrl.u32 %v3515, 7
      %v3517 = vsub.s32 2, %v3516
      %v3518 = vrot.slane %v3482, %v3517
      %v3522 = vmul.f32 %v3503, %v3510
      %v3523 = vmul.f32 %v3504, %v3514
      %v3524 = vmul.f32 %v3505, %v3518
      %v3526 = vlaneseq
      %v3527 = vshrl.u32 %v3526, 7
      %v3528 = vsub.s32 0, %v3527
      %v3529 = vrot.slane %v3483, %v3528
      %v3530 = vlaneseq
      %v3531 = vshrl.u32 %v3530, 7
      %v3532 = vsub.s32 1, %v3531
      %v3533 = vrot.slane %v3483, %v3532
      %v3534 = vlaneseq
      %v3535 = vshrl.u32 %v3534, 7
      %v3536 = vsub.s32 2, %v3535
      %v3537 = vrot.slane %v3483, %v3536
      %v3541 = vadd.f32 %v3522, %v3529
      %v3542 = vadd.f32 %v3523, %v3533
      %v3543 = vadd.f32 %v3524, %v3537
      %v3544 = vpack.c.bf16 %v3541, %v3541
      %v3545 = vpack.c.bf16 %v3542, %v3542
      %v3546 = vpack.c.bf16 %v3543, %v3543
      %v3547 = vld [vmem:[%s675] sm:$0xf]
      %v3548 = vld [vmem:[%s675 + $0x4] sm:$0xf]
      %v3549 = vld [vmem:[%s675 + $0x8] sm:$0xf]
      %v3550 = vld [vmem:[%s675 + $0xc] sm:$0xf]
      %v3551 = vld [vmem:[%s675 + $0x10] sm:$0xf]
      %v3552 = vld [vmem:[%s675 + $0x14] sm:$0xf]
      %v3553 = vld [vmem:[%s675 + $0x18] sm:$0xf]
      %v3554 = vld [vmem:[%s675 + $0x1c] sm:$0xf]
      %v3555 = vld [vmem:[%s675 + $0x20] sm:$0xf]
      %v3556 = vld [vmem:[%s675 + $0x24] sm:$0xf]
      %v3557 = vld [vmem:[%s675 + $0x28] sm:$0xf]
      %v3558 = vld [vmem:[%s675 + $0x2c] sm:$0xf]
      %v3559 = vld [vmem:[%s675 + $0x30] sm:$0xf]
      %v3560 = vld [vmem:[%s675 + $0x34] sm:$0xf]
      %v3561 = vld [vmem:[%s675 + $0x38] sm:$0xf]
      %v3562 = vld [vmem:[%s675 + $0x3c] sm:$0xf]
      %v3563 = vld [vmem:[%s675 + $0x40] sm:$0xf]
      %v3564 = vld [vmem:[%s675 + $0x44] sm:$0xf]
      %v3565 = vld [vmem:[%s675 + $0x48] sm:$0xf]
      %v3566 = vld [vmem:[%s675 + $0x4c] sm:$0xf]
      %v3567 = vld [vmem:[%s675 + $0x50] sm:$0xf]
      %v3568 = vld [vmem:[%s675 + $0x54] sm:$0xf]
      %v3569 = vld [vmem:[%s675 + $0x58] sm:$0xf]
      %v3570 = vld [vmem:[%s675 + $0x5c] sm:$0xf]
      %v3571 = vld [vmem:[%s675 + $0x60] sm:$0xf]
      %v3572 = vld [vmem:[%s675 + $0x64] sm:$0xf]
      %v3573 = vld [vmem:[%s675 + $0x68] sm:$0xf]
      %v3574 = vld [vmem:[%s675 + $0x6c] sm:$0xf]
      %v3575 = vld [vmem:[%s675 + $0x70] sm:$0xf]
      %v3576 = vld [vmem:[%s675 + $0x74] sm:$0xf]
      %v3577 = vld [vmem:[%s675 + $0x78] sm:$0xf]
      %v3578 = vld [vmem:[%s675 + $0x7c] sm:$0xf]
      %v3579 = vld [vmem:[%s675 + $0x80] sm:$0xf]
      %v3580 = vld [vmem:[%s675 + $0x84] sm:$0xf]
      %v3581 = vld [vmem:[%s675 + $0x88] sm:$0xf]
      %v3582 = vld [vmem:[%s675 + $0x8c] sm:$0xf]
      %v3583 = vld [vmem:[%s675 + $0x90] sm:$0xf]
      %v3584 = vld [vmem:[%s675 + $0x94] sm:$0xf]
      %v3585 = vld [vmem:[%s675 + $0x98] sm:$0xf]
      %v3586 = vld [vmem:[%s675 + $0x9c] sm:$0xf]
      %v3587 = vld [vmem:[%s675 + $0xa0] sm:$0xf]
      %v3588 = vld [vmem:[%s675 + $0xa4] sm:$0xf]
      %v3589 = vld [vmem:[%s675 + $0xa8] sm:$0xf]
      %v3590 = vld [vmem:[%s675 + $0xac] sm:$0xf]
      %v3591 = vld [vmem:[%s675 + $0xb0] sm:$0xf]
      %v3592 = vld [vmem:[%s675 + $0xb4] sm:$0xf]
      %v3593 = vld [vmem:[%s675 + $0xb8] sm:$0xf]
      %v3594 = vld [vmem:[%s675 + $0xbc] sm:$0xf]
      %v3595 = vld [vmem:[%s678] sm:$0x1]
      %v3597 = vlaneseq
      %v3598 = vshrl.u32 %v3597, 7
      %v3599 = vsub.s32 0, %v3598
      %v3600 = vrot.slane %v3595, %v3599
      %v3650 = vunpack.c.l.b16 %v3547
      %v3651 = vunpack.c.l.b16 %v3548
      %v3652 = vunpack.c.l.b16 %v3549
      %v3653 = vunpack.c.l.b16 %v3550
      %v3654 = vunpack.c.l.b16 %v3551
      %v3655 = vunpack.c.l.b16 %v3552
      %v3656 = vunpack.c.l.b16 %v3553
      %v3657 = vunpack.c.l.b16 %v3554
      %v3658 = vunpack.c.l.b16 %v3555
      %v3659 = vunpack.c.l.b16 %v3556
      %v3660 = vunpack.c.l.b16 %v3557
      %v3661 = vunpack.c.l.b16 %v3558
      %v3662 = vunpack.c.l.b16 %v3559
      %v3663 = vunpack.c.l.b16 %v3560
      %v3664 = vunpack.c.l.b16 %v3561
      %v3665 = vunpack.c.l.b16 %v3562
      %v3666 = vunpack.c.l.b16 %v3563
      %v3667 = vunpack.c.l.b16 %v3564
      %v3668 = vunpack.c.l.b16 %v3565
      %v3669 = vunpack.c.l.b16 %v3566
      %v3670 = vunpack.c.l.b16 %v3567
      %v3671 = vunpack.c.l.b16 %v3568
      %v3672 = vunpack.c.l.b16 %v3569
      %v3673 = vunpack.c.l.b16 %v3570
      %v3674 = vunpack.c.l.b16 %v3571
      %v3675 = vunpack.c.l.b16 %v3572
      %v3676 = vunpack.c.l.b16 %v3573
      %v3677 = vunpack.c.l.b16 %v3574
      %v3678 = vunpack.c.l.b16 %v3575
      %v3679 = vunpack.c.l.b16 %v3576
      %v3680 = vunpack.c.l.b16 %v3577
      %v3681 = vunpack.c.l.b16 %v3578
      %v3682 = vunpack.c.l.b16 %v3579
      %v3683 = vunpack.c.l.b16 %v3580
      %v3684 = vunpack.c.l.b16 %v3581
      %v3685 = vunpack.c.l.b16 %v3582
      %v3686 = vunpack.c.l.b16 %v3583
      %v3687 = vunpack.c.l.b16 %v3584
      %v3688 = vunpack.c.l.b16 %v3585
      %v3689 = vunpack.c.l.b16 %v3586
      %v3690 = vunpack.c.l.b16 %v3587
      %v3691 = vunpack.c.l.b16 %v3588
      %v3692 = vunpack.c.l.b16 %v3589
      %v3693 = vunpack.c.l.b16 %v3590
      %v3694 = vunpack.c.l.b16 %v3591
      %v3695 = vunpack.c.l.b16 %v3592
      %v3696 = vunpack.c.l.b16 %v3593
      %v3697 = vunpack.c.l.b16 %v3594
      %v3698 = vpack.c.b16 %v3651, %v3650
      %v3699 = vpack.c.b16 %v3653, %v3652
      %v3700 = vpack.c.b16 %v3655, %v3654
      %v3701 = vpack.c.b16 %v3657, %v3656
      %v3702 = vpack.c.b16 %v3659, %v3658
      %v3703 = vpack.c.b16 %v3661, %v3660
      %v3704 = vpack.c.b16 %v3663, %v3662
      %v3705 = vpack.c.b16 %v3665, %v3664
      %v3706 = vpack.c.b16 %v3667, %v3666
      %v3707 = vpack.c.b16 %v3669, %v3668
      %v3708 = vpack.c.b16 %v3671, %v3670
      %v3709 = vpack.c.b16 %v3673, %v3672
      %v3710 = vpack.c.b16 %v3675, %v3674
      %v3711 = vpack.c.b16 %v3677, %v3676
      %v3712 = vpack.c.b16 %v3679, %v3678
      %v3713 = vpack.c.b16 %v3681, %v3680
      %v3714 = vpack.c.b16 %v3683, %v3682
      %v3715 = vpack.c.b16 %v3685, %v3684
      %v3716 = vpack.c.b16 %v3687, %v3686
      %v3717 = vpack.c.b16 %v3689, %v3688
      %v3718 = vpack.c.b16 %v3691, %v3690
      %v3719 = vpack.c.b16 %v3693, %v3692
      %v3720 = vpack.c.b16 %v3695, %v3694
      %v3721 = vpack.c.b16 %v3697, %v3696
      %3746 = vmatprep.subr.bf16.mxu0 0
      %3747 = vmatpush1.bf16.msra.mxu0 %v3698
      %3748 = vmatprep.subr.bf16.mxu0 0
      %3749 = vmatpush1.bf16.msra.mxu0 %v3699
      %3750 = vmatprep.subr.bf16.mxu0 0
      %3751 = vmatpush1.bf16.msra.mxu0 %v3700
      %3752 = vmatprep.subr.bf16.mxu0 0
      %3753 = vmatpush1.bf16.msra.mxu0 %v3701
      %3754 = vmatprep.subr.bf16.mxu0 0
      %3755 = vmatpush1.bf16.msra.mxu0 %v3702
      %3756 = vmatprep.subr.bf16.mxu0 0
      %3757 = vmatpush1.bf16.msra.mxu0 %v3703
      %3758 = vmatprep.subr.bf16.mxu0 0
      %3759 = vmatpush1.bf16.msra.mxu0 %v3704
      %3760 = vmatprep.subr.bf16.mxu0 0
      %3761 = vmatpush1.bf16.msra.mxu0 %v3705
      %3762 = vmatprep.subr.bf16.mxu0 0
      %3763 = vmatpush1.bf16.msra.mxu0 %v3706
      %3764 = vmatprep.subr.bf16.mxu0 0
      %3765 = vmatpush1.bf16.msra.mxu0 %v3707
      %3766 = vmatprep.subr.bf16.mxu0 0
      %3767 = vmatpush1.bf16.msra.mxu0 %v3708
      %3768 = vmatprep.subr.bf16.mxu0 0
      %3769 = vmatpush1.bf16.msra.mxu0 %v3709
      %3770 = vmatprep.subr.bf16.mxu0 0
      %3771 = vmatpush1.bf16.msra.mxu0 %v3710
      %3772 = vmatprep.subr.bf16.mxu0 0
      %3773 = vmatpush1.bf16.msra.mxu0 %v3711
      %3774 = vmatprep.subr.bf16.mxu0 0
      %3775 = vmatpush1.bf16.msra.mxu0 %v3712
      %3776 = vmatprep.subr.bf16.mxu0 0
      %3777 = vmatpush1.bf16.msra.mxu0 %v3713
      %3778 = vmatprep.mubr.bf16.mxu0 %v3545
      %3779 = vmatmul.mubr.bf16.gmra.mrb[0].mxu0 %v3544
      %v3780 = vpop.f32.mrb[0].mxu0
      %v3781 = vadd.f32 %v3600, %v3780
      %v3782 = vpop.f32.mrb[0].mxu0
      %v3783 = vpop.f32.mrb[0].mxu0
      %v3784 = vpop.f32.mrb[0].mxu0
      %3785 = vdwg.mxu0
      %3786 = vmatprep.subr.bf16.mxu0 0
      %3787 = vmatpush1.bf16.msra.mxu0 %v3714
      %3788 = vmatprep.subr.bf16.mxu0 0
      %3789 = vmatpush1.bf16.msra.mxu0 %v3715
      %3790 = vmatprep.subr.bf16.mxu0 0
      %3791 = vmatpush1.bf16.msra.mxu0 %v3716
      %3792 = vmatprep.subr.bf16.mxu0 0
      %3793 = vmatpush1.bf16.msra.mxu0 %v3717
      %3794 = vmatprep.subr.bf16.mxu0 0
      %3795 = vmatpush1.bf16.msra.mxu0 %v3718
      %3796 = vmatprep.subr.bf16.mxu0 0
      %3797 = vmatpush1.bf16.msra.mxu0 %v3719
      %3798 = vmatprep.subr.bf16.mxu0 0
      %3799 = vmatpush1.bf16.msra.mxu0 %v3720
      %3800 = vmatprep.subr.bf16.mxu0 0
      %3801 = vmatpush1.bf16.msra.mxu0 %v3721
      %3802 = vmatprep.subr.bf16.mxu0 0
      %3803 = vmatpush1.bf16.msra.mxu0 0
      %3804 = vmatprep.subr.bf16.mxu0 0
      %3805 = vmatpush1.bf16.msra.mxu0 0
      %3806 = vmatprep.subr.bf16.mxu0 0
      %3807 = vmatpush1.bf16.msra.mxu0 0
      %3808 = vmatprep.subr.bf16.mxu0 0
      %3809 = vmatpush1.bf16.msra.mxu0 0
      %3810 = vmatprep.subr.bf16.mxu0 0
      %3811 = vmatpush1.bf16.msra.mxu0 0
      %3812 = vmatprep.subr.bf16.mxu0 0
      %3813 = vmatpush1.bf16.msra.mxu0 0
      %3814 = vmatprep.subr.bf16.mxu0 0
      %3815 = vmatpush1.bf16.msra.mxu0 0
      %3816 = vmatprep.subr.bf16.mxu0 0
      %3817 = vmatpush1.bf16.msra.mxu0 0
      %3818 = vmatprep.mubr.bf16.mxu0 0
      %3819 = vmatmul.mubr.bf16.gmra.mrb[0].mxu0 %v3546
      %v3820 = vpop.f32.mrb[0].mxu0
      %v3821 = vadd.f32 %v3781, %v3820
      %v3822 = vpop.f32.mrb[0].mxu0
      %v3823 = vpop.f32.mrb[0].mxu0
      %v3824 = vpop.f32.mrb[0].mxu0
      %3825 = vdwg.mxu0
      %v3826 = vmax.f32 %v3821, 0.0
      %v3827 = vpack.c.bf16 %v3826, %v3826
      %v3828 = vld [vmem:[%s683] sm:$0xff]
      %v3829 = vld [vmem:[%s683 + $0x8] sm:$0xf]
      %v3830 = vld [vmem:[%s683 + $0xc] sm:$0xff]
      %v3831 = vld [vmem:[%s683 + $0x14] sm:$0xf]
      %v3832 = vld [vmem:[%s683 + $0x18] sm:$0xff]
      %v3833 = vld [vmem:[%s683 + $0x20] sm:$0xf]
      %v3834 = vld [vmem:[%s683 + $0x24] sm:$0xff]
      %v3835 = vld [vmem:[%s683 + $0x2c] sm:$0xf]
      %v3836 = vld [vmem:[%s683 + $0x30] sm:$0xff]
      %v3837 = vld [vmem:[%s683 + $0x38] sm:$0xf]
      %v3838 = vld [vmem:[%s683 + $0x3c] sm:$0xff]
      %v3839 = vld [vmem:[%s683 + $0x44] sm:$0xf]
      %v3840 = vld [vmem:[%s683 + $0x48] sm:$0xff]
      %v3841 = vld [vmem:[%s683 + $0x50] sm:$0xf]
      %v3842 = vld [vmem:[%s683 + $0x54] sm:$0xff]
      %v3843 = vld [vmem:[%s683 + $0x5c] sm:$0xf]
      %v3844 = vld [vmem:[%s683 + $0x60] sm:$0xff]
      %v3845 = vld [vmem:[%s683 + $0x68] sm:$0xf]
      %v3846 = vld [vmem:[%s683 + $0x6c] sm:$0xff]
      %v3847 = vld [vmem:[%s683 + $0x74] sm:$0xf]
      %v3848 = vld [vmem:[%s683 + $0x78] sm:$0xff]
      %v3849 = vld [vmem:[%s683 + $0x80] sm:$0xf]
      %v3850 = vld [vmem:[%s683 + $0x84] sm:$0xff]
      %v3851 = vld [vmem:[%s683 + $0x8c] sm:$0xf]
      %v3852 = vld [vmem:[%s683 + $0x90] sm:$0xff]
      %v3853 = vld [vmem:[%s683 + $0x98] sm:$0xf]
      %v3854 = vld [vmem:[%s683 + $0x9c] sm:$0xff]
      %v3855 = vld [vmem:[%s683 + $0xa4] sm:$0xf]
      %v3856 = vld [vmem:[%s683 + $0xa8] sm:$0xff]
      %v3857 = vld [vmem:[%s683 + $0xb0] sm:$0xf]
      %v3858 = vld [vmem:[%s683 + $0xb4] sm:$0xff]
      %v3859 = vld [vmem:[%s683 + $0xbc] sm:$0xf]
      %v3860 = vld [vmem:[%s687] sm:$0x7]
      %v3862 = vlaneseq
      %v3863 = vshrl.u32 %v3862, 7
      %v3864 = vsub.s32 0, %v3863
      %v3865 = vrot.slane %v3860, %v3864
      %v3866 = vlaneseq
      %v3867 = vshrl.u32 %v3866, 7
      %v3868 = vsub.s32 1, %v3867
      %v3869 = vrot.slane %v3860, %v3868
      %v3870 = vlaneseq
      %v3871 = vshrl.u32 %v3870, 7
      %v3872 = vsub.s32 2, %v3871
      %v3873 = vrot.slane %v3860, %v3872
      %v3909 = vunpack.c.l.b16 %v3828
      %v3910 = vunpack.c.h.b16 %v3828
      %v3911 = vunpack.c.l.b16 %v3829
      %v3912 = vunpack.c.l.b16 %v3830
      %v3913 = vunpack.c.h.b16 %v3830
      %v3914 = vunpack.c.l.b16 %v3831
      %v3915 = vunpack.c.l.b16 %v3832
      %v3916 = vunpack.c.h.b16 %v3832
      %v3917 = vunpack.c.l.b16 %v3833
      %v3918 = vunpack.c.l.b16 %v3834
      %v3919 = vunpack.c.h.b16 %v3834
      %v3920 = vunpack.c.l.b16 %v3835
      %v3921 = vunpack.c.l.b16 %v3836
      %v3922 = vunpack.c.h.b16 %v3836
      %v3923 = vunpack.c.l.b16 %v3837
      %v3924 = vunpack.c.l.b16 %v3838
      %v3925 = vunpack.c.h.b16 %v3838
      %v3926 = vunpack.c.l.b16 %v3839
      %v3927 = vunpack.c.l.b16 %v3840
      %v3928 = vunpack.c.h.b16 %v3840
      %v3929 = vunpack.c.l.b16 %v3841
      %v3930 = vunpack.c.l.b16 %v3842
      %v3931 = vunpack.c.h.b16 %v3842
      %v3932 = vunpack.c.l.b16 %v3843
      %v3933 = vunpack.c.l.b16 %v3844
      %v3934 = vunpack.c.h.b16 %v3844
      %v3935 = vunpack.c.l.b16 %v3845
      %v3936 = vunpack.c.l.b16 %v3846
      %v3937 = vunpack.c.h.b16 %v3846
      %v3938 = vunpack.c.l.b16 %v3847
      %v3939 = vunpack.c.l.b16 %v3848
      %v3940 = vunpack.c.h.b16 %v3848
      %v3941 = vunpack.c.l.b16 %v3849
      %v3942 = vunpack.c.l.b16 %v3850
      %v3943 = vunpack.c.h.b16 %v3850
      %v3944 = vunpack.c.l.b16 %v3851
      %v3945 = vunpack.c.l.b16 %v3852
      %v3946 = vunpack.c.h.b16 %v3852
      %v3947 = vunpack.c.l.b16 %v3853
      %v3948 = vunpack.c.l.b16 %v3854
      %v3949 = vunpack.c.h.b16 %v3854
      %v3950 = vunpack.c.l.b16 %v3855
      %v3951 = vunpack.c.l.b16 %v3856
      %v3952 = vunpack.c.h.b16 %v3856
      %v3953 = vunpack.c.l.b16 %v3857
      %v3954 = vunpack.c.l.b16 %v3858
      %v3955 = vunpack.c.h.b16 %v3858
      %v3956 = vunpack.c.l.b16 %v3859
      %v3957 = vpack.c.b16 %v3912, %v3909
      %v3958 = vpack.c.b16 %v3913, %v3910
      %v3959 = vpack.c.b16 %v3914, %v3911
      %v3960 = vpack.c.b16 %v3918, %v3915
      %v3961 = vpack.c.b16 %v3919, %v3916
      %v3962 = vpack.c.b16 %v3920, %v3917
      %v3963 = vpack.c.b16 %v3924, %v3921
      %v3964 = vpack.c.b16 %v3925, %v3922
      %v3965 = vpack.c.b16 %v3926, %v3923
      %v3966 = vpack.c.b16 %v3930, %v3927
      %v3967 = vpack.c.b16 %v3931, %v3928
      %v3968 = vpack.c.b16 %v3932, %v3929
      %v3969 = vpack.c.b16 %v3936, %v3933
      %v3970 = vpack.c.b16 %v3937, %v3934
      %v3971 = vpack.c.b16 %v3938, %v3935
      %v3972 = vpack.c.b16 %v3942, %v3939
      %v3973 = vpack.c.b16 %v3943, %v3940
      %v3974 = vpack.c.b16 %v3944, %v3941
      %v3975 = vpack.c.b16 %v3948, %v3945
      %v3976 = vpack.c.b16 %v3949, %v3946
      %v3977 = vpack.c.b16 %v3950, %v3947
      %v3978 = vpack.c.b16 %v3954, %v3951
      %v3979 = vpack.c.b16 %v3955, %v3952
      %v3980 = vpack.c.b16 %v3956, %v3953
      %4005 = vmatprep.subr.bf16.mxu0 %v3958
      %4006 = vmatpush1.bf16.msra.mxu0 %v3957
      %4007 = vmatprep.subr.bf16.mxu0 %v3961
      %4008 = vmatpush1.bf16.msra.mxu0 %v3960
      %4009 = vmatprep.subr.bf16.mxu0 %v3964
      %4010 = vmatpush1.bf16.msra.mxu0 %v3963
      %4011 = vmatprep.subr.bf16.mxu0 %v3967
      %4012 = vmatpush1.bf16.msra.mxu0 %v3966
      %4013 = vmatprep.subr.bf16.mxu0 %v3970
      %4014 = vmatpush1.bf16.msra.mxu0 %v3969
      %4015 = vmatprep.subr.bf16.mxu0 %v3973
      %4016 = vmatpush1.bf16.msra.mxu0 %v3972
      %4017 = vmatprep.subr.bf16.mxu0 %v3976
      %4018 = vmatpush1.bf16.msra.mxu0 %v3975
      %4019 = vmatprep.subr.bf16.mxu0 %v3979
      %4020 = vmatpush1.bf16.msra.mxu0 %v3978
      %4021 = vmatprep.subr.bf16.mxu0 0
      %4022 = vmatpush1.bf16.msra.mxu0 0
      %4023 = vmatprep.subr.bf16.mxu0 0
      %4024 = vmatpush1.bf16.msra.mxu0 0
      %4025 = vmatprep.subr.bf16.mxu0 0
      %4026 = vmatpush1.bf16.msra.mxu0 0
      %4027 = vmatprep.subr.bf16.mxu0 0
      %4028 = vmatpush1.bf16.msra.mxu0 0
      %4029 = vmatprep.subr.bf16.mxu0 0
      %4030 = vmatpush1.bf16.msra.mxu0 0
      %4031 = vmatprep.subr.bf16.mxu0 0
      %4032 = vmatpush1.bf16.msra.mxu0 0
      %4033 = vmatprep.subr.bf16.mxu0 0
      %4034 = vmatpush1.bf16.msra.mxu0 0
      %4035 = vmatprep.subr.bf16.mxu0 0
      %4036 = vmatpush1.bf16.msra.mxu0 0
      %4037 = vmatprep.mubr.bf16.mxu0 0
      %4038 = vmatmul.mubr.bf16.gmra.mrb[0].mxu0 %v3827
      %v4039 = vpop.f32.mrb[0].mxu0
      %v4040 = vadd.f32 %v3865, %v4039
      %v4041 = vpop.f32.mrb[0].mxu0
      %v4042 = vadd.f32 %v3869, %v4041
      %v4043 = vpop.f32.mrb[0].mxu0
      %v4044 = vpop.f32.mrb[0].mxu0
      %4045 = vdwg.mxu0
      %4046 = vmatprep.subr.bf16.mxu0 0
      %4047 = vmatpush1.bf16.msra.mxu0 %v3959
      %4048 = vmatprep.subr.bf16.mxu0 0
      %4049 = vmatpush1.bf16.msra.mxu0 %v3962
      %4050 = vmatprep.subr.bf16.mxu0 0
      %4051 = vmatpush1.bf16.msra.mxu0 %v3965
      %4052 = vmatprep.subr.bf16.mxu0 0
      %4053 = vmatpush1.bf16.msra.mxu0 %v3968
      %4054 = vmatprep.subr.bf16.mxu0 0
      %4055 = vmatpush1.bf16.msra.mxu0 %v3971
      %4056 = vmatprep.subr.bf16.mxu0 0
      %4057 = vmatpush1.bf16.msra.mxu0 %v3974
      %4058 = vmatprep.subr.bf16.mxu0 0
      %4059 = vmatpush1.bf16.msra.mxu0 %v3977
      %4060 = vmatprep.subr.bf16.mxu0 0
      %4061 = vmatpush1.bf16.msra.mxu0 %v3980
      %4062 = vmatprep.subr.bf16.mxu0 0
      %4063 = vmatpush1.bf16.msra.mxu0 0
      %4064 = vmatprep.subr.bf16.mxu0 0
      %4065 = vmatpush1.bf16.msra.mxu0 0
      %4066 = vmatprep.subr.bf16.mxu0 0
      %4067 = vmatpush1.bf16.msra.mxu0 0
      %4068 = vmatprep.subr.bf16.mxu0 0
      %4069 = vmatpush1.bf16.msra.mxu0 0
      %4070 = vmatprep.subr.bf16.mxu0 0
      %4071 = vmatpush1.bf16.msra.mxu0 0
      %4072 = vmatprep.subr.bf16.mxu0 0
      %4073 = vmatpush1.bf16.msra.mxu0 0
      %4074 = vmatprep.subr.bf16.mxu0 0
      %4075 = vmatpush1.bf16.msra.mxu0 0
      %4076 = vmatprep.subr.bf16.mxu0 0
      %4077 = vmatpush1.bf16.msra.mxu0 0
      %4078 = vmatprep.mubr.bf16.mxu0 0
      %4079 = vmatmul.mubr.bf16.gmra.mrb[0].mxu0 %v3827
      %v4080 = vpop.f32.mrb[0].mxu0
      %v4081 = vadd.f32 %v3873, %v4080
      %v4082 = vpop.f32.mrb[0].mxu0
      %v4083 = vpop.f32.mrb[0].mxu0
      %v4084 = vpop.f32.mrb[0].mxu0
      %4085 = vdwg.mxu0
      %v4086 = vadd.f32 %v3541, %v4040
      %v4087 = vadd.f32 %v3542, %v4042
      %v4088 = vadd.f32 %v3543, %v4081
      %v4089 = vld [vmem:[%s666] sm:$0x7]
      %v4090 = vld [vmem:[%s670] sm:$0x7]
      %v4091 = vadd.f32 %v4086, %v4087
      %v4092 = vadd.f32 %v4091, %v4088
      %4093 = vadd.xlane.f32.xlu0 %v4092
      %v4094 = vpop.xlane.xlu0 %4093
      %v4095 = vmul.f32 %v4094, %v3488
      %v4096 = vsub.f32 %v4086, %v4095
      %v4097 = vsub.f32 %v4087, %v4095
      %v4098 = vsub.f32 %v4088, %v4095
      %v4099 = vmul.f32 %v4096, %v4096
      %v4100 = vmul.f32 %v4097, %v4097
      %v4101 = vmul.f32 %v4098, %v4098
      %v4102 = vadd.f32 %v4099, %v4100
      %v4103 = vadd.f32 %v4102, %v4101
      %4104 = vadd.xlane.f32.xlu0 %v4103
      %v4105 = vpop.xlane.xlu0 %4104
      %v4106 = vmul.f32 %v4105, %v3488
      %v4107 = vadd.f32 %v4106, 1e-05
      %v4108 = vrsqrt.pop %v4107
      %v4109 = vmul.f32 %v4096, %v4108
      %v4110 = vmul.f32 %v4097, %v4108
      %v4111 = vmul.f32 %v4098, %v4108
      %v4113 = vlaneseq
      %v4114 = vshrl.u32 %v4113, 7
      %v4115 = vsub.s32 0, %v4114
      %v4116 = vrot.slane %v4089, %v4115
      %v4117 = vlaneseq
      %v4118 = vshrl.u32 %v4117, 7
      %v4119 = vsub.s32 1, %v4118
      %v4120 = vrot.slane %v4089, %v4119
      %v4121 = vlaneseq
      %v4122 = vshrl.u32 %v4121, 7
      %v4123 = vsub.s32 2, %v4122
      %v4124 = vrot.slane %v4089, %v4123
      %v4128 = vmul.f32 %v4109, %v4116
      %v4129 = vmul.f32 %v4110, %v4120
      %v4130 = vmul.f32 %v4111, %v4124
      %v4132 = vlaneseq
      %v4133 = vshrl.u32 %v4132, 7
      %v4134 = vsub.s32 0, %v4133
      %v4135 = vrot.slane %v4090, %v4134
      %v4136 = vlaneseq
      %v4137 = vshrl.u32 %v4136, 7
      %v4138 = vsub.s32 1, %v4137
      %v4139 = vrot.slane %v4090, %v4138
      %v4140 = vlaneseq
      %v4141 = vshrl.u32 %v4140, 7
      %v4142 = vsub.s32 2, %v4141
      %v4143 = vrot.slane %v4090, %v4142
      %v4147 = vadd.f32 %v4128, %v4135
      %v4148 = vadd.f32 %v4129, %v4139
      %v4149 = vadd.f32 %v4130, %v4143
      %v4150 = vadd.f32 %v4147, %v704
      %v4151 = vadd.f32 %v4148, %v705
      %v4152 = vadd.f32 %v4149, %v706
      %4153 = vst [vmem:[%s692] sm:$0xff] %v4150
      %4154 = vst [vmem:[%s692 + $0x8] sm:$0xff] %v4151
      %4155 = vst [vmem:[%s692 + $0x10] sm:$0xff] %v4152
      %p4156 = scmp.lt.s32.totalorder %s29, 1
      %s4157 = scalar_select %p4156, %s29, 1
      %s4158 = smul.addr %s4157, 3
      %s4159 = smul.addr %s4158, 8
      %s4160 = scalar_lea.vmem %s14, %s4159
      // Predicated region
      $region81: #{transformer_model_forward.1} parent=75 // pred_check
        %p4161 = pneg %p414
      $region82: #{transformer_model_forward.1} parent=75 // pred_check_branch
        %4163 = sbr.rel (%p4161) target = $region84
      $region83: #{transformer_model_forward.1} parent=75 // pred_region
        _
      $region84: #{transformer_model_forward.1} parent=75 // pred_fallthru
        _
    $region76: #{transformer_model_forward.1} parent=5 // pred_fallthru
      _
    %p4164 = scmp.le.s32.totalorder 2, %s20
    // Predicated region
    $region85: #{transformer_model_forward.1} parent=5 // pred_check
      %p4165 = pneg %p4164
    $region86: #{transformer_model_forward.1} parent=5 // pred_check_branch
      %4167 = sbr.rel (%p4165) target = $region88
    $region87: #{transformer_model_forward.1} parent=5 // pred_region
      %s4168 = ssub.s32 %s20, 2
      // Predicated region
      $region89: #{transformer_model_forward.1} parent=87 // pred_check
        %p4169 = pneg %p420
      $region90: #{transformer_model_forward.1} parent=87 // pred_check_branch
        %4171 = sbr.rel (%p4169) target = $region92
      $region91: #{transformer_model_forward.1} parent=87 // pred_region
        %p4172 = scmp.lt.s32.totalorder %s31, 1
        %s4173 = scalar_select %p4172, %s31, 1
        %s4174 = smul.addr %s4173, 3
        %s4175 = smul.addr %s4174, 8
        %s4176 = scalar_lea.vmem %s14, %s4175
      $region92: #{transformer_model_forward.1} parent=87 // pred_fallthru
        _
    $region88: #{transformer_model_forward.1} parent=5 // pred_fallthru
      _
  $region6: #{transformer_model_forward.1} parent=0 // loop_footer
    %s24 = sadd.s32 1, %s20
  $region7: #{transformer_model_forward.1} parent=0 // loop_footer_branch
    %19 = sbr.rel target = $region3
  $region8: #{transformer_model_forward.1} parent=0 // loop_exit
    _

</llo_original>
